<compile_context>
chip_gen: v7x
topology: tpu7x:2x2x1
jax: 0.10.0
libtpu: 0.0.40
codegen_flags: <defaults>
</compile_context>

<pallas_src>
from functools import partial

import jax
import jax.numpy as jnp
from jax import lax
from jax.experimental import pallas as pl
from jax.experimental.pallas import tpu as pltpu


def _make_mhsa_kernel(heads, D):
    def kernel(x_ref, w_ref, pos_ref, o_ref):
        # x_ref:   (1, C+1, N)  activations with a ones-row appended (bias fold)
        # w_ref:   (3C, C+1)    per-head stacked [Wk; Wq; Wv | bias] rows
        # pos_ref: (C, N)       rel_h + rel_w, head-major (heads*D = C rows)
        # o_ref:   (1, C, N)    output, head-major rows
        x = x_ref[0]                                   # (C+1, N), input dtype
        w = w_ref[...]                                 # (3C, C+1), input dtype

        # One fused q/k/v projection for ALL heads: single MXU matmul,
        # f32 accumulation, biases folded in via the ones-row / bias column.
        qkv = jnp.dot(w, x, preferred_element_type=jnp.float32)   # (3C, N) f32

        # Unrolled head loop (heads is small & static).
        for h in range(heads):
            base = 3 * D * h
            kq = qkv[base:base + 2 * D]                # (2D, N) = [k; q], zero-copy slice
            q = qkv[base + D:base + 2 * D]             # (D, N)
            v = qkv[base + 2 * D:base + 3 * D]         # (D, N)
            ph = pos_ref[h * D:(h + 1) * D, :].astype(qkv.dtype)   # (D, N) (no-op cast for f32)
            qp = jnp.concatenate([q, ph], axis=0)      # (2D, N) = [q; pos]

            # Fused content-content + content-position energy, transposed layout:
            #   eT[m, n] = sum_d k[d,m] q[d,n] + sum_d q[d,m] pos[d,n]
            #            = energy[n, m]
            eT = lax.dot_general(kq, qp, (((0,), (0,)), ((), ())),
                                 preferred_element_type=jnp.float32)   # (N_m, N_n)

            # Softmax over m (axis 0), normalization deferred past the PV matmul.
            mx = jnp.max(eT, axis=0, keepdims=True)    # (1, N)
            p = jnp.exp(eT - mx)                       # (N, N)
            s = jnp.sum(p, axis=0, keepdims=True)      # (1, N)

            # out_un[d, n] = sum_m v[d, m] p[m, n]  -- native (D,N)@(N,N), no transpose.
            out_un = jnp.dot(v, p, preferred_element_type=jnp.float32)  # (D, N)

            inv = pl.reciprocal(s, approx=True)        # EUP reciprocal, (1, N)
            o_ref[0, h * D:(h + 1) * D, :] = (out_un * inv).astype(o_ref.dtype)

    return kernel


@partial(jax.jit, static_argnames=("heads",))
def mhsa_forward(x, wq, bq, wk, bk, wv, bv, rel_h, rel_w, heads):
    """x: (B, C, W, H); wq/wk/wv: (C, C); bq/bk/bv: (C,);
    rel_h: (1, heads, D, 1, H); rel_w: (1, heads, D, W, 1)."""
    B, C, Wd, Hd = x.shape
    D = C // heads
    N = Wd * Hd

    # Activations: free reshape + append a ones-row so the bias folds into the matmul.
    x_flat = x.reshape(B, C, N)
    x_aug = jnp.concatenate([x_flat, jnp.ones((B, 1, N), dtype=x.dtype)], axis=1)  # (B, C+1, N)

    # Per-head stacked projection weights in [Wk; Wq; Wv] order (so [k; q] is a
    # contiguous slice of the projection output), with the bias as an extra column.
    wk_h = wk.reshape(heads, D, C)
    wq_h = wq.reshape(heads, D, C)
    wv_h = wv.reshape(heads, D, C)
    bk_h = bk.reshape(heads, D, 1)
    bq_h = bq.reshape(heads, D, 1)
    bv_h = bv.reshape(heads, D, 1)
    w_all = jnp.concatenate([wk_h, wq_h, wv_h], axis=1)            # (heads, 3D, C)
    b_all = jnp.concatenate([bk_h, bq_h, bv_h], axis=1)            # (heads, 3D, 1)
    w_aug = jnp.concatenate([w_all, b_all.astype(w_all.dtype)], axis=2)  # (heads, 3D, C+1)
    w_aug = w_aug.reshape(heads * 3 * D, C + 1)                    # (3C, C+1)

    pos = (rel_h + rel_w).reshape(heads * D, N)                    # (C, N), head-major

    out = pl.pallas_call(
        _make_mhsa_kernel(heads, D),
        out_shape=jax.ShapeDtypeStruct((B, C, N), x.dtype),
        grid_spec=pltpu.PrefetchScalarGridSpec(
            num_scalar_prefetch=0,
            grid=(B,),
            in_specs=[
                pl.BlockSpec((1, C + 1, N), lambda b: (b, 0, 0)),  # activations (+ones row)
                pl.BlockSpec((3 * C, C + 1), lambda b: (0, 0)),    # weights: constant -> DMA once
                pl.BlockSpec((C, N), lambda b: (0, 0)),            # positional: constant -> DMA once
            ],
            out_specs=pl.BlockSpec((1, C, N), lambda b: (b, 0, 0)),
        ),
        compiler_params=pltpu.CompilerParams(
            dimension_semantics=("parallel",)),
    )(x_aug, w_aug, pos)

    # (B, C, N) -> (B, C, W, H): free reshape (head-major rows == channel order).
    return out.reshape(B, C, Wd, Hd)


def _reference(x, wq, bq, wk, bk, wv, bv, rel_h, rel_w, heads):
    """Pure-JAX reference matching the PyTorch MHSA module."""
    B, C, Wd, Hd = x.shape
    D = C // heads
    N = Wd * Hd
    hp = lax.Precision.HIGHEST
    xf = x.reshape(B, C, N).astype(jnp.float32)

    def proj(w, bias):
        return (jnp.einsum('oc,bcn->bon', w.astype(jnp.float32), xf, precision=hp)
                + bias.astype(jnp.float32)[None, :, None]).reshape(B, heads, D, N)

    q = proj(wq, bq)
    k = proj(wk, bk)
    v = proj(wv, bv)

    cc = jnp.einsum('bhdn,bhdm->bhnm', q, k, precision=hp)
    pos = (rel_h + rel_w).reshape(heads, D, N).astype(jnp.float32)
    cp = jnp.einsum('hdn,bhdm->bhnm', pos, q, precision=hp)
    attn = jax.nn.softmax(cc + cp, axis=-1)
    out = jnp.einsum('bhdm,bhnm->bhdn', v, attn, precision=hp)
    return out.reshape(B, C, Wd, Hd).astype(x.dtype)


if __name__ == "__main__":
    key = jax.random.PRNGKey(0)
    ks = jax.random.split(key, 9)

    # Small shapes consistent with the module; 16x16 spatial -> N = 256 keeps
    # every vreg lane-dense and output stores unmasked.
    B, C, Wd, Hd, heads = 2, 32, 16, 16, 4
    D = C // heads

    x = jax.random.normal(ks[0], (B, C, Wd, Hd), dtype=jnp.float32)
    wq = jax.random.normal(ks[1], (C, C), dtype=jnp.float32) * 0.1
    bq = jax.random.normal(ks[2], (C,), dtype=jnp.float32) * 0.1
    wk = jax.random.normal(ks[3], (C, C), dtype=jnp.float32) * 0.1
    bk = jax.random.normal(ks[4], (C,), dtype=jnp.float32) * 0.1
    wv = jax.random.normal(ks[5], (C, C), dtype=jnp.float32) * 0.1
    bv = jax.random.normal(ks[6], (C,), dtype=jnp.float32) * 0.1
    rel_h = jax.random.normal(ks[7], (1, heads, D, 1, Hd), dtype=jnp.float32)
    rel_w = jax.random.normal(ks[8], (1, heads, D, Wd, 1), dtype=jnp.float32)

    out = mhsa_forward(x, wq, bq, wk, bk, wv, bv, rel_h, rel_w, heads)
    out = jax.block_until_ready(out)

    ref = _reference(x, wq, bq, wk, bk, wv, bv, rel_h, rel_w, heads)
    assert out.shape == x.shape
    assert jnp.allclose(out, ref, atol=5e-3, rtol=5e-3), "mismatch vs reference"

    print("KERNEL_OK")
</pallas_src>

<mosaic_0001>
module attributes {stable_mosaic.version = 11 : i64} {
  func.func @kernel(%arg0: i32, %arg1: memref<1x33x256xf32, #tpu.memory_space<vmem>>, %arg2: memref<96x33xf32, #tpu.memory_space<vmem>>, %arg3: memref<32x256xf32, #tpu.memory_space<vmem>>, %arg4: memref<1x32x256xf32, #tpu.memory_space<vmem>>) attributes {dimension_semantics = [#tpu.dimension_semantics<parallel>], iteration_bounds = array<i64: 2>, scalar_prefetch = 0 : i64, scratch_operands = 0 : i64, tpu.core_type = #tpu.core_type<tc>, window_params = [{transform_indices = @transform_0, window_bounds = array<i64: 1, 33, 256>}, {pipeline_mode = #tpu.pipeline_mode<synchronous>, transform_indices = @transform_1, window_bounds = array<i64: 96, 33>}, {pipeline_mode = #tpu.pipeline_mode<synchronous>, transform_indices = @transform_2, window_bounds = array<i64: 32, 256>}, {transform_indices = @transform_3, window_bounds = array<i64: 1, 32, 256>}]} {
    %c0 = arith.constant 0 : index
    %c0_0 = arith.constant 0 : index
    %c0_1 = arith.constant 0 : index
    %0 = vector.load %arg1[%c0, %c0_0, %c0_1] : memref<1x33x256xf32, #tpu.memory_space<vmem>>, vector<1x33x256xf32>
    %1 = vector.shape_cast %0 : vector<1x33x256xf32> to vector<33x256xf32>
    %c0_2 = arith.constant 0 : index
    %c0_3 = arith.constant 0 : index
    %2 = vector.load %arg2[%c0_2, %c0_3] : memref<96x33xf32, #tpu.memory_space<vmem>>, vector<96x33xf32>
    %cst = arith.constant dense<0.000000e+00> : vector<96x256xf32>
    %3 = tpu.matmul %2, %1, %cst {dimension_numbers = #tpu.dot_dimension_numbers<[1], [0], [0], [1], [0, 0, 1, 1], [], []>} : vector<96x33xf32>, vector<33x256xf32>, vector<96x256xf32> -> vector<96x256xf32>
    %4 = vector.extract_strided_slice %3 {offsets = [0, 0], sizes = [16, 256], strides = [1, 1]} : vector<96x256xf32> to vector<16x256xf32>
    %5 = vector.extract_strided_slice %3 {offsets = [8, 0], sizes = [8, 256], strides = [1, 1]} : vector<96x256xf32> to vector<8x256xf32>
    %6 = vector.extract_strided_slice %3 {offsets = [16, 0], sizes = [8, 256], strides = [1, 1]} : vector<96x256xf32> to vector<8x256xf32>
    %c0_4 = arith.constant 0 : index
    %c0_5 = arith.constant 0 : index
    %7 = vector.load %arg3[%c0_4, %c0_5] : memref<32x256xf32, #tpu.memory_space<vmem>>, vector<8x256xf32>
    %8 = tpu.concatenate %5, %7 in 0 : vector<8x256xf32>, vector<8x256xf32> -> vector<16x256xf32>
    %cst_6 = arith.constant dense<0.000000e+00> : vector<256x256xf32>
    %9 = tpu.matmul %4, %8, %cst_6 {dimension_numbers = #tpu.dot_dimension_numbers<[0], [0], [1], [1], [0, 1, 1, 1], [], []>} : vector<16x256xf32>, vector<16x256xf32>, vector<256x256xf32> -> vector<256x256xf32>
    %cst_7 = arith.constant dense<0xFF800000> : vector<256xf32>
    %10 = vector.multi_reduction <maximumf>, %9, %cst_7 [0] : vector<256x256xf32> to vector<256xf32>
    %11 = vector.shape_cast %10 : vector<256xf32> to vector<1x256xf32>
    %12 = vector.broadcast %11 : vector<1x256xf32> to vector<256x256xf32>
    %13 = arith.subf %9, %12 : vector<256x256xf32>
    %14 = math.exp %13 : vector<256x256xf32>
    %cst_8 = arith.constant dense<0.000000e+00> : vector<256xf32>
    %15 = vector.multi_reduction <add>, %14, %cst_8 [0] : vector<256x256xf32> to vector<256xf32>
    %16 = vector.shape_cast %15 : vector<256xf32> to vector<1x256xf32>
    %cst_9 = arith.constant dense<0.000000e+00> : vector<8x256xf32>
    %17 = tpu.matmul %6, %14, %cst_9 {dimension_numbers = #tpu.dot_dimension_numbers<[1], [0], [0], [1], [0, 0, 1, 1], [], []>} : vector<8x256xf32>, vector<256x256xf32>, vector<8x256xf32> -> vector<8x256xf32>
    %18 = tpu.reciprocal %16 {approx = true} : vector<1x256xf32> -> vector<1x256xf32>
    %19 = vector.broadcast %18 : vector<1x256xf32> to vector<8x256xf32>
    %20 = arith.mulf %17, %19 : vector<8x256xf32>
    %c0_10 = arith.constant 0 : index
    %c0_11 = arith.constant 0 : index
    %c0_12 = arith.constant 0 : index
    %21 = vector.load %arg4[%c0_10, %c0_11, %c0_12] : memref<1x32x256xf32, #tpu.memory_space<vmem>>, vector<1x8x256xf32>
    %22 = vector.shape_cast %21 : vector<1x8x256xf32> to vector<8x256xf32>
    %23 = vector.shape_cast %20 : vector<8x256xf32> to vector<1x8x256xf32>
    tpu.vector_store %arg4[%c0_10, %c0_11, %c0_12], %23 {strides = array<i32>} : memref<1x32x256xf32, #tpu.memory_space<vmem>>, vector<1x8x256xf32>,
    %24 = vector.extract_strided_slice %3 {offsets = [24, 0], sizes = [16, 256], strides = [1, 1]} : vector<96x256xf32> to vector<16x256xf32>
    %25 = vector.extract_strided_slice %3 {offsets = [32, 0], sizes = [8, 256], strides = [1, 1]} : vector<96x256xf32> to vector<8x256xf32>
    %26 = vector.extract_strided_slice %3 {offsets = [40, 0], sizes = [8, 256], strides = [1, 1]} : vector<96x256xf32> to vector<8x256xf32>
    %c8 = arith.constant 8 : index
    %c0_13 = arith.constant 0 : index
    %27 = vector.load %arg3[%c8, %c0_13] : memref<32x256xf32, #tpu.memory_space<vmem>>, vector<8x256xf32>
    %28 = tpu.concatenate %25, %27 in 0 : vector<8x256xf32>, vector<8x256xf32> -> vector<16x256xf32>
    %cst_14 = arith.constant dense<0.000000e+00> : vector<256x256xf32>
    %29 = tpu.matmul %24, %28, %cst_14 {dimension_numbers = #tpu.dot_dimension_numbers<[0], [0], [1], [1], [0, 1, 1, 1], [], []>} : vector<16x256xf32>, vector<16x256xf32>, vector<256x256xf32> -> vector<256x256xf32>
    %cst_15 = arith.constant dense<0xFF800000> : vector<256xf32>
    %30 = vector.multi_reduction <maximumf>, %29, %cst_15 [0] : vector<256x256xf32> to vector<256xf32>
    %31 = vector.shape_cast %30 : vector<256xf32> to vector<1x256xf32>
    %32 = vector.broadcast %31 : vector<1x256xf32> to vector<256x256xf32>
    %33 = arith.subf %29, %32 : vector<256x256xf32>
    %34 = math.exp %33 : vector<256x256xf32>
    %cst_16 = arith.constant dense<0.000000e+00> : vector<256xf32>
    %35 = vector.multi_reduction <add>, %34, %cst_16 [0] : vector<256x256xf32> to vector<256xf32>
    %36 = vector.shape_cast %35 : vector<256xf32> to vector<1x256xf32>
    %cst_17 = arith.constant dense<0.000000e+00> : vector<8x256xf32>
    %37 = tpu.matmul %26, %34, %cst_17 {dimension_numbers = #tpu.dot_dimension_numbers<[1], [0], [0], [1], [0, 0, 1, 1], [], []>} : vector<8x256xf32>, vector<256x256xf32>, vector<8x256xf32> -> vector<8x256xf32>
    %38 = tpu.reciprocal %36 {approx = true} : vector<1x256xf32> -> vector<1x256xf32>
    %39 = vector.broadcast %38 : vector<1x256xf32> to vector<8x256xf32>
    %40 = arith.mulf %37, %39 : vector<8x256xf32>
    %c0_18 = arith.constant 0 : index
    %c8_19 = arith.constant 8 : index
    %c0_20 = arith.constant 0 : index
    %41 = vector.load %arg4[%c0_18, %c8_19, %c0_20] : memref<1x32x256xf32, #tpu.memory_space<vmem>>, vector<1x8x256xf32>
    %42 = vector.shape_cast %41 : vector<1x8x256xf32> to vector<8x256xf32>
    %43 = vector.shape_cast %40 : vector<8x256xf32> to vector<1x8x256xf32>
    tpu.vector_store %arg4[%c0_18, %c8_19, %c0_20], %43 {strides = array<i32>} : memref<1x32x256xf32, #tpu.memory_space<vmem>>, vector<1x8x256xf32>,
    %44 = vector.extract_strided_slice %3 {offsets = [48, 0], sizes = [16, 256], strides = [1, 1]} : vector<96x256xf32> to vector<16x256xf32>
    %45 = vector.extract_strided_slice %3 {offsets = [56, 0], sizes = [8, 256], strides = [1, 1]} : vector<96x256xf32> to vector<8x256xf32>
    %46 = vector.extract_strided_slice %3 {offsets = [64, 0], sizes = [8, 256], strides = [1, 1]} : vector<96x256xf32> to vector<8x256xf32>
    %c16 = arith.constant 16 : index
    %c0_21 = arith.constant 0 : index
    %47 = vector.load %arg3[%c16, %c0_21] : memref<32x256xf32, #tpu.memory_space<vmem>>, vector<8x256xf32>
    %48 = tpu.concatenate %45, %47 in 0 : vector<8x256xf32>, vector<8x256xf32> -> vector<16x256xf32>
    %cst_22 = arith.constant dense<0.000000e+00> : vector<256x256xf32>
    %49 = tpu.matmul %44, %48, %cst_22 {dimension_numbers = #tpu.dot_dimension_numbers<[0], [0], [1], [1], [0, 1, 1, 1], [], []>} : vector<16x256xf32>, vector<16x256xf32>, vector<256x256xf32> -> vector<256x256xf32>
    %cst_23 = arith.constant dense<0xFF800000> : vector<256xf32>
    %50 = vector.multi_reduction <maximumf>, %49, %cst_23 [0] : vector<256x256xf32> to vector<256xf32>
    %51 = vector.shape_cast %50 : vector<256xf32> to vector<1x256xf32>
    %52 = vector.broadcast %51 : vector<1x256xf32> to vector<256x256xf32>
    %53 = arith.subf %49, %52 : vector<256x256xf32>
    %54 = math.exp %53 : vector<256x256xf32>
    %cst_24 = arith.constant dense<0.000000e+00> : vector<256xf32>
    %55 = vector.multi_reduction <add>, %54, %cst_24 [0] : vector<256x256xf32> to vector<256xf32>
    %56 = vector.shape_cast %55 : vector<256xf32> to vector<1x256xf32>
    %cst_25 = arith.constant dense<0.000000e+00> : vector<8x256xf32>
    %57 = tpu.matmul %46, %54, %cst_25 {dimension_numbers = #tpu.dot_dimension_numbers<[1], [0], [0], [1], [0, 0, 1, 1], [], []>} : vector<8x256xf32>, vector<256x256xf32>, vector<8x256xf32> -> vector<8x256xf32>
    %58 = tpu.reciprocal %56 {approx = true} : vector<1x256xf32> -> vector<1x256xf32>
    %59 = vector.broadcast %58 : vector<1x256xf32> to vector<8x256xf32>
    %60 = arith.mulf %57, %59 : vector<8x256xf32>
    %c0_26 = arith.constant 0 : index
    %c16_27 = arith.constant 16 : index
    %c0_28 = arith.constant 0 : index
    %61 = vector.load %arg4[%c0_26, %c16_27, %c0_28] : memref<1x32x256xf32, #tpu.memory_space<vmem>>, vector<1x8x256xf32>
    %62 = vector.shape_cast %61 : vector<1x8x256xf32> to vector<8x256xf32>
    %63 = vector.shape_cast %60 : vector<8x256xf32> to vector<1x8x256xf32>
    tpu.vector_store %arg4[%c0_26, %c16_27, %c0_28], %63 {strides = array<i32>} : memref<1x32x256xf32, #tpu.memory_space<vmem>>, vector<1x8x256xf32>,
    %64 = vector.extract_strided_slice %3 {offsets = [72, 0], sizes = [16, 256], strides = [1, 1]} : vector<96x256xf32> to vector<16x256xf32>
    %65 = vector.extract_strided_slice %3 {offsets = [80, 0], sizes = [8, 256], strides = [1, 1]} : vector<96x256xf32> to vector<8x256xf32>
    %66 = vector.extract_strided_slice %3 {offsets = [88, 0], sizes = [8, 256], strides = [1, 1]} : vector<96x256xf32> to vector<8x256xf32>
    %c24 = arith.constant 24 : index
    %c0_29 = arith.constant 0 : index
    %67 = vector.load %arg3[%c24, %c0_29] : memref<32x256xf32, #tpu.memory_space<vmem>>, vector<8x256xf32>
    %68 = tpu.concatenate %65, %67 in 0 : vector<8x256xf32>, vector<8x256xf32> -> vector<16x256xf32>
    %cst_30 = arith.constant dense<0.000000e+00> : vector<256x256xf32>
    %69 = tpu.matmul %64, %68, %cst_30 {dimension_numbers = #tpu.dot_dimension_numbers<[0], [0], [1], [1], [0, 1, 1, 1], [], []>} : vector<16x256xf32>, vector<16x256xf32>, vector<256x256xf32> -> vector<256x256xf32>
    %cst_31 = arith.constant dense<0xFF800000> : vector<256xf32>
    %70 = vector.multi_reduction <maximumf>, %69, %cst_31 [0] : vector<256x256xf32> to vector<256xf32>
    %71 = vector.shape_cast %70 : vector<256xf32> to vector<1x256xf32>
    %72 = vector.broadcast %71 : vector<1x256xf32> to vector<256x256xf32>
    %73 = arith.subf %69, %72 : vector<256x256xf32>
    %74 = math.exp %73 : vector<256x256xf32>
    %cst_32 = arith.constant dense<0.000000e+00> : vector<256xf32>
    %75 = vector.multi_reduction <add>, %74, %cst_32 [0] : vector<256x256xf32> to vector<256xf32>
    %76 = vector.shape_cast %75 : vector<256xf32> to vector<1x256xf32>
    %cst_33 = arith.constant dense<0.000000e+00> : vector<8x256xf32>
    %77 = tpu.matmul %66, %74, %cst_33 {dimension_numbers = #tpu.dot_dimension_numbers<[1], [0], [0], [1], [0, 0, 1, 1], [], []>} : vector<8x256xf32>, vector<256x256xf32>, vector<8x256xf32> -> vector<8x256xf32>
    %78 = tpu.reciprocal %76 {approx = true} : vector<1x256xf32> -> vector<1x256xf32>
    %79 = vector.broadcast %78 : vector<1x256xf32> to vector<8x256xf32>
    %80 = arith.mulf %77, %79 : vector<8x256xf32>
    %c0_34 = arith.constant 0 : index
    %c24_35 = arith.constant 24 : index
    %c0_36 = arith.constant 0 : index
    %81 = vector.load %arg4[%c0_34, %c24_35, %c0_36] : memref<1x32x256xf32, #tpu.memory_space<vmem>>, vector<1x8x256xf32>
    %82 = vector.shape_cast %81 : vector<1x8x256xf32> to vector<8x256xf32>
    %83 = vector.shape_cast %80 : vector<8x256xf32> to vector<1x8x256xf32>
    tpu.vector_store %arg4[%c0_34, %c24_35, %c0_36], %83 {strides = array<i32>} : memref<1x32x256xf32, #tpu.memory_space<vmem>>, vector<1x8x256xf32>,
    return
  }
  func.func @transform_0(%arg0: i32) -> (i32, i32, i32) {
    %c0_i32 = arith.constant 0 : i32
    %c0_i32_0 = arith.constant 0 : i32
    %c0_i32_1 = arith.constant 0 : i32
    return %arg0, %c0_i32, %c0_i32_0 : i32, i32, i32
  }
  func.func @transform_1(%arg0: i32) -> (i32, i32) {
    %c0_i32 = arith.constant 0 : i32
    %c0_i32_0 = arith.constant 0 : i32
    %c0_i32_1 = arith.constant 0 : i32
    return %c0_i32, %c0_i32_0 : i32, i32
  }
  func.func @transform_2(%arg0: i32) -> (i32, i32) {
    %c0_i32 = arith.constant 0 : i32
    %c0_i32_0 = arith.constant 0 : i32
    %c0_i32_1 = arith.constant 0 : i32
    return %c0_i32, %c0_i32_0 : i32, i32
  }
  func.func @transform_3(%arg0: i32) -> (i32, i32, i32) {
    %c0_i32 = arith.constant 0 : i32
    %c0_i32_0 = arith.constant 0 : i32
    %c0_i32_1 = arith.constant 0 : i32
    return %arg0, %c0_i32, %c0_i32_0 : i32, i32, i32
  }
}

</mosaic_0001>

<llo_original>
// kernel: mhsa_forward.1
$region0: #{mhsa_forward.1}
  #allocation0 [shape = 'u32[]', space=smem, size = 0x4, offset = 0x4, fixed_abs, tag = 'smem constant byte address 0x4 - core index']
  #allocation1 [shape = 'u32[144,128]{1,0:T(1,128)}', space=vmem, size = 0x12000, scoped, tag = 'internal scratch']
  %s0 = inlined_call_operand.vmem [shape: f32[2,33,256], index: 0, kind: input, shape index: {}]
  %s1 = inlined_call_operand.vmem [shape: f32[96,33], index: 1, kind: input, shape index: {}]
  %s2 = inlined_call_operand.vmem [shape: f32[32,256], index: 2, kind: input, shape index: {}]
  %s3 = inlined_call_operand.vmem [shape: f32[2,32,256], index: 3, kind: output, shape index: {}]
  %s4 = sld [smem:[#allocation0]]
  $region45: #{mhsa_forward.1} parent=0
    _
  %s6 = ssub.s32 1, %s4
  %s7 = scalar_select 0, %s6, %s4
  loop: start=0, step=1, limit=4
  $region2: #{mhsa_forward.1} parent=0 // loop_pre_header
    _
  $region3: #{mhsa_forward.1} parent=0 // loop_header
    %s9 = sphi 0, %s13
    %p10 = scmp.ge.s32.totalorder %s9, 4
    %s19 = sphi 0, %s21
    %s22 = sphi 0, %s19
    %s23 = sphi 0, %s22
    %s39 = sphi 0, %s23
    %s43 = sphi 0, %s43
    %s45 = sphi 0, %s43
    %s46 = sphi 0, %s45
    %s60 = sphi 0, %s46
    %s64 = sphi 0, %s64
    %s66 = sphi 0, %s64
    %s67 = sphi 0, %s66
    %s81 = sphi 0, %s67
    %s87 = sphi 0, %s89
    %s90 = sphi 0, %s87
    %s91 = sphi 0, %s90
    %s107 = sphi 0, %s91
  $region4: #{mhsa_forward.1} parent=0 // loop_header_branch
    %12 = sbr.rel (%p10) target = $region8
  $region5: #{mhsa_forward.1} parent=0 // loop_body
    %s14 = ssub.s32 %s9, 1
    %s15 = ssub.s32 %s9, 2
    %s16 = sadd.s32 %s9, 1
    %s17 = ssub.s32 %s9, %s16
    %p18 = scmp.eq.s32.totalorder %s17, 0
    %s20 = sadd.s32 %s19, 1
    %s21 = scalar_select %p18, %s19, %s20
    %p24 = pneg %p18
    %p25 = scmp.eq.s32.totalorder %s9, 1
    %p26 = por %p24, %p25
    %p27 = scmp.ne.s32.totalorder %s19, %s22
    %p28 = scmp.eq.s32.totalorder %s9, 0
    %p29 = por %p27, %p28
    %p30 = scmp.ne.s32.totalorder %s19, %s22
    %p31 = scmp.eq.s32.totalorder %s14, 1
    %p32 = por %p30, %p31
    %p33 = scmp.ne.s32.totalorder %s22, %s23
    %p34 = scmp.eq.s32.totalorder %s14, 0
    %p35 = por %p33, %p34
    %p36 = scmp.ne.s32.totalorder %s22, %s23
    %p37 = scmp.eq.s32.totalorder %s15, 1
    %p38 = por %p36, %p37
    %p40 = scmp.ne.s32.totalorder %s23, %s39
    %p41 = scmp.eq.s32.totalorder %s15, 0
    %p42 = por %p40, %p41
    %s44 = sadd.s32 %s43, 1
    %p47 = scmp.eq.s32.totalorder %s9, 1
    %p48 = scmp.ne.s32.totalorder %s43, %s45
    %p49 = scmp.eq.s32.totalorder %s9, 0
    %p50 = por %p48, %p49
    %p51 = scmp.ne.s32.totalorder %s43, %s45
    %p52 = scmp.eq.s32.totalorder %s14, 1
    %p53 = por %p51, %p52
    %p54 = scmp.ne.s32.totalorder %s45, %s46
    %p55 = scmp.eq.s32.totalorder %s14, 0
    %p56 = por %p54, %p55
    %p57 = scmp.ne.s32.totalorder %s45, %s46
    %p58 = scmp.eq.s32.totalorder %s15, 1
    %p59 = por %p57, %p58
    %p61 = scmp.ne.s32.totalorder %s46, %s60
    %p62 = scmp.eq.s32.totalorder %s15, 0
    %p63 = por %p61, %p62
    %s65 = sadd.s32 %s64, 1
    %p68 = scmp.eq.s32.totalorder %s9, 1
    %p69 = scmp.ne.s32.totalorder %s64, %s66
    %p70 = scmp.eq.s32.totalorder %s9, 0
    %p71 = por %p69, %p70
    %p72 = scmp.ne.s32.totalorder %s64, %s66
    %p73 = scmp.eq.s32.totalorder %s14, 1
    %p74 = por %p72, %p73
    %p75 = scmp.ne.s32.totalorder %s66, %s67
    %p76 = scmp.eq.s32.totalorder %s14, 0
    %p77 = por %p75, %p76
    %p78 = scmp.ne.s32.totalorder %s66, %s67
    %p79 = scmp.eq.s32.totalorder %s15, 1
    %p80 = por %p78, %p79
    %p82 = scmp.ne.s32.totalorder %s67, %s81
    %p83 = scmp.eq.s32.totalorder %s15, 0
    %p84 = por %p82, %p83
    %s85 = ssub.s32 %s9, %s16
    %p86 = scmp.eq.s32.totalorder %s85, 0
    %s88 = sadd.s32 %s87, 1
    %s89 = scalar_select %p86, %s87, %s88
    %p92 = pneg %p86
    %p93 = scmp.eq.s32.totalorder %s9, 1
    %p94 = por %p92, %p93
    %p95 = scmp.ne.s32.totalorder %s87, %s90
    %p96 = scmp.eq.s32.totalorder %s9, 0
    %p97 = por %p95, %p96
    %p98 = scmp.ne.s32.totalorder %s87, %s90
    %p99 = scmp.eq.s32.totalorder %s14, 1
    %p100 = por %p98, %p99
    %p101 = scmp.ne.s32.totalorder %s90, %s91
    %p102 = scmp.eq.s32.totalorder %s14, 0
    %p103 = por %p101, %p102
    %p104 = scmp.ne.s32.totalorder %s90, %s91
    %p105 = scmp.eq.s32.totalorder %s15, 1
    %p106 = por %p104, %p105
    %p108 = scmp.ne.s32.totalorder %s91, %s107
    %p109 = scmp.eq.s32.totalorder %s15, 0
    %p110 = por %p108, %p109
    %p111 = scmp.le.s32.totalorder 1, %s9
    %p112 = scmp.lt.s32.totalorder %s9, 3
    %p113 = pnand %p111, %p112
    %p114 = pneg %p113
    // Predicated region
    $region9: #{mhsa_forward.1} parent=5 // pred_check
      _
    $region10: #{mhsa_forward.1} parent=5 // pred_check_branch
      %116 = sbr.rel (%p113) target = $region12
    $region11: #{mhsa_forward.1} parent=5 // pred_region
      %s117 = ssub.s32 %s9, 1
      // Predicated region
      $region13: #{mhsa_forward.1} parent=11 // pred_check
        %p118 = pneg %p56
      $region14: #{mhsa_forward.1} parent=11 // pred_check_branch
        %120 = sbr.rel (%p118) target = $region16
      $region15: #{mhsa_forward.1} parent=11 // pred_region
        _
      $region16: #{mhsa_forward.1} parent=11 // pred_fallthru
        _
      // Predicated region
      $region17: #{mhsa_forward.1} parent=11 // pred_check
        %p121 = pneg %p77
      $region18: #{mhsa_forward.1} parent=11 // pred_check_branch
        %123 = sbr.rel (%p121) target = $region20
      $region19: #{mhsa_forward.1} parent=11 // pred_region
        _
      $region20: #{mhsa_forward.1} parent=11 // pred_fallthru
        _
    $region12: #{mhsa_forward.1} parent=5 // pred_fallthru
      _
    %p124 = scmp.lt.s32.totalorder %s9, 2
    // Predicated region
    $region21: #{mhsa_forward.1} parent=5 // pred_check
      %p125 = pneg %p124
    $region22: #{mhsa_forward.1} parent=5 // pred_check_branch
      %127 = sbr.rel (%p125) target = $region24
    $region23: #{mhsa_forward.1} parent=5 // pred_region
      // Predicated region
      $region25: #{mhsa_forward.1} parent=23 // pred_check
        %p128 = pneg %p29
      $region26: #{mhsa_forward.1} parent=23 // pred_check_branch
        %130 = sbr.rel (%p128) target = $region28
      $region27: #{mhsa_forward.1} parent=23 // pred_region
        %p131 = scmp.lt.s32.totalorder %s9, 1
        %s132 = scalar_select %p131, %s9, 1
        %s133 = smul.addr %s132, 10
        %s134 = smul.addr %s133, 8
        %s135 = scalar_lea.vmem %s0, %s134
      $region28: #{mhsa_forward.1} parent=23 // pred_fallthru
        _
    $region24: #{mhsa_forward.1} parent=5 // pred_fallthru
      _
    %p136 = scmp.le.s32.totalorder 1, %s9
    %p137 = scmp.lt.s32.totalorder %s9, 3
    %p138 = pnand %p136, %p137
    %p139 = pneg %p138
    // Predicated region
    $region29: #{mhsa_forward.1} parent=5 // pred_check
      _
    $region30: #{mhsa_forward.1} parent=5 // pred_check_branch
      %141 = sbr.rel (%p138) target = $region32
    $region31: #{mhsa_forward.1} parent=5 // pred_region
      %s142 = ssub.s32 %s9, 1
      %p143 = scmp.lt.s32.totalorder %s14, 1
      %s144 = scalar_select %p143, %s14, 1
      %s145 = smul.addr %s144, 10
      %s146 = smul.addr %s145, 8
      %s147 = scalar_lea.vmem %s0, %s146
      %p148 = pneg %p35
      %p149 = pneg %p32
      %p150 = pneg %p56
      %p151 = pneg %p53
      %p152 = pneg %p77
      %p153 = pneg %p74
      %p154 = pneg %p103
      %p155 = pneg %p100
      %p156 = scmp.lt.s32.totalorder %s14, 1
      %s157 = scalar_select %p156, %s14, 1
      %s158 = smul.addr %s157, 8
      %s159 = smul.addr %s158, 8
      %s160 = scalar_lea.vmem %s3, %s159
      %p161 = scmp.lt.s32.totalorder %s14, 1
      %s162 = scalar_select %p161, %s14, 1
      %s163 = smul.addr %s162, 10
      %s164 = smul.addr %s163, 8
      %s165 = scalar_lea.vmem %s0, %s164
      %p166 = scmp.lt.s32.totalorder %s14, 1
      %s167 = scalar_select %p166, %s14, 1
      %s168 = smul.addr %s167, 8
      %s169 = smul.addr %s168, 8
      %s170 = scalar_lea.vmem %s3, %s169
      %v171 = vld [vmem:[%s165] sm:$0xff]
      %v172 = vld [vmem:[%s165 + $0x8] sm:$0xff]
      %v173 = vld [vmem:[%s165 + $0x10] sm:$0xff]
      %v174 = vld [vmem:[%s165 + $0x18] sm:$0xff]
      %v175 = vld [vmem:[%s165 + $0x20] sm:$0xff]
      %v176 = vld [vmem:[%s165 + $0x28] sm:$0xff]
      %v177 = vld [vmem:[%s165 + $0x30] sm:$0xff]
      %v178 = vld [vmem:[%s165 + $0x38] sm:$0xff]
      %v179 = vld [vmem:[%s165 + $0x40] sm:$0x1]
      %v180 = vld [vmem:[%s165 + $0x48] sm:$0x1]
      %v181 = vld [vmem:[%s1] sm:$0xff]
      %v182 = vld [vmem:[%s1 + $0x8] sm:$0xff]
      %v183 = vld [vmem:[%s1 + $0x10] sm:$0xff]
      %v184 = vld [vmem:[%s1 + $0x18] sm:$0xff]
      %v185 = vld [vmem:[%s1 + $0x20] sm:$0xff]
      %v186 = vld [vmem:[%s1 + $0x28] sm:$0xff]
      %v187 = vld [vmem:[%s1 + $0x30] sm:$0xff]
      %v188 = vld [vmem:[%s1 + $0x38] sm:$0xff]
      %v189 = vld [vmem:[%s1 + $0x40] sm:$0xff]
      %v190 = vld [vmem:[%s1 + $0x48] sm:$0xff]
      %v191 = vld [vmem:[%s1 + $0x50] sm:$0xff]
      %v192 = vld [vmem:[%s1 + $0x58] sm:$0xff]
      %vm193 = vcmask 269312
      %v195 = vsel %vm193, %v181, 0
      %v198 = vsel %vm193, %v182, 0
      %v201 = vsel %vm193, %v183, 0
      %v204 = vsel %vm193, %v184, 0
      %v207 = vsel %vm193, %v185, 0
      %v210 = vsel %vm193, %v186, 0
      %v213 = vsel %vm193, %v187, 0
      %v216 = vsel %vm193, %v188, 0
      %v219 = vsel %vm193, %v189, 0
      %v222 = vsel %vm193, %v190, 0
      %v225 = vsel %vm193, %v191, 0
      %v228 = vsel %vm193, %v192, 0
      %vm230 = vcmask 1040384
      %v232 = vsel %vm230, %v179, 0
      %v235 = vsel %vm230, %v180, 0
      %237 = vmatprep.subr.mxu0 %v172
      %238 = vmatpush1.msra.mxu0 %v171
      %239 = vmatprep.subr.mxu0 %v174
      %240 = vmatpush1.msra.mxu0 %v173
      %241 = vmatprep.subr.mxu0 %v176
      %242 = vmatpush1.msra.mxu0 %v175
      %243 = vmatprep.subr.mxu0 %v178
      %244 = vmatpush1.msra.mxu0 %v177
      %245 = vmatprep.subr.mxu0 %v235
      %246 = vmatpush1.msra.mxu0 %v232
      %247 = vmatprep.subr.mxu0 0.0
      %248 = vmatpush1.msra.mxu0 0.0
      %249 = vmatprep.subr.mxu0 0.0
      %250 = vmatpush1.msra.mxu0 0.0
      %251 = vmatprep.subr.mxu0 0.0
      %252 = vmatpush1.msra.mxu0 0.0
      %253 = vmatprep.subr.mxu0 0.0
      %254 = vmatpush1.msra.mxu0 0.0
      %255 = vmatprep.subr.mxu0 0.0
      %256 = vmatpush1.msra.mxu0 0.0
      %257 = vmatprep.subr.mxu0 0.0
      %258 = vmatpush1.msra.mxu0 0.0
      %259 = vmatprep.subr.mxu0 0.0
      %260 = vmatpush1.msra.mxu0 0.0
      %261 = vmatprep.subr.mxu0 0.0
      %262 = vmatpush1.msra.mxu0 0.0
      %263 = vmatprep.subr.mxu0 0.0
      %264 = vmatpush1.msra.mxu0 0.0
      %265 = vmatprep.subr.mxu0 0.0
      %266 = vmatpush1.msra.mxu0 0.0
      %267 = vmatprep.subr.mxu0 0.0
      %268 = vmatpush1.msra.mxu0 0.0
      %269 = vmatprep.subr.mxu0 0.0
      %270 = vmatpush1.msra.mxu0 0.0
      %271 = vmatprep.subr.mxu0 0.0
      %272 = vmatpush1.msra.mxu0 0.0
      %273 = vmatprep.subr.mxu0 0.0
      %274 = vmatpush1.msra.mxu0 0.0
      %275 = vmatprep.subr.mxu0 0.0
      %276 = vmatpush1.msra.mxu0 0.0
      %277 = vmatprep.subr.mxu0 0.0
      %278 = vmatpush1.msra.mxu0 0.0
      %279 = vmatprep.subr.mxu0 0.0
      %280 = vmatpush1.msra.mxu0 0.0
      %281 = vmatprep.subr.mxu0 0.0
      %282 = vmatpush1.msra.mxu0 0.0
      %283 = vmatprep.subr.mxu0 0.0
      %284 = vmatpush1.msra.mxu0 0.0
      %285 = vmatprep.subr.mxu0 0.0
      %286 = vmatpush1.msra.mxu0 0.0
      %287 = vmatprep.subr.mxu0 0.0
      %288 = vmatpush1.msra.mxu0 0.0
      %289 = vmatprep.subr.mxu0 0.0
      %290 = vmatpush1.msra.mxu0 0.0
      %291 = vmatprep.subr.mxu0 0.0
      %292 = vmatpush1.msra.mxu0 0.0
      %293 = vmatprep.subr.mxu0 0.0
      %294 = vmatpush1.msra.mxu0 0.0
      %295 = vmatprep.subr.mxu0 0.0
      %296 = vmatpush1.msra.mxu0 0.0
      %297 = vmatprep.subr.mxu0 0.0
      %298 = vmatpush1.msra.mxu0 0.0
      %299 = vmatprep.subr.mxu0 0.0
      %300 = vmatpush1.msra.mxu0 0.0
      %301 = vmatprep.mubr.f32.mxu0 0.0
      %302 = vmatmul.mubr.f32.gmra.mrb[0].mxu0 %v195
      %v303 = vpop.f32.mrb[0].mxu0
      %v304 = vadd.f32 0.0, %v303
      %v305 = vpop.f32.mrb[0].mxu0
      %v306 = vadd.f32 0.0, %v305
      %307 = vmatprep.mubr.f32.mxu0 0.0
      %308 = vmatmul.mubr.f32.gmra.mrb[0].mxu0 %v198
      %v309 = vpop.f32.mrb[0].mxu0
      %v310 = vadd.f32 0.0, %v309
      %v311 = vpop.f32.mrb[0].mxu0
      %v312 = vadd.f32 0.0, %v311
      %313 = vmatprep.mubr.f32.mxu0 0.0
      %314 = vmatmul.mubr.f32.gmra.mrb[0].mxu0 %v201
      %v315 = vpop.f32.mrb[0].mxu0
      %v316 = vadd.f32 0.0, %v315
      %v317 = vpop.f32.mrb[0].mxu0
      %v318 = vadd.f32 0.0, %v317
      %319 = vmatprep.mubr.f32.mxu0 0.0
      %320 = vmatmul.mubr.f32.gmra.mrb[0].mxu0 %v204
      %v321 = vpop.f32.mrb[0].mxu0
      %v322 = vadd.f32 0.0, %v321
      %v323 = vpop.f32.mrb[0].mxu0
      %v324 = vadd.f32 0.0, %v323
      %325 = vmatprep.mubr.f32.mxu0 0.0
      %326 = vmatmul.mubr.f32.gmra.mrb[0].mxu0 %v207
      %v327 = vpop.f32.mrb[0].mxu0
      %v328 = vadd.f32 0.0, %v327
      %v329 = vpop.f32.mrb[0].mxu0
      %v330 = vadd.f32 0.0, %v329
      %331 = vmatprep.mubr.f32.mxu0 0.0
      %332 = vmatmul.mubr.f32.gmra.mrb[0].mxu0 %v210
      %v333 = vpop.f32.mrb[0].mxu0
      %v334 = vadd.f32 0.0, %v333
      %v335 = vpop.f32.mrb[0].mxu0
      %v336 = vadd.f32 0.0, %v335
      %337 = vmatprep.mubr.f32.mxu0 0.0
      %338 = vmatmul.mubr.f32.gmra.mrb[0].mxu0 %v213
      %v339 = vpop.f32.mrb[0].mxu0
      %v340 = vadd.f32 0.0, %v339
      %v341 = vpop.f32.mrb[0].mxu0
      %v342 = vadd.f32 0.0, %v341
      %343 = vmatprep.mubr.f32.mxu0 0.0
      %344 = vmatmul.mubr.f32.gmra.mrb[0].mxu0 %v216
      %v345 = vpop.f32.mrb[0].mxu0
      %v346 = vadd.f32 0.0, %v345
      %v347 = vpop.f32.mrb[0].mxu0
      %v348 = vadd.f32 0.0, %v347
      %349 = vmatprep.mubr.f32.mxu0 0.0
      %350 = vmatmul.mubr.f32.gmra.mrb[0].mxu0 %v219
      %v351 = vpop.f32.mrb[0].mxu0
      %v352 = vadd.f32 0.0, %v351
      %v353 = vpop.f32.mrb[0].mxu0
      %v354 = vadd.f32 0.0, %v353
      %355 = vmatprep.mubr.f32.mxu0 0.0
      %356 = vmatmul.mubr.f32.gmra.mrb[0].mxu0 %v222
      %v357 = vpop.f32.mrb[0].mxu0
      %v358 = vadd.f32 0.0, %v357
      %v359 = vpop.f32.mrb[0].mxu0
      %v360 = vadd.f32 0.0, %v359
      %361 = vmatprep.mubr.f32.mxu0 0.0
      %362 = vmatmul.mubr.f32.gmra.mrb[0].mxu0 %v225
      %v363 = vpop.f32.mrb[0].mxu0
      %v364 = vadd.f32 0.0, %v363
      %v365 = vpop.f32.mrb[0].mxu0
      %v366 = vadd.f32 0.0, %v365
      %367 = vmatprep.mubr.f32.mxu0 0.0
      %368 = vmatmul.mubr.f32.gmra.mrb[0].mxu0 %v228
      %v369 = vpop.f32.mrb[0].mxu0
      %v370 = vadd.f32 0.0, %v369
      %v371 = vpop.f32.mrb[0].mxu0
      %v372 = vadd.f32 0.0, %v371
      %373 = vdwg.mxu0
      %v374 = vld [vmem:[%s2] sm:$0xff]
      %v375 = vld [vmem:[%s2 + $0x8] sm:$0xff]
      %376 = vxpose.xlu0.b32.start [1/16] %v304, 128
      %377 = vxpose.xlu0.b32.cont [2/16] %v310, 128
      %378 = vxpose.xlu0.b32.cont [3/16] 0.0, 128
      %379 = vxpose.xlu0.b32.cont [4/16] 0.0, 128
      %380 = vxpose.xlu0.b32.cont [5/16] 0.0, 128
      %381 = vxpose.xlu0.b32.cont [6/16] 0.0, 128
      %382 = vxpose.xlu0.b32.cont [7/16] 0.0, 128
      %383 = vxpose.xlu0.b32.cont [8/16] 0.0, 128
      %384 = vxpose.xlu0.b32.cont [9/16] 0.0, 128
      %385 = vxpose.xlu0.b32.cont [10/16] 0.0, 128
      %386 = vxpose.xlu0.b32.cont [11/16] 0.0, 128
      %387 = vxpose.xlu0.b32.cont [12/16] 0.0, 128
      %388 = vxpose.xlu0.b32.cont [13/16] 0.0, 128
      %389 = vxpose.xlu0.b32.cont [14/16] 0.0, 128
      %390 = vxpose.xlu0.b32.cont [15/16] 0.0, 128
      %391 = vxpose.xlu0.b32.end [16/16] 0.0, 128
      %v392 = vpop.trf.xlu0
      %v393 = vpop.trf.xlu0
      %v394 = vpop.trf.xlu0
      %v395 = vpop.trf.xlu0
      %v396 = vpop.trf.xlu0
      %v397 = vpop.trf.xlu0
      %v398 = vpop.trf.xlu0
      %v399 = vpop.trf.xlu0
      %v400 = vpop.trf.xlu0
      %v401 = vpop.trf.xlu0
      %v402 = vpop.trf.xlu0
      %v403 = vpop.trf.xlu0
      %v404 = vpop.trf.xlu0
      %v405 = vpop.trf.xlu0
      %v406 = vpop.trf.xlu0
      %v407 = vpop.trf.xlu0
      %408 = vxpose.xlu0.b32.start [1/16] %v306, 128
      %409 = vxpose.xlu0.b32.cont [2/16] %v312, 128
      %410 = vxpose.xlu0.b32.cont [3/16] 0.0, 128
      %411 = vxpose.xlu0.b32.cont [4/16] 0.0, 128
      %412 = vxpose.xlu0.b32.cont [5/16] 0.0, 128
      %413 = vxpose.xlu0.b32.cont [6/16] 0.0, 128
      %414 = vxpose.xlu0.b32.cont [7/16] 0.0, 128
      %415 = vxpose.xlu0.b32.cont [8/16] 0.0, 128
      %416 = vxpose.xlu0.b32.cont [9/16] 0.0, 128
      %417 = vxpose.xlu0.b32.cont [10/16] 0.0, 128
      %418 = vxpose.xlu0.b32.cont [11/16] 0.0, 128
      %419 = vxpose.xlu0.b32.cont [12/16] 0.0, 128
      %420 = vxpose.xlu0.b32.cont [13/16] 0.0, 128
      %421 = vxpose.xlu0.b32.cont [14/16] 0.0, 128
      %422 = vxpose.xlu0.b32.cont [15/16] 0.0, 128
      %423 = vxpose.xlu0.b32.end [16/16] 0.0, 128
      %v424 = vpop.trf.xlu0
      %v425 = vpop.trf.xlu0
      %v426 = vpop.trf.xlu0
      %v427 = vpop.trf.xlu0
      %v428 = vpop.trf.xlu0
      %v429 = vpop.trf.xlu0
      %v430 = vpop.trf.xlu0
      %v431 = vpop.trf.xlu0
      %v432 = vpop.trf.xlu0
      %v433 = vpop.trf.xlu0
      %v434 = vpop.trf.xlu0
      %v435 = vpop.trf.xlu0
      %v436 = vpop.trf.xlu0
      %v437 = vpop.trf.xlu0
      %v438 = vpop.trf.xlu0
      %v439 = vpop.trf.xlu0
      %vm440 = vcmask 130048
      %v442 = vsel %vm440, %v392, 0
      %v445 = vsel %vm440, %v393, 0
      %v448 = vsel %vm440, %v394, 0
      %v451 = vsel %vm440, %v395, 0
      %v454 = vsel %vm440, %v396, 0
      %v457 = vsel %vm440, %v397, 0
      %v460 = vsel %vm440, %v398, 0
      %v463 = vsel %vm440, %v399, 0
      %v466 = vsel %vm440, %v400, 0
      %v469 = vsel %vm440, %v401, 0
      %v472 = vsel %vm440, %v402, 0
      %v475 = vsel %vm440, %v403, 0
      %v478 = vsel %vm440, %v404, 0
      %v481 = vsel %vm440, %v405, 0
      %v484 = vsel %vm440, %v406, 0
      %v487 = vsel %vm440, %v407, 0
      %v490 = vsel %vm440, %v424, 0
      %v493 = vsel %vm440, %v425, 0
      %v496 = vsel %vm440, %v426, 0
      %v499 = vsel %vm440, %v427, 0
      %v502 = vsel %vm440, %v428, 0
      %v505 = vsel %vm440, %v429, 0
      %v508 = vsel %vm440, %v430, 0
      %v511 = vsel %vm440, %v431, 0
      %v514 = vsel %vm440, %v432, 0
      %v517 = vsel %vm440, %v433, 0
      %v520 = vsel %vm440, %v434, 0
      %v523 = vsel %vm440, %v435, 0
      %v526 = vsel %vm440, %v436, 0
      %v529 = vsel %vm440, %v437, 0
      %v532 = vsel %vm440, %v438, 0
      %v535 = vsel %vm440, %v439, 0
      %537 = vmatprep.subr.mxu0 %v312
      %538 = vmatpush1.msra.mxu0 %v310
      %539 = vmatprep.subr.mxu0 %v375
      %540 = vmatpush1.msra.mxu0 %v374
      %541 = vmatprep.subr.mxu0 0.0
      %542 = vmatpush1.msra.mxu0 0.0
      %543 = vmatprep.subr.mxu0 0.0
      %544 = vmatpush1.msra.mxu0 0.0
      %545 = vmatprep.subr.mxu0 0.0
      %546 = vmatpush1.msra.mxu0 0.0
      %547 = vmatprep.subr.mxu0 0.0
      %548 = vmatpush1.msra.mxu0 0.0
      %549 = vmatprep.subr.mxu0 0.0
      %550 = vmatpush1.msra.mxu0 0.0
      %551 = vmatprep.subr.mxu0 0.0
      %552 = vmatpush1.msra.mxu0 0.0
      %553 = vmatprep.subr.mxu0 0.0
      %554 = vmatpush1.msra.mxu0 0.0
      %555 = vmatprep.subr.mxu0 0.0
      %556 = vmatpush1.msra.mxu0 0.0
      %557 = vmatprep.subr.mxu0 0.0
      %558 = vmatpush1.msra.mxu0 0.0
      %559 = vmatprep.subr.mxu0 0.0
      %560 = vmatpush1.msra.mxu0 0.0
      %561 = vmatprep.subr.mxu0 0.0
      %562 = vmatpush1.msra.mxu0 0.0
      %563 = vmatprep.subr.mxu0 0.0
      %564 = vmatpush1.msra.mxu0 0.0
      %565 = vmatprep.subr.mxu0 0.0
      %566 = vmatpush1.msra.mxu0 0.0
      %567 = vmatprep.subr.mxu0 0.0
      %568 = vmatpush1.msra.mxu0 0.0
      %569 = vmatprep.subr.mxu0 0.0
      %570 = vmatpush1.msra.mxu0 0.0
      %571 = vmatprep.subr.mxu0 0.0
      %572 = vmatpush1.msra.mxu0 0.0
      %573 = vmatprep.subr.mxu0 0.0
      %574 = vmatpush1.msra.mxu0 0.0
      %575 = vmatprep.subr.mxu0 0.0
      %576 = vmatpush1.msra.mxu0 0.0
      %577 = vmatprep.subr.mxu0 0.0
      %578 = vmatpush1.msra.mxu0 0.0
      %579 = vmatprep.subr.mxu0 0.0
      %580 = vmatpush1.msra.mxu0 0.0
      %581 = vmatprep.subr.mxu0 0.0
      %582 = vmatpush1.msra.mxu0 0.0
      %583 = vmatprep.subr.mxu0 0.0
      %584 = vmatpush1.msra.mxu0 0.0
      %585 = vmatprep.subr.mxu0 0.0
      %586 = vmatpush1.msra.mxu0 0.0
      %587 = vmatprep.subr.mxu0 0.0
      %588 = vmatpush1.msra.mxu0 0.0
      %589 = vmatprep.subr.mxu0 0.0
      %590 = vmatpush1.msra.mxu0 0.0
      %591 = vmatprep.subr.mxu0 0.0
      %592 = vmatpush1.msra.mxu0 0.0
      %593 = vmatprep.subr.mxu0 0.0
      %594 = vmatpush1.msra.mxu0 0.0
      %595 = vmatprep.subr.mxu0 0.0
      %596 = vmatpush1.msra.mxu0 0.0
      %597 = vmatprep.subr.mxu0 0.0
      %598 = vmatpush1.msra.mxu0 0.0
      %599 = vmatprep.subr.mxu0 0.0
      %600 = vmatpush1.msra.mxu0 0.0
      %601 = vmatprep.mubr.f32.mxu0 0.0
      %602 = vmatmul.mubr.f32.gmra.mrb[0].mxu0 %v442
      %v603 = vpop.f32.mrb[0].mxu0
      %v604 = vadd.f32 0.0, %v603
      %v605 = vpop.f32.mrb[0].mxu0
      %v606 = vadd.f32 0.0, %v605
      %607 = vmatprep.mubr.f32.mxu0 0.0
      %608 = vmatmul.mubr.f32.gmra.mrb[0].mxu0 %v445
      %v609 = vpop.f32.mrb[0].mxu0
      %v610 = vadd.f32 0.0, %v609
      %v611 = vpop.f32.mrb[0].mxu0
      %v612 = vadd.f32 0.0, %v611
      %613 = vmatprep.mubr.f32.mxu0 0.0
      %614 = vmatmul.mubr.f32.gmra.mrb[0].mxu0 %v448
      %v615 = vpop.f32.mrb[0].mxu0
      %v616 = vadd.f32 0.0, %v615
      %v617 = vpop.f32.mrb[0].mxu0
      %v618 = vadd.f32 0.0, %v617
      %619 = vmatprep.mubr.f32.mxu0 0.0
      %620 = vmatmul.mubr.f32.gmra.mrb[0].mxu0 %v451
      %v621 = vpop.f32.mrb[0].mxu0
      %v622 = vadd.f32 0.0, %v621
      %v623 = vpop.f32.mrb[0].mxu0
      %v624 = vadd.f32 0.0, %v623
      %625 = vmatprep.mubr.f32.mxu0 0.0
      %626 = vmatmul.mubr.f32.gmra.mrb[0].mxu0 %v454
      %v627 = vpop.f32.mrb[0].mxu0
      %v628 = vadd.f32 0.0, %v627
      %v629 = vpop.f32.mrb[0].mxu0
      %v630 = vadd.f32 0.0, %v629
      %631 = vmatprep.mubr.f32.mxu0 0.0
      %632 = vmatmul.mubr.f32.gmra.mrb[0].mxu0 %v457
      %v633 = vpop.f32.mrb[0].mxu0
      %v634 = vadd.f32 0.0, %v633
      %v635 = vpop.f32.mrb[0].mxu0
      %v636 = vadd.f32 0.0, %v635
      %637 = vmatprep.mubr.f32.mxu0 0.0
      %638 = vmatmul.mubr.f32.gmra.mrb[0].mxu0 %v460
      %v639 = vpop.f32.mrb[0].mxu0
      %v640 = vadd.f32 0.0, %v639
      %v641 = vpop.f32.mrb[0].mxu0
      %v642 = vadd.f32 0.0, %v641
      %643 = vmatprep.mubr.f32.mxu0 0.0
      %644 = vmatmul.mubr.f32.gmra.mrb[0].mxu0 %v463
      %v645 = vpop.f32.mrb[0].mxu0
      %v646 = vadd.f32 0.0, %v645
      %v647 = vpop.f32.mrb[0].mxu0
      %v648 = vadd.f32 0.0, %v647
      %649 = vmatprep.mubr.f32.mxu0 0.0
      %650 = vmatmul.mubr.f32.gmra.mrb[0].mxu0 %v466
      %v651 = vpop.f32.mrb[0].mxu0
      %v652 = vadd.f32 0.0, %v651
      %v653 = vpop.f32.mrb[0].mxu0
      %v654 = vadd.f32 0.0, %v653
      %655 = vmatprep.mubr.f32.mxu0 0.0
      %656 = vmatmul.mubr.f32.gmra.mrb[0].mxu0 %v469
      %v657 = vpop.f32.mrb[0].mxu0
      %v658 = vadd.f32 0.0, %v657
      %v659 = vpop.f32.mrb[0].mxu0
      %v660 = vadd.f32 0.0, %v659
      %661 = vmatprep.mubr.f32.mxu0 0.0
      %662 = vmatmul.mubr.f32.gmra.mrb[0].mxu0 %v472
      %v663 = vpop.f32.mrb[0].mxu0
      %v664 = vadd.f32 0.0, %v663
      %v665 = vpop.f32.mrb[0].mxu0
      %v666 = vadd.f32 0.0, %v665
      %667 = vmatprep.mubr.f32.mxu0 0.0
      %668 = vmatmul.mubr.f32.gmra.mrb[0].mxu0 %v475
      %v669 = vpop.f32.mrb[0].mxu0
      %v670 = vadd.f32 0.0, %v669
      %v671 = vpop.f32.mrb[0].mxu0
      %v672 = vadd.f32 0.0, %v671
      %673 = vmatprep.mubr.f32.mxu0 0.0
      %674 = vmatmul.mubr.f32.gmra.mrb[0].mxu0 %v478
      %v675 = vpop.f32.mrb[0].mxu0
      %v676 = vadd.f32 0.0, %v675
      %v677 = vpop.f32.mrb[0].mxu0
      %v678 = vadd.f32 0.0, %v677
      %679 = vmatprep.mubr.f32.mxu0 0.0
      %680 = vmatmul.mubr.f32.gmra.mrb[0].mxu0 %v481
      %v681 = vpop.f32.mrb[0].mxu0
      %v682 = vadd.f32 0.0, %v681
      %v683 = vpop.f32.mrb[0].mxu0
      %v684 = vadd.f32 0.0, %v683
      %685 = vmatprep.mubr.f32.mxu0 0.0
      %686 = vmatmul.mubr.f32.gmra.mrb[0].mxu0 %v484
      %v687 = vpop.f32.mrb[0].mxu0
      %v688 = vadd.f32 0.0, %v687
      %v689 = vpop.f32.mrb[0].mxu0
      %v690 = vadd.f32 0.0, %v689
      %691 = vmatprep.mubr.f32.mxu0 0.0
      %692 = vmatmul.mubr.f32.gmra.mrb[0].mxu0 %v487
      %v693 = vpop.f32.mrb[0].mxu0
      %v694 = vadd.f32 0.0, %v693
      %v695 = vpop.f32.mrb[0].mxu0
      %v696 = vadd.f32 0.0, %v695
      %697 = vmatprep.mubr.f32.mxu0 0.0
      %698 = vmatmul.mubr.f32.gmra.mrb[0].mxu0 %v490
      %v699 = vpop.f32.mrb[0].mxu0
      %v700 = vadd.f32 0.0, %v699
      %v701 = vpop.f32.mrb[0].mxu0
      %v702 = vadd.f32 0.0, %v701
      %703 = vmatprep.mubr.f32.mxu0 0.0
      %704 = vmatmul.mubr.f32.gmra.mrb[0].mxu0 %v493
      %v705 = vpop.f32.mrb[0].mxu0
      %v706 = vadd.f32 0.0, %v705
      %v707 = vpop.f32.mrb[0].mxu0
      %v708 = vadd.f32 0.0, %v707
      %709 = vmatprep.mubr.f32.mxu0 0.0
      %710 = vmatmul.mubr.f32.gmra.mrb[0].mxu0 %v496
      %v711 = vpop.f32.mrb[0].mxu0
      %v712 = vadd.f32 0.0, %v711
      %v713 = vpop.f32.mrb[0].mxu0
      %v714 = vadd.f32 0.0, %v713
      %715 = vmatprep.mubr.f32.mxu0 0.0
      %716 = vmatmul.mubr.f32.gmra.mrb[0].mxu0 %v499
      %v717 = vpop.f32.mrb[0].mxu0
      %v718 = vadd.f32 0.0, %v717
      %v719 = vpop.f32.mrb[0].mxu0
      %v720 = vadd.f32 0.0, %v719
      %721 = vmatprep.mubr.f32.mxu0 0.0
      %722 = vmatmul.mubr.f32.gmra.mrb[0].mxu0 %v502
      %v723 = vpop.f32.mrb[0].mxu0
      %v724 = vadd.f32 0.0, %v723
      %v725 = vpop.f32.mrb[0].mxu0
      %v726 = vadd.f32 0.0, %v725
      %727 = vmatprep.mubr.f32.mxu0 0.0
      %728 = vmatmul.mubr.f32.gmra.mrb[0].mxu0 %v505
      %v729 = vpop.f32.mrb[0].mxu0
      %v730 = vadd.f32 0.0, %v729
      %v731 = vpop.f32.mrb[0].mxu0
      %v732 = vadd.f32 0.0, %v731
      %733 = vmatprep.mubr.f32.mxu0 0.0
      %734 = vmatmul.mubr.f32.gmra.mrb[0].mxu0 %v508
      %v735 = vpop.f32.mrb[0].mxu0
      %v736 = vadd.f32 0.0, %v735
      %v737 = vpop.f32.mrb[0].mxu0
      %v738 = vadd.f32 0.0, %v737
      %739 = vmatprep.mubr.f32.mxu0 0.0
      %740 = vmatmul.mubr.f32.gmra.mrb[0].mxu0 %v511
      %v741 = vpop.f32.mrb[0].mxu0
      %v742 = vadd.f32 0.0, %v741
      %v743 = vpop.f32.mrb[0].mxu0
      %v744 = vadd.f32 0.0, %v743
      %745 = vmatprep.mubr.f32.mxu0 0.0
      %746 = vmatmul.mubr.f32.gmra.mrb[0].mxu0 %v514
      %v747 = vpop.f32.mrb[0].mxu0
      %v748 = vadd.f32 0.0, %v747
      %v749 = vpop.f32.mrb[0].mxu0
      %v750 = vadd.f32 0.0, %v749
      %751 = vmatprep.mubr.f32.mxu0 0.0
      %752 = vmatmul.mubr.f32.gmra.mrb[0].mxu0 %v517
      %v753 = vpop.f32.mrb[0].mxu0
      %v754 = vadd.f32 0.0, %v753
      %v755 = vpop.f32.mrb[0].mxu0
      %v756 = vadd.f32 0.0, %v755
      %757 = vmatprep.mubr.f32.mxu0 0.0
      %758 = vmatmul.mubr.f32.gmra.mrb[0].mxu0 %v520
      %v759 = vpop.f32.mrb[0].mxu0
      %v760 = vadd.f32 0.0, %v759
      %v761 = vpop.f32.mrb[0].mxu0
      %v762 = vadd.f32 0.0, %v761
      %763 = vmatprep.mubr.f32.mxu0 0.0
      %764 = vmatmul.mubr.f32.gmra.mrb[0].mxu0 %v523
      %v765 = vpop.f32.mrb[0].mxu0
      %v766 = vadd.f32 0.0, %v765
      %v767 = vpop.f32.mrb[0].mxu0
      %v768 = vadd.f32 0.0, %v767
      %769 = vmatprep.mubr.f32.mxu0 0.0
      %770 = vmatmul.mubr.f32.gmra.mrb[0].mxu0 %v526
      %v771 = vpop.f32.mrb[0].mxu0
      %v772 = vadd.f32 0.0, %v771
      %v773 = vpop.f32.mrb[0].mxu0
      %v774 = vadd.f32 0.0, %v773
      %775 = vmatprep.mubr.f32.mxu0 0.0
      %776 = vmatmul.mubr.f32.gmra.mrb[0].mxu0 %v529
      %v777 = vpop.f32.mrb[0].mxu0
      %v778 = vadd.f32 0.0, %v777
      %v779 = vpop.f32.mrb[0].mxu0
      %v780 = vadd.f32 0.0, %v779
      %781 = vmatprep.mubr.f32.mxu0 0.0
      %782 = vmatmul.mubr.f32.gmra.mrb[0].mxu0 %v532
      %v783 = vpop.f32.mrb[0].mxu0
      %v784 = vadd.f32 0.0, %v783
      %v785 = vpop.f32.mrb[0].mxu0
      %v786 = vadd.f32 0.0, %v785
      %787 = vmatprep.mubr.f32.mxu0 0.0
      %788 = vmatmul.mubr.f32.gmra.mrb[0].mxu0 %v535
      %v789 = vpop.f32.mrb[0].mxu0
      %v790 = vadd.f32 0.0, %v789
      %v791 = vpop.f32.mrb[0].mxu0
      %v792 = vadd.f32 0.0, %v791
      %793 = vdwg.mxu0
      %v794 = vmax.f32 %v604, %v616
      %v795 = vmax.f32 %v610, %v622
      %v796 = vmax.f32 %v794, %v628
      %v797 = vmax.f32 %v795, %v634
      %v798 = vmax.f32 %v796, %v640
      %v799 = vmax.f32 %v797, %v646
      %v800 = vmax.f32 %v798, %v652
      %v801 = vmax.f32 %v799, %v658
      %v802 = vmax.f32 %v800, %v664
      %v803 = vmax.f32 %v801, %v670
      %v804 = vmax.f32 %v802, %v676
      %v805 = vmax.f32 %v803, %v682
      %v806 = vmax.f32 %v804, %v688
      %v807 = vmax.f32 %v805, %v694
      %v808 = vmax.f32 %v806, %v700
      %v809 = vmax.f32 %v807, %v706
      %v810 = vmax.f32 %v808, %v712
      %v811 = vmax.f32 %v809, %v718
      %v812 = vmax.f32 %v810, %v724
      %v813 = vmax.f32 %v811, %v730
      %v814 = vmax.f32 %v812, %v736
      %v815 = vmax.f32 %v813, %v742
      %v816 = vmax.f32 %v814, %v748
      %v817 = vmax.f32 %v815, %v754
      %v818 = vmax.f32 %v816, %v760
      %v819 = vmax.f32 %v817, %v766
      %v820 = vmax.f32 %v818, %v772
      %v821 = vmax.f32 %v819, %v778
      %v822 = vmax.f32 %v820, %v784
      %v823 = vmax.f32 %v821, %v790
      %v824 = vmax.f32 %v822, %v823
      %v825 = vrot.slane %v824, 4
      %v826 = vmax.f32 %v824, %v825
      %v827 = vrot.slane %v826, 2
      %v828 = vmax.f32 %v826, %v827
      %v829 = vrot.slane %v828, 1
      %v830 = vmax.f32 %v828, %v829
      %v831 = vmax.f32 %v606, %v618
      %v832 = vmax.f32 %v612, %v624
      %v833 = vmax.f32 %v831, %v630
      %v834 = vmax.f32 %v832, %v636
      %v835 = vmax.f32 %v833, %v642
      %v836 = vmax.f32 %v834, %v648
      %v837 = vmax.f32 %v835, %v654
      %v838 = vmax.f32 %v836, %v660
      %v839 = vmax.f32 %v837, %v666
      %v840 = vmax.f32 %v838, %v672
      %v841 = vmax.f32 %v839, %v678
      %v842 = vmax.f32 %v840, %v684
      %v843 = vmax.f32 %v841, %v690
      %v844 = vmax.f32 %v842, %v696
      %v845 = vmax.f32 %v843, %v702
      %v846 = vmax.f32 %v844, %v708
      %v847 = vmax.f32 %v845, %v714
      %v848 = vmax.f32 %v846, %v720
      %v849 = vmax.f32 %v847, %v726
      %v850 = vmax.f32 %v848, %v732
      %v851 = vmax.f32 %v849, %v738
      %v852 = vmax.f32 %v850, %v744
      %v853 = vmax.f32 %v851, %v750
      %v854 = vmax.f32 %v852, %v756
      %v855 = vmax.f32 %v853, %v762
      %v856 = vmax.f32 %v854, %v768
      %v857 = vmax.f32 %v855, %v774
      %v858 = vmax.f32 %v856, %v780
      %v859 = vmax.f32 %v857, %v786
      %v860 = vmax.f32 %v858, %v792
      %v861 = vmax.f32 %v859, %v860
      %v862 = vrot.slane %v861, 4
      %v863 = vmax.f32 %v861, %v862
      %v864 = vrot.slane %v863, 2
      %v865 = vmax.f32 %v863, %v864
      %v866 = vrot.slane %v865, 1
      %v867 = vmax.f32 %v865, %v866
      %v868 = vsub.f32 %v604, %v830
      %v869 = vsub.f32 %v606, %v867
      %v870 = vsub.f32 %v610, %v830
      %v871 = vsub.f32 %v612, %v867
      %v872 = vsub.f32 %v616, %v830
      %v873 = vsub.f32 %v618, %v867
      %v874 = vsub.f32 %v622, %v830
      %v875 = vsub.f32 %v624, %v867
      %v876 = vsub.f32 %v628, %v830
      %v877 = vsub.f32 %v630, %v867
      %v878 = vsub.f32 %v634, %v830
      %v879 = vsub.f32 %v636, %v867
      %v880 = vsub.f32 %v640, %v830
      %v881 = vsub.f32 %v642, %v867
      %v882 = vsub.f32 %v646, %v830
      %v883 = vsub.f32 %v648, %v867
      %v884 = vsub.f32 %v652, %v830
      %v885 = vsub.f32 %v654, %v867
      %v886 = vsub.f32 %v658, %v830
      %v887 = vsub.f32 %v660, %v867
      %v888 = vsub.f32 %v664, %v830
      %v889 = vsub.f32 %v666, %v867
      %v890 = vsub.f32 %v670, %v830
      %v891 = vsub.f32 %v672, %v867
      %v892 = vsub.f32 %v676, %v830
      %v893 = vsub.f32 %v678, %v867
      %v894 = vsub.f32 %v682, %v830
      %v895 = vsub.f32 %v684, %v867
      %v896 = vsub.f32 %v688, %v830
      %v897 = vsub.f32 %v690, %v867
      %v898 = vsub.f32 %v694, %v830
      %v899 = vsub.f32 %v696, %v867
      %v900 = vsub.f32 %v700, %v830
      %v901 = vsub.f32 %v702, %v867
      %v902 = vsub.f32 %v706, %v830
      %v903 = vsub.f32 %v708, %v867
      %v904 = vsub.f32 %v712, %v830
      %v905 = vsub.f32 %v714, %v867
      %v906 = vsub.f32 %v718, %v830
      %v907 = vsub.f32 %v720, %v867
      %v908 = vsub.f32 %v724, %v830
      %v909 = vsub.f32 %v726, %v867
      %v910 = vsub.f32 %v730, %v830
      %v911 = vsub.f32 %v732, %v867
      %v912 = vsub.f32 %v736, %v830
      %v913 = vsub.f32 %v738, %v867
      %v914 = vsub.f32 %v742, %v830
      %v915 = vsub.f32 %v744, %v867
      %v916 = vsub.f32 %v748, %v830
      %v917 = vsub.f32 %v750, %v867
      %v918 = vsub.f32 %v754, %v830
      %v919 = vsub.f32 %v756, %v867
      %v920 = vsub.f32 %v760, %v830
      %v921 = vsub.f32 %v762, %v867
      %v922 = vsub.f32 %v766, %v830
      %v923 = vsub.f32 %v768, %v867
      %v924 = vsub.f32 %v772, %v830
      %v925 = vsub.f32 %v774, %v867
      %v926 = vsub.f32 %v778, %v830
      %v927 = vsub.f32 %v780, %v867
      %v928 = vsub.f32 %v784, %v830
      %v929 = vsub.f32 %v786, %v867
      %v930 = vsub.f32 %v790, %v830
      %v931 = vsub.f32 %v792, %v867
      %v932 = vmul.f32 %v868, 1.442695
      %v933 = vpow.pop %v932
      %v934 = vmul.f32 %v869, 1.442695
      %v935 = vpow.pop %v934
      %v936 = vmul.f32 %v870, 1.442695
      %v937 = vpow.pop %v936
      %v938 = vmul.f32 %v871, 1.442695
      %v939 = vpow.pop %v938
      %v940 = vmul.f32 %v872, 1.442695
      %v941 = vpow.pop %v940
      %v942 = vmul.f32 %v873, 1.442695
      %v943 = vpow.pop %v942
      %v944 = vmul.f32 %v874, 1.442695
      %v945 = vpow.pop %v944
      %v946 = vmul.f32 %v875, 1.442695
      %v947 = vpow.pop %v946
      %v948 = vmul.f32 %v876, 1.442695
      %v949 = vpow.pop %v948
      %v950 = vmul.f32 %v877, 1.442695
      %v951 = vpow.pop %v950
      %v952 = vmul.f32 %v878, 1.442695
      %v953 = vpow.pop %v952
      %v954 = vmul.f32 %v879, 1.442695
      %v955 = vpow.pop %v954
      %v956 = vmul.f32 %v880, 1.442695
      %v957 = vpow.pop %v956
      %v958 = vmul.f32 %v881, 1.442695
      %v959 = vpow.pop %v958
      %v960 = vmul.f32 %v882, 1.442695
      %v961 = vpow.pop %v960
      %v962 = vmul.f32 %v883, 1.442695
      %v963 = vpow.pop %v962
      %v964 = vmul.f32 %v884, 1.442695
      %v965 = vpow.pop %v964
      %v966 = vmul.f32 %v885, 1.442695
      %v967 = vpow.pop %v966
      %v968 = vmul.f32 %v886, 1.442695
      %v969 = vpow.pop %v968
      %v970 = vmul.f32 %v887, 1.442695
      %v971 = vpow.pop %v970
      %v972 = vmul.f32 %v888, 1.442695
      %v973 = vpow.pop %v972
      %v974 = vmul.f32 %v889, 1.442695
      %v975 = vpow.pop %v974
      %v976 = vmul.f32 %v890, 1.442695
      %v977 = vpow.pop %v976
      %v978 = vmul.f32 %v891, 1.442695
      %v979 = vpow.pop %v978
      %v980 = vmul.f32 %v892, 1.442695
      %v981 = vpow.pop %v980
      %v982 = vmul.f32 %v893, 1.442695
      %v983 = vpow.pop %v982
      %v984 = vmul.f32 %v894, 1.442695
      %v985 = vpow.pop %v984
      %v986 = vmul.f32 %v895, 1.442695
      %v987 = vpow.pop %v986
      %v988 = vmul.f32 %v896, 1.442695
      %v989 = vpow.pop %v988
      %v990 = vmul.f32 %v897, 1.442695
      %v991 = vpow.pop %v990
      %v992 = vmul.f32 %v898, 1.442695
      %v993 = vpow.pop %v992
      %v994 = vmul.f32 %v899, 1.442695
      %v995 = vpow.pop %v994
      %v996 = vmul.f32 %v900, 1.442695
      %v997 = vpow.pop %v996
      %v998 = vmul.f32 %v901, 1.442695
      %v999 = vpow.pop %v998
      %v1000 = vmul.f32 %v902, 1.442695
      %v1001 = vpow.pop %v1000
      %v1002 = vmul.f32 %v903, 1.442695
      %v1003 = vpow.pop %v1002
      %v1004 = vmul.f32 %v904, 1.442695
      %v1005 = vpow.pop %v1004
      %v1006 = vmul.f32 %v905, 1.442695
      %v1007 = vpow.pop %v1006
      %v1008 = vmul.f32 %v906, 1.442695
      %v1009 = vpow.pop %v1008
      %v1010 = vmul.f32 %v907, 1.442695
      %v1011 = vpow.pop %v1010
      %v1012 = vmul.f32 %v908, 1.442695
      %v1013 = vpow.pop %v1012
      %v1014 = vmul.f32 %v909, 1.442695
      %v1015 = vpow.pop %v1014
      %v1016 = vmul.f32 %v910, 1.442695
      %v1017 = vpow.pop %v1016
      %v1018 = vmul.f32 %v911, 1.442695
      %v1019 = vpow.pop %v1018
      %v1020 = vmul.f32 %v912, 1.442695
      %v1021 = vpow.pop %v1020
      %v1022 = vmul.f32 %v913, 1.442695
      %v1023 = vpow.pop %v1022
      %v1024 = vmul.f32 %v914, 1.442695
      %v1025 = vpow.pop %v1024
      %v1026 = vmul.f32 %v915, 1.442695
      %v1027 = vpow.pop %v1026
      %v1028 = vmul.f32 %v916, 1.442695
      %v1029 = vpow.pop %v1028
      %v1030 = vmul.f32 %v917, 1.442695
      %v1031 = vpow.pop %v1030
      %v1032 = vmul.f32 %v918, 1.442695
      %v1033 = vpow.pop %v1032
      %v1034 = vmul.f32 %v919, 1.442695
      %v1035 = vpow.pop %v1034
      %v1036 = vmul.f32 %v920, 1.442695
      %v1037 = vpow.pop %v1036
      %v1038 = vmul.f32 %v921, 1.442695
      %v1039 = vpow.pop %v1038
      %v1040 = vmul.f32 %v922, 1.442695
      %v1041 = vpow.pop %v1040
      %v1042 = vmul.f32 %v923, 1.442695
      %v1043 = vpow.pop %v1042
      %v1044 = vmul.f32 %v924, 1.442695
      %v1045 = vpow.pop %v1044
      %v1046 = vmul.f32 %v925, 1.442695
      %v1047 = vpow.pop %v1046
      %v1048 = vmul.f32 %v926, 1.442695
      %v1049 = vpow.pop %v1048
      %v1050 = vmul.f32 %v927, 1.442695
      %v1051 = vpow.pop %v1050
      %v1052 = vmul.f32 %v928, 1.442695
      %v1053 = vpow.pop %v1052
      %v1054 = vmul.f32 %v929, 1.442695
      %v1055 = vpow.pop %v1054
      %v1056 = vmul.f32 %v930, 1.442695
      %v1057 = vpow.pop %v1056
      %v1058 = vmul.f32 %v931, 1.442695
      %v1059 = vpow.pop %v1058
      %v1060 = vadd.f32 %v933, %v937
      %v1061 = vadd.f32 %v1060, %v941
      %v1062 = vadd.f32 %v1061, %v945
      %v1063 = vadd.f32 %v1062, %v949
      %v1064 = vadd.f32 %v1063, %v953
      %v1065 = vadd.f32 %v1064, %v957
      %v1066 = vadd.f32 %v1065, %v961
      %v1067 = vadd.f32 %v1066, %v965
      %v1068 = vadd.f32 %v1067, %v969
      %v1069 = vadd.f32 %v1068, %v973
      %v1070 = vadd.f32 %v1069, %v977
      %v1071 = vadd.f32 %v1070, %v981
      %v1072 = vadd.f32 %v1071, %v985
      %v1073 = vadd.f32 %v1072, %v989
      %v1074 = vadd.f32 %v1073, %v993
      %v1075 = vadd.f32 %v1074, %v997
      %v1076 = vadd.f32 %v1075, %v1001
      %v1077 = vadd.f32 %v1076, %v1005
      %v1078 = vadd.f32 %v1077, %v1009
      %v1079 = vadd.f32 %v1078, %v1013
      %v1080 = vadd.f32 %v1079, %v1017
      %v1081 = vadd.f32 %v1080, %v1021
      %v1082 = vadd.f32 %v1081, %v1025
      %v1083 = vadd.f32 %v1082, %v1029
      %v1084 = vadd.f32 %v1083, %v1033
      %v1085 = vadd.f32 %v1084, %v1037
      %v1086 = vadd.f32 %v1085, %v1041
      %v1087 = vadd.f32 %v1086, %v1045
      %v1088 = vadd.f32 %v1087, %v1049
      %v1089 = vadd.f32 %v1088, %v1053
      %v1090 = vadd.f32 %v1089, %v1057
      %v1091 = vrot.slane %v1090, 4
      %v1092 = vadd.f32 %v1090, %v1091
      %v1093 = vrot.slane %v1092, 2
      %v1094 = vadd.f32 %v1092, %v1093
      %v1095 = vrot.slane %v1094, 1
      %v1096 = vadd.f32 %v1094, %v1095
      %v1097 = vadd.f32 %v935, %v939
      %v1098 = vadd.f32 %v1097, %v943
      %v1099 = vadd.f32 %v1098, %v947
      %v1100 = vadd.f32 %v1099, %v951
      %v1101 = vadd.f32 %v1100, %v955
      %v1102 = vadd.f32 %v1101, %v959
      %v1103 = vadd.f32 %v1102, %v963
      %v1104 = vadd.f32 %v1103, %v967
      %v1105 = vadd.f32 %v1104, %v971
      %v1106 = vadd.f32 %v1105, %v975
      %v1107 = vadd.f32 %v1106, %v979
      %v1108 = vadd.f32 %v1107, %v983
      %v1109 = vadd.f32 %v1108, %v987
      %v1110 = vadd.f32 %v1109, %v991
      %v1111 = vadd.f32 %v1110, %v995
      %v1112 = vadd.f32 %v1111, %v999
      %v1113 = vadd.f32 %v1112, %v1003
      %v1114 = vadd.f32 %v1113, %v1007
      %v1115 = vadd.f32 %v1114, %v1011
      %v1116 = vadd.f32 %v1115, %v1015
      %v1117 = vadd.f32 %v1116, %v1019
      %v1118 = vadd.f32 %v1117, %v1023
      %v1119 = vadd.f32 %v1118, %v1027
      %v1120 = vadd.f32 %v1119, %v1031
      %v1121 = vadd.f32 %v1120, %v1035
      %v1122 = vadd.f32 %v1121, %v1039
      %v1123 = vadd.f32 %v1122, %v1043
      %v1124 = vadd.f32 %v1123, %v1047
      %v1125 = vadd.f32 %v1124, %v1051
      %v1126 = vadd.f32 %v1125, %v1055
      %v1127 = vadd.f32 %v1126, %v1059
      %v1128 = vrot.slane %v1127, 4
      %v1129 = vadd.f32 %v1127, %v1128
      %v1130 = vrot.slane %v1129, 2
      %v1131 = vadd.f32 %v1129, %v1130
      %v1132 = vrot.slane %v1131, 1
      %v1133 = vadd.f32 %v1131, %v1132
      %1134 = vmatprep.subr.mxu0 %v935
      %1135 = vmatpush1.msra.mxu0 %v933
      %1136 = vmatprep.subr.mxu0 %v939
      %1137 = vmatpush1.msra.mxu0 %v937
      %1138 = vmatprep.subr.mxu0 %v943
      %1139 = vmatpush1.msra.mxu0 %v941
      %1140 = vmatprep.subr.mxu0 %v947
      %1141 = vmatpush1.msra.mxu0 %v945
      %1142 = vmatprep.subr.mxu0 %v951
      %1143 = vmatpush1.msra.mxu0 %v949
      %1144 = vmatprep.subr.mxu0 %v955
      %1145 = vmatpush1.msra.mxu0 %v953
      %1146 = vmatprep.subr.mxu0 %v959
      %1147 = vmatpush1.msra.mxu0 %v957
      %1148 = vmatprep.subr.mxu0 %v963
      %1149 = vmatpush1.msra.mxu0 %v961
      %1150 = vmatprep.subr.mxu0 %v967
      %1151 = vmatpush1.msra.mxu0 %v965
      %1152 = vmatprep.subr.mxu0 %v971
      %1153 = vmatpush1.msra.mxu0 %v969
      %1154 = vmatprep.subr.mxu0 %v975
      %1155 = vmatpush1.msra.mxu0 %v973
      %1156 = vmatprep.subr.mxu0 %v979
      %1157 = vmatpush1.msra.mxu0 %v977
      %1158 = vmatprep.subr.mxu0 %v983
      %1159 = vmatpush1.msra.mxu0 %v981
      %1160 = vmatprep.subr.mxu0 %v987
      %1161 = vmatpush1.msra.mxu0 %v985
      %1162 = vmatprep.subr.mxu0 %v991
      %1163 = vmatpush1.msra.mxu0 %v989
      %1164 = vmatprep.subr.mxu0 %v995
      %1165 = vmatpush1.msra.mxu0 %v993
      %1166 = vmatprep.subr.mxu0 %v999
      %1167 = vmatpush1.msra.mxu0 %v997
      %1168 = vmatprep.subr.mxu0 %v1003
      %1169 = vmatpush1.msra.mxu0 %v1001
      %1170 = vmatprep.subr.mxu0 %v1007
      %1171 = vmatpush1.msra.mxu0 %v1005
      %1172 = vmatprep.subr.mxu0 %v1011
      %1173 = vmatpush1.msra.mxu0 %v1009
      %1174 = vmatprep.subr.mxu0 %v1015
      %1175 = vmatpush1.msra.mxu0 %v1013
      %1176 = vmatprep.subr.mxu0 %v1019
      %1177 = vmatpush1.msra.mxu0 %v1017
      %1178 = vmatprep.subr.mxu0 %v1023
      %1179 = vmatpush1.msra.mxu0 %v1021
      %1180 = vmatprep.subr.mxu0 %v1027
      %1181 = vmatpush1.msra.mxu0 %v1025
      %1182 = vmatprep.subr.mxu0 %v1031
      %1183 = vmatpush1.msra.mxu0 %v1029
      %1184 = vmatprep.subr.mxu0 %v1035
      %1185 = vmatpush1.msra.mxu0 %v1033
      %1186 = vmatprep.subr.mxu0 %v1039
      %1187 = vmatpush1.msra.mxu0 %v1037
      %1188 = vmatprep.subr.mxu0 %v1043
      %1189 = vmatpush1.msra.mxu0 %v1041
      %1190 = vmatprep.subr.mxu0 %v1047
      %1191 = vmatpush1.msra.mxu0 %v1045
      %1192 = vmatprep.subr.mxu0 %v1051
      %1193 = vmatpush1.msra.mxu0 %v1049
      %1194 = vmatprep.subr.mxu0 %v1055
      %1195 = vmatpush1.msra.mxu0 %v1053
      %1196 = vmatprep.subr.mxu0 %v1059
      %1197 = vmatpush1.msra.mxu0 %v1057
      %1198 = vmatprep.mubr.f32.mxu0 %v318
      %1199 = vmatmul.mubr.f32.gmra.mrb[0].mxu0 %v316
      %v1200 = vpop.f32.mrb[0].mxu0
      %v1201 = vadd.f32 0.0, %v1200
      %v1202 = vpop.f32.mrb[0].mxu0
      %v1203 = vadd.f32 0.0, %v1202
      %1204 = vdwg.mxu0
      %v1205 = vrcp.pop %v1096
      %v1206 = vrcp.pop %v1133
      %v1207 = vmul.f32 %v1201, %v1205
      %v1208 = vmul.f32 %v1203, %v1206
      %1209 = vst [vmem:[%s170] sm:$0xff] %v1207
      %1210 = vst [vmem:[%s170 + $0x8] sm:$0xff] %v1208
      %v1211 = vld [vmem:[%s2 + $0x10] sm:$0xff]
      %v1212 = vld [vmem:[%s2 + $0x18] sm:$0xff]
      %1213 = vxpose.xlu0.b32.start [1/16] %v322, 128
      %1214 = vxpose.xlu0.b32.cont [2/16] %v328, 128
      %1215 = vxpose.xlu0.b32.cont [3/16] 0.0, 128
      %1216 = vxpose.xlu0.b32.cont [4/16] 0.0, 128
      %1217 = vxpose.xlu0.b32.cont [5/16] 0.0, 128
      %1218 = vxpose.xlu0.b32.cont [6/16] 0.0, 128
      %1219 = vxpose.xlu0.b32.cont [7/16] 0.0, 128
      %1220 = vxpose.xlu0.b32.cont [8/16] 0.0, 128
      %1221 = vxpose.xlu0.b32.cont [9/16] 0.0, 128
      %1222 = vxpose.xlu0.b32.cont [10/16] 0.0, 128
      %1223 = vxpose.xlu0.b32.cont [11/16] 0.0, 128
      %1224 = vxpose.xlu0.b32.cont [12/16] 0.0, 128
      %1225 = vxpose.xlu0.b32.cont [13/16] 0.0, 128
      %1226 = vxpose.xlu0.b32.cont [14/16] 0.0, 128
      %1227 = vxpose.xlu0.b32.cont [15/16] 0.0, 128
      %1228 = vxpose.xlu0.b32.end [16/16] 0.0, 128
      %v1229 = vpop.trf.xlu0
      %v1230 = vpop.trf.xlu0
      %v1231 = vpop.trf.xlu0
      %v1232 = vpop.trf.xlu0
      %v1233 = vpop.trf.xlu0
      %v1234 = vpop.trf.xlu0
      %v1235 = vpop.trf.xlu0
      %v1236 = vpop.trf.xlu0
      %v1237 = vpop.trf.xlu0
      %v1238 = vpop.trf.xlu0
      %v1239 = vpop.trf.xlu0
      %v1240 = vpop.trf.xlu0
      %v1241 = vpop.trf.xlu0
      %v1242 = vpop.trf.xlu0
      %v1243 = vpop.trf.xlu0
      %v1244 = vpop.trf.xlu0
      %1245 = vxpose.xlu0.b32.start [1/16] %v324, 128
      %1246 = vxpose.xlu0.b32.cont [2/16] %v330, 128
      %1247 = vxpose.xlu0.b32.cont [3/16] 0.0, 128
      %1248 = vxpose.xlu0.b32.cont [4/16] 0.0, 128
      %1249 = vxpose.xlu0.b32.cont [5/16] 0.0, 128
      %1250 = vxpose.xlu0.b32.cont [6/16] 0.0, 128
      %1251 = vxpose.xlu0.b32.cont [7/16] 0.0, 128
      %1252 = vxpose.xlu0.b32.cont [8/16] 0.0, 128
      %1253 = vxpose.xlu0.b32.cont [9/16] 0.0, 128
      %1254 = vxpose.xlu0.b32.cont [10/16] 0.0, 128
      %1255 = vxpose.xlu0.b32.cont [11/16] 0.0, 128
      %1256 = vxpose.xlu0.b32.cont [12/16] 0.0, 128
      %1257 = vxpose.xlu0.b32.cont [13/16] 0.0, 128
      %1258 = vxpose.xlu0.b32.cont [14/16] 0.0, 128
      %1259 = vxpose.xlu0.b32.cont [15/16] 0.0, 128
      %1260 = vxpose.xlu0.b32.end [16/16] 0.0, 128
      %v1261 = vpop.trf.xlu0
      %v1262 = vpop.trf.xlu0
      %v1263 = vpop.trf.xlu0
      %v1264 = vpop.trf.xlu0
      %v1265 = vpop.trf.xlu0
      %v1266 = vpop.trf.xlu0
      %v1267 = vpop.trf.xlu0
      %v1268 = vpop.trf.xlu0
      %v1269 = vpop.trf.xlu0
      %v1270 = vpop.trf.xlu0
      %v1271 = vpop.trf.xlu0
      %v1272 = vpop.trf.xlu0
      %v1273 = vpop.trf.xlu0
      %v1274 = vpop.trf.xlu0
      %v1275 = vpop.trf.xlu0
      %v1276 = vpop.trf.xlu0
      %v1278 = vsel %vm440, %v1229, 0
      %v1281 = vsel %vm440, %v1230, 0
      %v1284 = vsel %vm440, %v1231, 0
      %v1287 = vsel %vm440, %v1232, 0
      %v1290 = vsel %vm440, %v1233, 0
      %v1293 = vsel %vm440, %v1234, 0
      %v1296 = vsel %vm440, %v1235, 0
      %v1299 = vsel %vm440, %v1236, 0
      %v1302 = vsel %vm440, %v1237, 0
      %v1305 = vsel %vm440, %v1238, 0
      %v1308 = vsel %vm440, %v1239, 0
      %v1311 = vsel %vm440, %v1240, 0
      %v1314 = vsel %vm440, %v1241, 0
      %v1317 = vsel %vm440, %v1242, 0
      %v1320 = vsel %vm440, %v1243, 0
      %v1323 = vsel %vm440, %v1244, 0
      %v1326 = vsel %vm440, %v1261, 0
      %v1329 = vsel %vm440, %v1262, 0
      %v1332 = vsel %vm440, %v1263, 0
      %v1335 = vsel %vm440, %v1264, 0
      %v1338 = vsel %vm440, %v1265, 0
      %v1341 = vsel %vm440, %v1266, 0
      %v1344 = vsel %vm440, %v1267, 0
      %v1347 = vsel %vm440, %v1268, 0
      %v1350 = vsel %vm440, %v1269, 0
      %v1353 = vsel %vm440, %v1270, 0
      %v1356 = vsel %vm440, %v1271, 0
      %v1359 = vsel %vm440, %v1272, 0
      %v1362 = vsel %vm440, %v1273, 0
      %v1365 = vsel %vm440, %v1274, 0
      %v1368 = vsel %vm440, %v1275, 0
      %v1371 = vsel %vm440, %v1276, 0
      %1373 = vmatprep.subr.mxu0 %v330
      %1374 = vmatpush1.msra.mxu0 %v328
      %1375 = vmatprep.subr.mxu0 %v1212
      %1376 = vmatpush1.msra.mxu0 %v1211
      %1377 = vmatprep.subr.mxu0 0.0
      %1378 = vmatpush1.msra.mxu0 0.0
      %1379 = vmatprep.subr.mxu0 0.0
      %1380 = vmatpush1.msra.mxu0 0.0
      %1381 = vmatprep.subr.mxu0 0.0
      %1382 = vmatpush1.msra.mxu0 0.0
      %1383 = vmatprep.subr.mxu0 0.0
      %1384 = vmatpush1.msra.mxu0 0.0
      %1385 = vmatprep.subr.mxu0 0.0
      %1386 = vmatpush1.msra.mxu0 0.0
      %1387 = vmatprep.subr.mxu0 0.0
      %1388 = vmatpush1.msra.mxu0 0.0
      %1389 = vmatprep.subr.mxu0 0.0
      %1390 = vmatpush1.msra.mxu0 0.0
      %1391 = vmatprep.subr.mxu0 0.0
      %1392 = vmatpush1.msra.mxu0 0.0
      %1393 = vmatprep.subr.mxu0 0.0
      %1394 = vmatpush1.msra.mxu0 0.0
      %1395 = vmatprep.subr.mxu0 0.0
      %1396 = vmatpush1.msra.mxu0 0.0
      %1397 = vmatprep.subr.mxu0 0.0
      %1398 = vmatpush1.msra.mxu0 0.0
      %1399 = vmatprep.subr.mxu0 0.0
      %1400 = vmatpush1.msra.mxu0 0.0
      %1401 = vmatprep.subr.mxu0 0.0
      %1402 = vmatpush1.msra.mxu0 0.0
      %1403 = vmatprep.subr.mxu0 0.0
      %1404 = vmatpush1.msra.mxu0 0.0
      %1405 = vmatprep.subr.mxu0 0.0
      %1406 = vmatpush1.msra.mxu0 0.0
      %1407 = vmatprep.subr.mxu0 0.0
      %1408 = vmatpush1.msra.mxu0 0.0
      %1409 = vmatprep.subr.mxu0 0.0
      %1410 = vmatpush1.msra.mxu0 0.0
      %1411 = vmatprep.subr.mxu0 0.0
      %1412 = vmatpush1.msra.mxu0 0.0
      %1413 = vmatprep.subr.mxu0 0.0
      %1414 = vmatpush1.msra.mxu0 0.0
      %1415 = vmatprep.subr.mxu0 0.0
      %1416 = vmatpush1.msra.mxu0 0.0
      %1417 = vmatprep.subr.mxu0 0.0
      %1418 = vmatpush1.msra.mxu0 0.0
      %1419 = vmatprep.subr.mxu0 0.0
      %1420 = vmatpush1.msra.mxu0 0.0
      %1421 = vmatprep.subr.mxu0 0.0
      %1422 = vmatpush1.msra.mxu0 0.0
      %1423 = vmatprep.subr.mxu0 0.0
      %1424 = vmatpush1.msra.mxu0 0.0
      %1425 = vmatprep.subr.mxu0 0.0
      %1426 = vmatpush1.msra.mxu0 0.0
      %1427 = vmatprep.subr.mxu0 0.0
      %1428 = vmatpush1.msra.mxu0 0.0
      %1429 = vmatprep.subr.mxu0 0.0
      %1430 = vmatpush1.msra.mxu0 0.0
      %1431 = vmatprep.subr.mxu0 0.0
      %1432 = vmatpush1.msra.mxu0 0.0
      %1433 = vmatprep.subr.mxu0 0.0
      %1434 = vmatpush1.msra.mxu0 0.0
      %1435 = vmatprep.subr.mxu0 0.0
      %1436 = vmatpush1.msra.mxu0 0.0
      %1437 = vmatprep.mubr.f32.mxu0 0.0
      %1438 = vmatmul.mubr.f32.gmra.mrb[0].mxu0 %v1278
      %v1439 = vpop.f32.mrb[0].mxu0
      %v1440 = vadd.f32 0.0, %v1439
      %v1441 = vpop.f32.mrb[0].mxu0
      %v1442 = vadd.f32 0.0, %v1441
      %1443 = vmatprep.mubr.f32.mxu0 0.0
      %1444 = vmatmul.mubr.f32.gmra.mrb[0].mxu0 %v1281
      %v1445 = vpop.f32.mrb[0].mxu0
      %v1446 = vadd.f32 0.0, %v1445
      %v1447 = vpop.f32.mrb[0].mxu0
      %v1448 = vadd.f32 0.0, %v1447
      %1449 = vmatprep.mubr.f32.mxu0 0.0
      %1450 = vmatmul.mubr.f32.gmra.mrb[0].mxu0 %v1284
      %v1451 = vpop.f32.mrb[0].mxu0
      %v1452 = vadd.f32 0.0, %v1451
      %v1453 = vpop.f32.mrb[0].mxu0
      %v1454 = vadd.f32 0.0, %v1453
      %1455 = vmatprep.mubr.f32.mxu0 0.0
      %1456 = vmatmul.mubr.f32.gmra.mrb[0].mxu0 %v1287
      %v1457 = vpop.f32.mrb[0].mxu0
      %v1458 = vadd.f32 0.0, %v1457
      %v1459 = vpop.f32.mrb[0].mxu0
      %v1460 = vadd.f32 0.0, %v1459
      %1461 = vmatprep.mubr.f32.mxu0 0.0
      %1462 = vmatmul.mubr.f32.gmra.mrb[0].mxu0 %v1290
      %v1463 = vpop.f32.mrb[0].mxu0
      %v1464 = vadd.f32 0.0, %v1463
      %v1465 = vpop.f32.mrb[0].mxu0
      %v1466 = vadd.f32 0.0, %v1465
      %1467 = vmatprep.mubr.f32.mxu0 0.0
      %1468 = vmatmul.mubr.f32.gmra.mrb[0].mxu0 %v1293
      %v1469 = vpop.f32.mrb[0].mxu0
      %v1470 = vadd.f32 0.0, %v1469
      %v1471 = vpop.f32.mrb[0].mxu0
      %v1472 = vadd.f32 0.0, %v1471
      %1473 = vmatprep.mubr.f32.mxu0 0.0
      %1474 = vmatmul.mubr.f32.gmra.mrb[0].mxu0 %v1296
      %v1475 = vpop.f32.mrb[0].mxu0
      %v1476 = vadd.f32 0.0, %v1475
      %v1477 = vpop.f32.mrb[0].mxu0
      %v1478 = vadd.f32 0.0, %v1477
      %1479 = vmatprep.mubr.f32.mxu0 0.0
      %1480 = vmatmul.mubr.f32.gmra.mrb[0].mxu0 %v1299
      %v1481 = vpop.f32.mrb[0].mxu0
      %v1482 = vadd.f32 0.0, %v1481
      %v1483 = vpop.f32.mrb[0].mxu0
      %v1484 = vadd.f32 0.0, %v1483
      %1485 = vmatprep.mubr.f32.mxu0 0.0
      %1486 = vmatmul.mubr.f32.gmra.mrb[0].mxu0 %v1302
      %v1487 = vpop.f32.mrb[0].mxu0
      %v1488 = vadd.f32 0.0, %v1487
      %v1489 = vpop.f32.mrb[0].mxu0
      %v1490 = vadd.f32 0.0, %v1489
      %1491 = vmatprep.mubr.f32.mxu0 0.0
      %1492 = vmatmul.mubr.f32.gmra.mrb[0].mxu0 %v1305
      %v1493 = vpop.f32.mrb[0].mxu0
      %v1494 = vadd.f32 0.0, %v1493
      %v1495 = vpop.f32.mrb[0].mxu0
      %v1496 = vadd.f32 0.0, %v1495
      %1497 = vmatprep.mubr.f32.mxu0 0.0
      %1498 = vmatmul.mubr.f32.gmra.mrb[0].mxu0 %v1308
      %v1499 = vpop.f32.mrb[0].mxu0
      %v1500 = vadd.f32 0.0, %v1499
      %v1501 = vpop.f32.mrb[0].mxu0
      %v1502 = vadd.f32 0.0, %v1501
      %1503 = vmatprep.mubr.f32.mxu0 0.0
      %1504 = vmatmul.mubr.f32.gmra.mrb[0].mxu0 %v1311
      %v1505 = vpop.f32.mrb[0].mxu0
      %v1506 = vadd.f32 0.0, %v1505
      %v1507 = vpop.f32.mrb[0].mxu0
      %v1508 = vadd.f32 0.0, %v1507
      %1509 = vmatprep.mubr.f32.mxu0 0.0
      %1510 = vmatmul.mubr.f32.gmra.mrb[0].mxu0 %v1314
      %v1511 = vpop.f32.mrb[0].mxu0
      %v1512 = vadd.f32 0.0, %v1511
      %v1513 = vpop.f32.mrb[0].mxu0
      %v1514 = vadd.f32 0.0, %v1513
      %1515 = vmatprep.mubr.f32.mxu0 0.0
      %1516 = vmatmul.mubr.f32.gmra.mrb[0].mxu0 %v1317
      %v1517 = vpop.f32.mrb[0].mxu0
      %v1518 = vadd.f32 0.0, %v1517
      %v1519 = vpop.f32.mrb[0].mxu0
      %v1520 = vadd.f32 0.0, %v1519
      %1521 = vmatprep.mubr.f32.mxu0 0.0
      %1522 = vmatmul.mubr.f32.gmra.mrb[0].mxu0 %v1320
      %v1523 = vpop.f32.mrb[0].mxu0
      %v1524 = vadd.f32 0.0, %v1523
      %v1525 = vpop.f32.mrb[0].mxu0
      %v1526 = vadd.f32 0.0, %v1525
      %1527 = vmatprep.mubr.f32.mxu0 0.0
      %1528 = vmatmul.mubr.f32.gmra.mrb[0].mxu0 %v1323
      %v1529 = vpop.f32.mrb[0].mxu0
      %v1530 = vadd.f32 0.0, %v1529
      %v1531 = vpop.f32.mrb[0].mxu0
      %v1532 = vadd.f32 0.0, %v1531
      %1533 = vmatprep.mubr.f32.mxu0 0.0
      %1534 = vmatmul.mubr.f32.gmra.mrb[0].mxu0 %v1326
      %v1535 = vpop.f32.mrb[0].mxu0
      %v1536 = vadd.f32 0.0, %v1535
      %v1537 = vpop.f32.mrb[0].mxu0
      %v1538 = vadd.f32 0.0, %v1537
      %1539 = vmatprep.mubr.f32.mxu0 0.0
      %1540 = vmatmul.mubr.f32.gmra.mrb[0].mxu0 %v1329
      %v1541 = vpop.f32.mrb[0].mxu0
      %v1542 = vadd.f32 0.0, %v1541
      %v1543 = vpop.f32.mrb[0].mxu0
      %v1544 = vadd.f32 0.0, %v1543
      %1545 = vmatprep.mubr.f32.mxu0 0.0
      %1546 = vmatmul.mubr.f32.gmra.mrb[0].mxu0 %v1332
      %v1547 = vpop.f32.mrb[0].mxu0
      %v1548 = vadd.f32 0.0, %v1547
      %v1549 = vpop.f32.mrb[0].mxu0
      %v1550 = vadd.f32 0.0, %v1549
      %1551 = vmatprep.mubr.f32.mxu0 0.0
      %1552 = vmatmul.mubr.f32.gmra.mrb[0].mxu0 %v1335
      %v1553 = vpop.f32.mrb[0].mxu0
      %v1554 = vadd.f32 0.0, %v1553
      %v1555 = vpop.f32.mrb[0].mxu0
      %v1556 = vadd.f32 0.0, %v1555
      %1557 = vmatprep.mubr.f32.mxu0 0.0
      %1558 = vmatmul.mubr.f32.gmra.mrb[0].mxu0 %v1338
      %v1559 = vpop.f32.mrb[0].mxu0
      %v1560 = vadd.f32 0.0, %v1559
      %v1561 = vpop.f32.mrb[0].mxu0
      %v1562 = vadd.f32 0.0, %v1561
      %1563 = vmatprep.mubr.f32.mxu0 0.0
      %1564 = vmatmul.mubr.f32.gmra.mrb[0].mxu0 %v1341
      %v1565 = vpop.f32.mrb[0].mxu0
      %v1566 = vadd.f32 0.0, %v1565
      %v1567 = vpop.f32.mrb[0].mxu0
      %v1568 = vadd.f32 0.0, %v1567
      %1569 = vmatprep.mubr.f32.mxu0 0.0
      %1570 = vmatmul.mubr.f32.gmra.mrb[0].mxu0 %v1344
      %v1571 = vpop.f32.mrb[0].mxu0
      %v1572 = vadd.f32 0.0, %v1571
      %v1573 = vpop.f32.mrb[0].mxu0
      %v1574 = vadd.f32 0.0, %v1573
      %1575 = vmatprep.mubr.f32.mxu0 0.0
      %1576 = vmatmul.mubr.f32.gmra.mrb[0].mxu0 %v1347
      %v1577 = vpop.f32.mrb[0].mxu0
      %v1578 = vadd.f32 0.0, %v1577
      %v1579 = vpop.f32.mrb[0].mxu0
      %v1580 = vadd.f32 0.0, %v1579
      %1581 = vmatprep.mubr.f32.mxu0 0.0
      %1582 = vmatmul.mubr.f32.gmra.mrb[0].mxu0 %v1350
      %v1583 = vpop.f32.mrb[0].mxu0
      %v1584 = vadd.f32 0.0, %v1583
      %v1585 = vpop.f32.mrb[0].mxu0
      %v1586 = vadd.f32 0.0, %v1585
      %1587 = vmatprep.mubr.f32.mxu0 0.0
      %1588 = vmatmul.mubr.f32.gmra.mrb[0].mxu0 %v1353
      %v1589 = vpop.f32.mrb[0].mxu0
      %v1590 = vadd.f32 0.0, %v1589
      %v1591 = vpop.f32.mrb[0].mxu0
      %v1592 = vadd.f32 0.0, %v1591
      %1593 = vmatprep.mubr.f32.mxu0 0.0
      %1594 = vmatmul.mubr.f32.gmra.mrb[0].mxu0 %v1356
      %v1595 = vpop.f32.mrb[0].mxu0
      %v1596 = vadd.f32 0.0, %v1595
      %v1597 = vpop.f32.mrb[0].mxu0
      %v1598 = vadd.f32 0.0, %v1597
      %1599 = vmatprep.mubr.f32.mxu0 0.0
      %1600 = vmatmul.mubr.f32.gmra.mrb[0].mxu0 %v1359
      %v1601 = vpop.f32.mrb[0].mxu0
      %v1602 = vadd.f32 0.0, %v1601
      %v1603 = vpop.f32.mrb[0].mxu0
      %v1604 = vadd.f32 0.0, %v1603
      %1605 = vmatprep.mubr.f32.mxu0 0.0
      %1606 = vmatmul.mubr.f32.gmra.mrb[0].mxu0 %v1362
      %v1607 = vpop.f32.mrb[0].mxu0
      %v1608 = vadd.f32 0.0, %v1607
      %v1609 = vpop.f32.mrb[0].mxu0
      %v1610 = vadd.f32 0.0, %v1609
      %1611 = vmatprep.mubr.f32.mxu0 0.0
      %1612 = vmatmul.mubr.f32.gmra.mrb[0].mxu0 %v1365
      %v1613 = vpop.f32.mrb[0].mxu0
      %v1614 = vadd.f32 0.0, %v1613
      %v1615 = vpop.f32.mrb[0].mxu0
      %v1616 = vadd.f32 0.0, %v1615
      %1617 = vmatprep.mubr.f32.mxu0 0.0
      %1618 = vmatmul.mubr.f32.gmra.mrb[0].mxu0 %v1368
      %v1619 = vpop.f32.mrb[0].mxu0
      %v1620 = vadd.f32 0.0, %v1619
      %v1621 = vpop.f32.mrb[0].mxu0
      %v1622 = vadd.f32 0.0, %v1621
      %1623 = vmatprep.mubr.f32.mxu0 0.0
      %1624 = vmatmul.mubr.f32.gmra.mrb[0].mxu0 %v1371
      %v1625 = vpop.f32.mrb[0].mxu0
      %v1626 = vadd.f32 0.0, %v1625
      %v1627 = vpop.f32.mrb[0].mxu0
      %v1628 = vadd.f32 0.0, %v1627
      %1629 = vdwg.mxu0
      %v1630 = vmax.f32 %v1440, %v1452
      %v1631 = vmax.f32 %v1446, %v1458
      %v1632 = vmax.f32 %v1630, %v1464
      %v1633 = vmax.f32 %v1631, %v1470
      %v1634 = vmax.f32 %v1632, %v1476
      %v1635 = vmax.f32 %v1633, %v1482
      %v1636 = vmax.f32 %v1634, %v1488
      %v1637 = vmax.f32 %v1635, %v1494
      %v1638 = vmax.f32 %v1636, %v1500
      %v1639 = vmax.f32 %v1637, %v1506
      %v1640 = vmax.f32 %v1638, %v1512
      %v1641 = vmax.f32 %v1639, %v1518
      %v1642 = vmax.f32 %v1640, %v1524
      %v1643 = vmax.f32 %v1641, %v1530
      %v1644 = vmax.f32 %v1642, %v1536
      %v1645 = vmax.f32 %v1643, %v1542
      %v1646 = vmax.f32 %v1644, %v1548
      %v1647 = vmax.f32 %v1645, %v1554
      %v1648 = vmax.f32 %v1646, %v1560
      %v1649 = vmax.f32 %v1647, %v1566
      %v1650 = vmax.f32 %v1648, %v1572
      %v1651 = vmax.f32 %v1649, %v1578
      %v1652 = vmax.f32 %v1650, %v1584
      %v1653 = vmax.f32 %v1651, %v1590
      %v1654 = vmax.f32 %v1652, %v1596
      %v1655 = vmax.f32 %v1653, %v1602
      %v1656 = vmax.f32 %v1654, %v1608
      %v1657 = vmax.f32 %v1655, %v1614
      %v1658 = vmax.f32 %v1656, %v1620
      %v1659 = vmax.f32 %v1657, %v1626
      %v1660 = vmax.f32 %v1658, %v1659
      %v1661 = vrot.slane %v1660, 4
      %v1662 = vmax.f32 %v1660, %v1661
      %v1663 = vrot.slane %v1662, 2
      %v1664 = vmax.f32 %v1662, %v1663
      %v1665 = vrot.slane %v1664, 1
      %v1666 = vmax.f32 %v1664, %v1665
      %v1667 = vmax.f32 %v1442, %v1454
      %v1668 = vmax.f32 %v1448, %v1460
      %v1669 = vmax.f32 %v1667, %v1466
      %v1670 = vmax.f32 %v1668, %v1472
      %v1671 = vmax.f32 %v1669, %v1478
      %v1672 = vmax.f32 %v1670, %v1484
      %v1673 = vmax.f32 %v1671, %v1490
      %v1674 = vmax.f32 %v1672, %v1496
      %v1675 = vmax.f32 %v1673, %v1502
      %v1676 = vmax.f32 %v1674, %v1508
      %v1677 = vmax.f32 %v1675, %v1514
      %v1678 = vmax.f32 %v1676, %v1520
      %v1679 = vmax.f32 %v1677, %v1526
      %v1680 = vmax.f32 %v1678, %v1532
      %v1681 = vmax.f32 %v1679, %v1538
      %v1682 = vmax.f32 %v1680, %v1544
      %v1683 = vmax.f32 %v1681, %v1550
      %v1684 = vmax.f32 %v1682, %v1556
      %v1685 = vmax.f32 %v1683, %v1562
      %v1686 = vmax.f32 %v1684, %v1568
      %v1687 = vmax.f32 %v1685, %v1574
      %v1688 = vmax.f32 %v1686, %v1580
      %v1689 = vmax.f32 %v1687, %v1586
      %v1690 = vmax.f32 %v1688, %v1592
      %v1691 = vmax.f32 %v1689, %v1598
      %v1692 = vmax.f32 %v1690, %v1604
      %v1693 = vmax.f32 %v1691, %v1610
      %v1694 = vmax.f32 %v1692, %v1616
      %v1695 = vmax.f32 %v1693, %v1622
      %v1696 = vmax.f32 %v1694, %v1628
      %v1697 = vmax.f32 %v1695, %v1696
      %v1698 = vrot.slane %v1697, 4
      %v1699 = vmax.f32 %v1697, %v1698
      %v1700 = vrot.slane %v1699, 2
      %v1701 = vmax.f32 %v1699, %v1700
      %v1702 = vrot.slane %v1701, 1
      %v1703 = vmax.f32 %v1701, %v1702
      %v1704 = vsub.f32 %v1440, %v1666
      %v1705 = vsub.f32 %v1442, %v1703
      %v1706 = vsub.f32 %v1446, %v1666
      %v1707 = vsub.f32 %v1448, %v1703
      %v1708 = vsub.f32 %v1452, %v1666
      %v1709 = vsub.f32 %v1454, %v1703
      %v1710 = vsub.f32 %v1458, %v1666
      %v1711 = vsub.f32 %v1460, %v1703
      %v1712 = vsub.f32 %v1464, %v1666
      %v1713 = vsub.f32 %v1466, %v1703
      %v1714 = vsub.f32 %v1470, %v1666
      %v1715 = vsub.f32 %v1472, %v1703
      %v1716 = vsub.f32 %v1476, %v1666
      %v1717 = vsub.f32 %v1478, %v1703
      %v1718 = vsub.f32 %v1482, %v1666
      %v1719 = vsub.f32 %v1484, %v1703
      %v1720 = vsub.f32 %v1488, %v1666
      %v1721 = vsub.f32 %v1490, %v1703
      %v1722 = vsub.f32 %v1494, %v1666
      %v1723 = vsub.f32 %v1496, %v1703
      %v1724 = vsub.f32 %v1500, %v1666
      %v1725 = vsub.f32 %v1502, %v1703
      %v1726 = vsub.f32 %v1506, %v1666
      %v1727 = vsub.f32 %v1508, %v1703
      %v1728 = vsub.f32 %v1512, %v1666
      %v1729 = vsub.f32 %v1514, %v1703
      %v1730 = vsub.f32 %v1518, %v1666
      %v1731 = vsub.f32 %v1520, %v1703
      %v1732 = vsub.f32 %v1524, %v1666
      %v1733 = vsub.f32 %v1526, %v1703
      %v1734 = vsub.f32 %v1530, %v1666
      %v1735 = vsub.f32 %v1532, %v1703
      %v1736 = vsub.f32 %v1536, %v1666
      %v1737 = vsub.f32 %v1538, %v1703
      %v1738 = vsub.f32 %v1542, %v1666
      %v1739 = vsub.f32 %v1544, %v1703
      %v1740 = vsub.f32 %v1548, %v1666
      %v1741 = vsub.f32 %v1550, %v1703
      %v1742 = vsub.f32 %v1554, %v1666
      %v1743 = vsub.f32 %v1556, %v1703
      %v1744 = vsub.f32 %v1560, %v1666
      %v1745 = vsub.f32 %v1562, %v1703
      %v1746 = vsub.f32 %v1566, %v1666
      %v1747 = vsub.f32 %v1568, %v1703
      %v1748 = vsub.f32 %v1572, %v1666
      %v1749 = vsub.f32 %v1574, %v1703
      %v1750 = vsub.f32 %v1578, %v1666
      %v1751 = vsub.f32 %v1580, %v1703
      %v1752 = vsub.f32 %v1584, %v1666
      %v1753 = vsub.f32 %v1586, %v1703
      %v1754 = vsub.f32 %v1590, %v1666
      %v1755 = vsub.f32 %v1592, %v1703
      %v1756 = vsub.f32 %v1596, %v1666
      %v1757 = vsub.f32 %v1598, %v1703
      %v1758 = vsub.f32 %v1602, %v1666
      %v1759 = vsub.f32 %v1604, %v1703
      %v1760 = vsub.f32 %v1608, %v1666
      %v1761 = vsub.f32 %v1610, %v1703
      %v1762 = vsub.f32 %v1614, %v1666
      %v1763 = vsub.f32 %v1616, %v1703
      %v1764 = vsub.f32 %v1620, %v1666
      %v1765 = vsub.f32 %v1622, %v1703
      %v1766 = vsub.f32 %v1626, %v1666
      %v1767 = vsub.f32 %v1628, %v1703
      %v1768 = vmul.f32 %v1704, 1.442695
      %v1769 = vpow.pop %v1768
      %v1770 = vmul.f32 %v1705, 1.442695
      %v1771 = vpow.pop %v1770
      %v1772 = vmul.f32 %v1706, 1.442695
      %v1773 = vpow.pop %v1772
      %v1774 = vmul.f32 %v1707, 1.442695
      %v1775 = vpow.pop %v1774
      %v1776 = vmul.f32 %v1708, 1.442695
      %v1777 = vpow.pop %v1776
      %v1778 = vmul.f32 %v1709, 1.442695
      %v1779 = vpow.pop %v1778
      %v1780 = vmul.f32 %v1710, 1.442695
      %v1781 = vpow.pop %v1780
      %v1782 = vmul.f32 %v1711, 1.442695
      %v1783 = vpow.pop %v1782
      %v1784 = vmul.f32 %v1712, 1.442695
      %v1785 = vpow.pop %v1784
      %v1786 = vmul.f32 %v1713, 1.442695
      %v1787 = vpow.pop %v1786
      %v1788 = vmul.f32 %v1714, 1.442695
      %v1789 = vpow.pop %v1788
      %v1790 = vmul.f32 %v1715, 1.442695
      %v1791 = vpow.pop %v1790
      %v1792 = vmul.f32 %v1716, 1.442695
      %v1793 = vpow.pop %v1792
      %v1794 = vmul.f32 %v1717, 1.442695
      %v1795 = vpow.pop %v1794
      %v1796 = vmul.f32 %v1718, 1.442695
      %v1797 = vpow.pop %v1796
      %v1798 = vmul.f32 %v1719, 1.442695
      %v1799 = vpow.pop %v1798
      %v1800 = vmul.f32 %v1720, 1.442695
      %v1801 = vpow.pop %v1800
      %v1802 = vmul.f32 %v1721, 1.442695
      %v1803 = vpow.pop %v1802
      %v1804 = vmul.f32 %v1722, 1.442695
      %v1805 = vpow.pop %v1804
      %v1806 = vmul.f32 %v1723, 1.442695
      %v1807 = vpow.pop %v1806
      %v1808 = vmul.f32 %v1724, 1.442695
      %v1809 = vpow.pop %v1808
      %v1810 = vmul.f32 %v1725, 1.442695
      %v1811 = vpow.pop %v1810
      %v1812 = vmul.f32 %v1726, 1.442695
      %v1813 = vpow.pop %v1812
      %v1814 = vmul.f32 %v1727, 1.442695
      %v1815 = vpow.pop %v1814
      %v1816 = vmul.f32 %v1728, 1.442695
      %v1817 = vpow.pop %v1816
      %v1818 = vmul.f32 %v1729, 1.442695
      %v1819 = vpow.pop %v1818
      %v1820 = vmul.f32 %v1730, 1.442695
      %v1821 = vpow.pop %v1820
      %v1822 = vmul.f32 %v1731, 1.442695
      %v1823 = vpow.pop %v1822
      %v1824 = vmul.f32 %v1732, 1.442695
      %v1825 = vpow.pop %v1824
      %v1826 = vmul.f32 %v1733, 1.442695
      %v1827 = vpow.pop %v1826
      %v1828 = vmul.f32 %v1734, 1.442695
      %v1829 = vpow.pop %v1828
      %v1830 = vmul.f32 %v1735, 1.442695
      %v1831 = vpow.pop %v1830
      %v1832 = vmul.f32 %v1736, 1.442695
      %v1833 = vpow.pop %v1832
      %v1834 = vmul.f32 %v1737, 1.442695
      %v1835 = vpow.pop %v1834
      %v1836 = vmul.f32 %v1738, 1.442695
      %v1837 = vpow.pop %v1836
      %v1838 = vmul.f32 %v1739, 1.442695
      %v1839 = vpow.pop %v1838
      %v1840 = vmul.f32 %v1740, 1.442695
      %v1841 = vpow.pop %v1840
      %v1842 = vmul.f32 %v1741, 1.442695
      %v1843 = vpow.pop %v1842
      %v1844 = vmul.f32 %v1742, 1.442695
      %v1845 = vpow.pop %v1844
      %v1846 = vmul.f32 %v1743, 1.442695
      %v1847 = vpow.pop %v1846
      %v1848 = vmul.f32 %v1744, 1.442695
      %v1849 = vpow.pop %v1848
      %v1850 = vmul.f32 %v1745, 1.442695
      %v1851 = vpow.pop %v1850
      %v1852 = vmul.f32 %v1746, 1.442695
      %v1853 = vpow.pop %v1852
      %v1854 = vmul.f32 %v1747, 1.442695
      %v1855 = vpow.pop %v1854
      %v1856 = vmul.f32 %v1748, 1.442695
      %v1857 = vpow.pop %v1856
      %v1858 = vmul.f32 %v1749, 1.442695
      %v1859 = vpow.pop %v1858
      %v1860 = vmul.f32 %v1750, 1.442695
      %v1861 = vpow.pop %v1860
      %v1862 = vmul.f32 %v1751, 1.442695
      %v1863 = vpow.pop %v1862
      %v1864 = vmul.f32 %v1752, 1.442695
      %v1865 = vpow.pop %v1864
      %v1866 = vmul.f32 %v1753, 1.442695
      %v1867 = vpow.pop %v1866
      %v1868 = vmul.f32 %v1754, 1.442695
      %v1869 = vpow.pop %v1868
      %v1870 = vmul.f32 %v1755, 1.442695
      %v1871 = vpow.pop %v1870
      %v1872 = vmul.f32 %v1756, 1.442695
      %v1873 = vpow.pop %v1872
      %v1874 = vmul.f32 %v1757, 1.442695
      %v1875 = vpow.pop %v1874
      %v1876 = vmul.f32 %v1758, 1.442695
      %v1877 = vpow.pop %v1876
      %v1878 = vmul.f32 %v1759, 1.442695
      %v1879 = vpow.pop %v1878
      %v1880 = vmul.f32 %v1760, 1.442695
      %v1881 = vpow.pop %v1880
      %v1882 = vmul.f32 %v1761, 1.442695
      %v1883 = vpow.pop %v1882
      %v1884 = vmul.f32 %v1762, 1.442695
      %v1885 = vpow.pop %v1884
      %v1886 = vmul.f32 %v1763, 1.442695
      %v1887 = vpow.pop %v1886
      %v1888 = vmul.f32 %v1764, 1.442695
      %v1889 = vpow.pop %v1888
      %v1890 = vmul.f32 %v1765, 1.442695
      %v1891 = vpow.pop %v1890
      %v1892 = vmul.f32 %v1766, 1.442695
      %v1893 = vpow.pop %v1892
      %v1894 = vmul.f32 %v1767, 1.442695
      %v1895 = vpow.pop %v1894
      %v1896 = vadd.f32 %v1769, %v1773
      %v1897 = vadd.f32 %v1896, %v1777
      %v1898 = vadd.f32 %v1897, %v1781
      %v1899 = vadd.f32 %v1898, %v1785
      %v1900 = vadd.f32 %v1899, %v1789
      %v1901 = vadd.f32 %v1900, %v1793
      %v1902 = vadd.f32 %v1901, %v1797
      %v1903 = vadd.f32 %v1902, %v1801
      %v1904 = vadd.f32 %v1903, %v1805
      %v1905 = vadd.f32 %v1904, %v1809
      %v1906 = vadd.f32 %v1905, %v1813
      %v1907 = vadd.f32 %v1906, %v1817
      %v1908 = vadd.f32 %v1907, %v1821
      %v1909 = vadd.f32 %v1908, %v1825
      %v1910 = vadd.f32 %v1909, %v1829
      %v1911 = vadd.f32 %v1910, %v1833
      %v1912 = vadd.f32 %v1911, %v1837
      %v1913 = vadd.f32 %v1912, %v1841
      %v1914 = vadd.f32 %v1913, %v1845
      %v1915 = vadd.f32 %v1914, %v1849
      %v1916 = vadd.f32 %v1915, %v1853
      %v1917 = vadd.f32 %v1916, %v1857
      %v1918 = vadd.f32 %v1917, %v1861
      %v1919 = vadd.f32 %v1918, %v1865
      %v1920 = vadd.f32 %v1919, %v1869
      %v1921 = vadd.f32 %v1920, %v1873
      %v1922 = vadd.f32 %v1921, %v1877
      %v1923 = vadd.f32 %v1922, %v1881
      %v1924 = vadd.f32 %v1923, %v1885
      %v1925 = vadd.f32 %v1924, %v1889
      %v1926 = vadd.f32 %v1925, %v1893
      %v1927 = vrot.slane %v1926, 4
      %v1928 = vadd.f32 %v1926, %v1927
      %v1929 = vrot.slane %v1928, 2
      %v1930 = vadd.f32 %v1928, %v1929
      %v1931 = vrot.slane %v1930, 1
      %v1932 = vadd.f32 %v1930, %v1931
      %v1933 = vadd.f32 %v1771, %v1775
      %v1934 = vadd.f32 %v1933, %v1779
      %v1935 = vadd.f32 %v1934, %v1783
      %v1936 = vadd.f32 %v1935, %v1787
      %v1937 = vadd.f32 %v1936, %v1791
      %v1938 = vadd.f32 %v1937, %v1795
      %v1939 = vadd.f32 %v1938, %v1799
      %v1940 = vadd.f32 %v1939, %v1803
      %v1941 = vadd.f32 %v1940, %v1807
      %v1942 = vadd.f32 %v1941, %v1811
      %v1943 = vadd.f32 %v1942, %v1815
      %v1944 = vadd.f32 %v1943, %v1819
      %v1945 = vadd.f32 %v1944, %v1823
      %v1946 = vadd.f32 %v1945, %v1827
      %v1947 = vadd.f32 %v1946, %v1831
      %v1948 = vadd.f32 %v1947, %v1835
      %v1949 = vadd.f32 %v1948, %v1839
      %v1950 = vadd.f32 %v1949, %v1843
      %v1951 = vadd.f32 %v1950, %v1847
      %v1952 = vadd.f32 %v1951, %v1851
      %v1953 = vadd.f32 %v1952, %v1855
      %v1954 = vadd.f32 %v1953, %v1859
      %v1955 = vadd.f32 %v1954, %v1863
      %v1956 = vadd.f32 %v1955, %v1867
      %v1957 = vadd.f32 %v1956, %v1871
      %v1958 = vadd.f32 %v1957, %v1875
      %v1959 = vadd.f32 %v1958, %v1879
      %v1960 = vadd.f32 %v1959, %v1883
      %v1961 = vadd.f32 %v1960, %v1887
      %v1962 = vadd.f32 %v1961, %v1891
      %v1963 = vadd.f32 %v1962, %v1895
      %v1964 = vrot.slane %v1963, 4
      %v1965 = vadd.f32 %v1963, %v1964
      %v1966 = vrot.slane %v1965, 2
      %v1967 = vadd.f32 %v1965, %v1966
      %v1968 = vrot.slane %v1967, 1
      %v1969 = vadd.f32 %v1967, %v1968
      %1970 = vmatprep.subr.mxu0 %v1771
      %1971 = vmatpush1.msra.mxu0 %v1769
      %1972 = vmatprep.subr.mxu0 %v1775
      %1973 = vmatpush1.msra.mxu0 %v1773
      %1974 = vmatprep.subr.mxu0 %v1779
      %1975 = vmatpush1.msra.mxu0 %v1777
      %1976 = vmatprep.subr.mxu0 %v1783
      %1977 = vmatpush1.msra.mxu0 %v1781
      %1978 = vmatprep.subr.mxu0 %v1787
      %1979 = vmatpush1.msra.mxu0 %v1785
      %1980 = vmatprep.subr.mxu0 %v1791
      %1981 = vmatpush1.msra.mxu0 %v1789
      %1982 = vmatprep.subr.mxu0 %v1795
      %1983 = vmatpush1.msra.mxu0 %v1793
      %1984 = vmatprep.subr.mxu0 %v1799
      %1985 = vmatpush1.msra.mxu0 %v1797
      %1986 = vmatprep.subr.mxu0 %v1803
      %1987 = vmatpush1.msra.mxu0 %v1801
      %1988 = vmatprep.subr.mxu0 %v1807
      %1989 = vmatpush1.msra.mxu0 %v1805
      %1990 = vmatprep.subr.mxu0 %v1811
      %1991 = vmatpush1.msra.mxu0 %v1809
      %1992 = vmatprep.subr.mxu0 %v1815
      %1993 = vmatpush1.msra.mxu0 %v1813
      %1994 = vmatprep.subr.mxu0 %v1819
      %1995 = vmatpush1.msra.mxu0 %v1817
      %1996 = vmatprep.subr.mxu0 %v1823
      %1997 = vmatpush1.msra.mxu0 %v1821
      %1998 = vmatprep.subr.mxu0 %v1827
      %1999 = vmatpush1.msra.mxu0 %v1825
      %2000 = vmatprep.subr.mxu0 %v1831
      %2001 = vmatpush1.msra.mxu0 %v1829
      %2002 = vmatprep.subr.mxu0 %v1835
      %2003 = vmatpush1.msra.mxu0 %v1833
      %2004 = vmatprep.subr.mxu0 %v1839
      %2005 = vmatpush1.msra.mxu0 %v1837
      %2006 = vmatprep.subr.mxu0 %v1843
      %2007 = vmatpush1.msra.mxu0 %v1841
      %2008 = vmatprep.subr.mxu0 %v1847
      %2009 = vmatpush1.msra.mxu0 %v1845
      %2010 = vmatprep.subr.mxu0 %v1851
      %2011 = vmatpush1.msra.mxu0 %v1849
      %2012 = vmatprep.subr.mxu0 %v1855
      %2013 = vmatpush1.msra.mxu0 %v1853
      %2014 = vmatprep.subr.mxu0 %v1859
      %2015 = vmatpush1.msra.mxu0 %v1857
      %2016 = vmatprep.subr.mxu0 %v1863
      %2017 = vmatpush1.msra.mxu0 %v1861
      %2018 = vmatprep.subr.mxu0 %v1867
      %2019 = vmatpush1.msra.mxu0 %v1865
      %2020 = vmatprep.subr.mxu0 %v1871
      %2021 = vmatpush1.msra.mxu0 %v1869
      %2022 = vmatprep.subr.mxu0 %v1875
      %2023 = vmatpush1.msra.mxu0 %v1873
      %2024 = vmatprep.subr.mxu0 %v1879
      %2025 = vmatpush1.msra.mxu0 %v1877
      %2026 = vmatprep.subr.mxu0 %v1883
      %2027 = vmatpush1.msra.mxu0 %v1881
      %2028 = vmatprep.subr.mxu0 %v1887
      %2029 = vmatpush1.msra.mxu0 %v1885
      %2030 = vmatprep.subr.mxu0 %v1891
      %2031 = vmatpush1.msra.mxu0 %v1889
      %2032 = vmatprep.subr.mxu0 %v1895
      %2033 = vmatpush1.msra.mxu0 %v1893
      %2034 = vmatprep.mubr.f32.mxu0 %v336
      %2035 = vmatmul.mubr.f32.gmra.mrb[0].mxu0 %v334
      %v2036 = vpop.f32.mrb[0].mxu0
      %v2037 = vadd.f32 0.0, %v2036
      %v2038 = vpop.f32.mrb[0].mxu0
      %v2039 = vadd.f32 0.0, %v2038
      %2040 = vdwg.mxu0
      %v2041 = vrcp.pop %v1932
      %v2042 = vrcp.pop %v1969
      %v2043 = vmul.f32 %v2037, %v2041
      %v2044 = vmul.f32 %v2039, %v2042
      %2045 = vst [vmem:[%s170 + $0x10] sm:$0xff] %v2043
      %2046 = vst [vmem:[%s170 + $0x18] sm:$0xff] %v2044
      %v2047 = vld [vmem:[%s2 + $0x20] sm:$0xff]
      %v2048 = vld [vmem:[%s2 + $0x28] sm:$0xff]
      %2049 = vxpose.xlu0.b32.start [1/16] %v340, 128
      %2050 = vxpose.xlu0.b32.cont [2/16] %v346, 128
      %2051 = vxpose.xlu0.b32.cont [3/16] 0.0, 128
      %2052 = vxpose.xlu0.b32.cont [4/16] 0.0, 128
      %2053 = vxpose.xlu0.b32.cont [5/16] 0.0, 128
      %2054 = vxpose.xlu0.b32.cont [6/16] 0.0, 128
      %2055 = vxpose.xlu0.b32.cont [7/16] 0.0, 128
      %2056 = vxpose.xlu0.b32.cont [8/16] 0.0, 128
      %2057 = vxpose.xlu0.b32.cont [9/16] 0.0, 128
      %2058 = vxpose.xlu0.b32.cont [10/16] 0.0, 128
      %2059 = vxpose.xlu0.b32.cont [11/16] 0.0, 128
      %2060 = vxpose.xlu0.b32.cont [12/16] 0.0, 128
      %2061 = vxpose.xlu0.b32.cont [13/16] 0.0, 128
      %2062 = vxpose.xlu0.b32.cont [14/16] 0.0, 128
      %2063 = vxpose.xlu0.b32.cont [15/16] 0.0, 128
      %2064 = vxpose.xlu0.b32.end [16/16] 0.0, 128
      %v2065 = vpop.trf.xlu0
      %v2066 = vpop.trf.xlu0
      %v2067 = vpop.trf.xlu0
      %v2068 = vpop.trf.xlu0
      %v2069 = vpop.trf.xlu0
      %v2070 = vpop.trf.xlu0
      %v2071 = vpop.trf.xlu0
      %v2072 = vpop.trf.xlu0
      %v2073 = vpop.trf.xlu0
      %v2074 = vpop.trf.xlu0
      %v2075 = vpop.trf.xlu0
      %v2076 = vpop.trf.xlu0
      %v2077 = vpop.trf.xlu0
      %v2078 = vpop.trf.xlu0
      %v2079 = vpop.trf.xlu0
      %v2080 = vpop.trf.xlu0
      %2081 = vxpose.xlu0.b32.start [1/16] %v342, 128
      %2082 = vxpose.xlu0.b32.cont [2/16] %v348, 128
      %2083 = vxpose.xlu0.b32.cont [3/16] 0.0, 128
      %2084 = vxpose.xlu0.b32.cont [4/16] 0.0, 128
      %2085 = vxpose.xlu0.b32.cont [5/16] 0.0, 128
      %2086 = vxpose.xlu0.b32.cont [6/16] 0.0, 128
      %2087 = vxpose.xlu0.b32.cont [7/16] 0.0, 128
      %2088 = vxpose.xlu0.b32.cont [8/16] 0.0, 128
      %2089 = vxpose.xlu0.b32.cont [9/16] 0.0, 128
      %2090 = vxpose.xlu0.b32.cont [10/16] 0.0, 128
      %2091 = vxpose.xlu0.b32.cont [11/16] 0.0, 128
      %2092 = vxpose.xlu0.b32.cont [12/16] 0.0, 128
      %2093 = vxpose.xlu0.b32.cont [13/16] 0.0, 128
      %2094 = vxpose.xlu0.b32.cont [14/16] 0.0, 128
      %2095 = vxpose.xlu0.b32.cont [15/16] 0.0, 128
      %2096 = vxpose.xlu0.b32.end [16/16] 0.0, 128
      %v2097 = vpop.trf.xlu0
      %v2098 = vpop.trf.xlu0
      %v2099 = vpop.trf.xlu0
      %v2100 = vpop.trf.xlu0
      %v2101 = vpop.trf.xlu0
      %v2102 = vpop.trf.xlu0
      %v2103 = vpop.trf.xlu0
      %v2104 = vpop.trf.xlu0
      %v2105 = vpop.trf.xlu0
      %v2106 = vpop.trf.xlu0
      %v2107 = vpop.trf.xlu0
      %v2108 = vpop.trf.xlu0
      %v2109 = vpop.trf.xlu0
      %v2110 = vpop.trf.xlu0
      %v2111 = vpop.trf.xlu0
      %v2112 = vpop.trf.xlu0
      %v2114 = vsel %vm440, %v2065, 0
      %v2117 = vsel %vm440, %v2066, 0
      %v2120 = vsel %vm440, %v2067, 0
      %v2123 = vsel %vm440, %v2068, 0
      %v2126 = vsel %vm440, %v2069, 0
      %v2129 = vsel %vm440, %v2070, 0
      %v2132 = vsel %vm440, %v2071, 0
      %v2135 = vsel %vm440, %v2072, 0
      %v2138 = vsel %vm440, %v2073, 0
      %v2141 = vsel %vm440, %v2074, 0
      %v2144 = vsel %vm440, %v2075, 0
      %v2147 = vsel %vm440, %v2076, 0
      %v2150 = vsel %vm440, %v2077, 0
      %v2153 = vsel %vm440, %v2078, 0
      %v2156 = vsel %vm440, %v2079, 0
      %v2159 = vsel %vm440, %v2080, 0
      %v2162 = vsel %vm440, %v2097, 0
      %v2165 = vsel %vm440, %v2098, 0
      %v2168 = vsel %vm440, %v2099, 0
      %v2171 = vsel %vm440, %v2100, 0
      %v2174 = vsel %vm440, %v2101, 0
      %v2177 = vsel %vm440, %v2102, 0
      %v2180 = vsel %vm440, %v2103, 0
      %v2183 = vsel %vm440, %v2104, 0
      %v2186 = vsel %vm440, %v2105, 0
      %v2189 = vsel %vm440, %v2106, 0
      %v2192 = vsel %vm440, %v2107, 0
      %v2195 = vsel %vm440, %v2108, 0
      %v2198 = vsel %vm440, %v2109, 0
      %v2201 = vsel %vm440, %v2110, 0
      %v2204 = vsel %vm440, %v2111, 0
      %v2207 = vsel %vm440, %v2112, 0
      %2209 = vmatprep.subr.mxu0 %v348
      %2210 = vmatpush1.msra.mxu0 %v346
      %2211 = vmatprep.subr.mxu0 %v2048
      %2212 = vmatpush1.msra.mxu0 %v2047
      %2213 = vmatprep.subr.mxu0 0.0
      %2214 = vmatpush1.msra.mxu0 0.0
      %2215 = vmatprep.subr.mxu0 0.0
      %2216 = vmatpush1.msra.mxu0 0.0
      %2217 = vmatprep.subr.mxu0 0.0
      %2218 = vmatpush1.msra.mxu0 0.0
      %2219 = vmatprep.subr.mxu0 0.0
      %2220 = vmatpush1.msra.mxu0 0.0
      %2221 = vmatprep.subr.mxu0 0.0
      %2222 = vmatpush1.msra.mxu0 0.0
      %2223 = vmatprep.subr.mxu0 0.0
      %2224 = vmatpush1.msra.mxu0 0.0
      %2225 = vmatprep.subr.mxu0 0.0
      %2226 = vmatpush1.msra.mxu0 0.0
      %2227 = vmatprep.subr.mxu0 0.0
      %2228 = vmatpush1.msra.mxu0 0.0
      %2229 = vmatprep.subr.mxu0 0.0
      %2230 = vmatpush1.msra.mxu0 0.0
      %2231 = vmatprep.subr.mxu0 0.0
      %2232 = vmatpush1.msra.mxu0 0.0
      %2233 = vmatprep.subr.mxu0 0.0
      %2234 = vmatpush1.msra.mxu0 0.0
      %2235 = vmatprep.subr.mxu0 0.0
      %2236 = vmatpush1.msra.mxu0 0.0
      %2237 = vmatprep.subr.mxu0 0.0
      %2238 = vmatpush1.msra.mxu0 0.0
      %2239 = vmatprep.subr.mxu0 0.0
      %2240 = vmatpush1.msra.mxu0 0.0
      %2241 = vmatprep.subr.mxu0 0.0
      %2242 = vmatpush1.msra.mxu0 0.0
      %2243 = vmatprep.subr.mxu0 0.0
      %2244 = vmatpush1.msra.mxu0 0.0
      %2245 = vmatprep.subr.mxu0 0.0
      %2246 = vmatpush1.msra.mxu0 0.0
      %2247 = vmatprep.subr.mxu0 0.0
      %2248 = vmatpush1.msra.mxu0 0.0
      %2249 = vmatprep.subr.mxu0 0.0
      %2250 = vmatpush1.msra.mxu0 0.0
      %2251 = vmatprep.subr.mxu0 0.0
      %2252 = vmatpush1.msra.mxu0 0.0
      %2253 = vmatprep.subr.mxu0 0.0
      %2254 = vmatpush1.msra.mxu0 0.0
      %2255 = vmatprep.subr.mxu0 0.0
      %2256 = vmatpush1.msra.mxu0 0.0
      %2257 = vmatprep.subr.mxu0 0.0
      %2258 = vmatpush1.msra.mxu0 0.0
      %2259 = vmatprep.subr.mxu0 0.0
      %2260 = vmatpush1.msra.mxu0 0.0
      %2261 = vmatprep.subr.mxu0 0.0
      %2262 = vmatpush1.msra.mxu0 0.0
      %2263 = vmatprep.subr.mxu0 0.0
      %2264 = vmatpush1.msra.mxu0 0.0
      %2265 = vmatprep.subr.mxu0 0.0
      %2266 = vmatpush1.msra.mxu0 0.0
      %2267 = vmatprep.subr.mxu0 0.0
      %2268 = vmatpush1.msra.mxu0 0.0
      %2269 = vmatprep.subr.mxu0 0.0
      %2270 = vmatpush1.msra.mxu0 0.0
      %2271 = vmatprep.subr.mxu0 0.0
      %2272 = vmatpush1.msra.mxu0 0.0
      %2273 = vmatprep.mubr.f32.mxu0 0.0
      %2274 = vmatmul.mubr.f32.gmra.mrb[0].mxu0 %v2114
      %v2275 = vpop.f32.mrb[0].mxu0
      %v2276 = vadd.f32 0.0, %v2275
      %v2277 = vpop.f32.mrb[0].mxu0
      %v2278 = vadd.f32 0.0, %v2277
      %2279 = vmatprep.mubr.f32.mxu0 0.0
      %2280 = vmatmul.mubr.f32.gmra.mrb[0].mxu0 %v2117
      %v2281 = vpop.f32.mrb[0].mxu0
      %v2282 = vadd.f32 0.0, %v2281
      %v2283 = vpop.f32.mrb[0].mxu0
      %v2284 = vadd.f32 0.0, %v2283
      %2285 = vmatprep.mubr.f32.mxu0 0.0
      %2286 = vmatmul.mubr.f32.gmra.mrb[0].mxu0 %v2120
      %v2287 = vpop.f32.mrb[0].mxu0
      %v2288 = vadd.f32 0.0, %v2287
      %v2289 = vpop.f32.mrb[0].mxu0
      %v2290 = vadd.f32 0.0, %v2289
      %2291 = vmatprep.mubr.f32.mxu0 0.0
      %2292 = vmatmul.mubr.f32.gmra.mrb[0].mxu0 %v2123
      %v2293 = vpop.f32.mrb[0].mxu0
      %v2294 = vadd.f32 0.0, %v2293
      %v2295 = vpop.f32.mrb[0].mxu0
      %v2296 = vadd.f32 0.0, %v2295
      %2297 = vmatprep.mubr.f32.mxu0 0.0
      %2298 = vmatmul.mubr.f32.gmra.mrb[0].mxu0 %v2126
      %v2299 = vpop.f32.mrb[0].mxu0
      %v2300 = vadd.f32 0.0, %v2299
      %v2301 = vpop.f32.mrb[0].mxu0
      %v2302 = vadd.f32 0.0, %v2301
      %2303 = vmatprep.mubr.f32.mxu0 0.0
      %2304 = vmatmul.mubr.f32.gmra.mrb[0].mxu0 %v2129
      %v2305 = vpop.f32.mrb[0].mxu0
      %v2306 = vadd.f32 0.0, %v2305
      %v2307 = vpop.f32.mrb[0].mxu0
      %v2308 = vadd.f32 0.0, %v2307
      %2309 = vmatprep.mubr.f32.mxu0 0.0
      %2310 = vmatmul.mubr.f32.gmra.mrb[0].mxu0 %v2132
      %v2311 = vpop.f32.mrb[0].mxu0
      %v2312 = vadd.f32 0.0, %v2311
      %v2313 = vpop.f32.mrb[0].mxu0
      %v2314 = vadd.f32 0.0, %v2313
      %2315 = vmatprep.mubr.f32.mxu0 0.0
      %2316 = vmatmul.mubr.f32.gmra.mrb[0].mxu0 %v2135
      %v2317 = vpop.f32.mrb[0].mxu0
      %v2318 = vadd.f32 0.0, %v2317
      %v2319 = vpop.f32.mrb[0].mxu0
      %v2320 = vadd.f32 0.0, %v2319
      %2321 = vmatprep.mubr.f32.mxu0 0.0
      %2322 = vmatmul.mubr.f32.gmra.mrb[0].mxu0 %v2138
      %v2323 = vpop.f32.mrb[0].mxu0
      %v2324 = vadd.f32 0.0, %v2323
      %v2325 = vpop.f32.mrb[0].mxu0
      %v2326 = vadd.f32 0.0, %v2325
      %2327 = vmatprep.mubr.f32.mxu0 0.0
      %2328 = vmatmul.mubr.f32.gmra.mrb[0].mxu0 %v2141
      %v2329 = vpop.f32.mrb[0].mxu0
      %v2330 = vadd.f32 0.0, %v2329
      %v2331 = vpop.f32.mrb[0].mxu0
      %v2332 = vadd.f32 0.0, %v2331
      %2333 = vmatprep.mubr.f32.mxu0 0.0
      %2334 = vmatmul.mubr.f32.gmra.mrb[0].mxu0 %v2144
      %v2335 = vpop.f32.mrb[0].mxu0
      %v2336 = vadd.f32 0.0, %v2335
      %v2337 = vpop.f32.mrb[0].mxu0
      %v2338 = vadd.f32 0.0, %v2337
      %2339 = vmatprep.mubr.f32.mxu0 0.0
      %2340 = vmatmul.mubr.f32.gmra.mrb[0].mxu0 %v2147
      %v2341 = vpop.f32.mrb[0].mxu0
      %v2342 = vadd.f32 0.0, %v2341
      %v2343 = vpop.f32.mrb[0].mxu0
      %v2344 = vadd.f32 0.0, %v2343
      %2345 = vmatprep.mubr.f32.mxu0 0.0
      %2346 = vmatmul.mubr.f32.gmra.mrb[0].mxu0 %v2150
      %v2347 = vpop.f32.mrb[0].mxu0
      %v2348 = vadd.f32 0.0, %v2347
      %v2349 = vpop.f32.mrb[0].mxu0
      %v2350 = vadd.f32 0.0, %v2349
      %2351 = vmatprep.mubr.f32.mxu0 0.0
      %2352 = vmatmul.mubr.f32.gmra.mrb[0].mxu0 %v2153
      %v2353 = vpop.f32.mrb[0].mxu0
      %v2354 = vadd.f32 0.0, %v2353
      %v2355 = vpop.f32.mrb[0].mxu0
      %v2356 = vadd.f32 0.0, %v2355
      %2357 = vmatprep.mubr.f32.mxu0 0.0
      %2358 = vmatmul.mubr.f32.gmra.mrb[0].mxu0 %v2156
      %v2359 = vpop.f32.mrb[0].mxu0
      %v2360 = vadd.f32 0.0, %v2359
      %v2361 = vpop.f32.mrb[0].mxu0
      %v2362 = vadd.f32 0.0, %v2361
      %2363 = vmatprep.mubr.f32.mxu0 0.0
      %2364 = vmatmul.mubr.f32.gmra.mrb[0].mxu0 %v2159
      %v2365 = vpop.f32.mrb[0].mxu0
      %v2366 = vadd.f32 0.0, %v2365
      %v2367 = vpop.f32.mrb[0].mxu0
      %v2368 = vadd.f32 0.0, %v2367
      %2369 = vmatprep.mubr.f32.mxu0 0.0
      %2370 = vmatmul.mubr.f32.gmra.mrb[0].mxu0 %v2162
      %v2371 = vpop.f32.mrb[0].mxu0
      %v2372 = vadd.f32 0.0, %v2371
      %v2373 = vpop.f32.mrb[0].mxu0
      %v2374 = vadd.f32 0.0, %v2373
      %2375 = vmatprep.mubr.f32.mxu0 0.0
      %2376 = vmatmul.mubr.f32.gmra.mrb[0].mxu0 %v2165
      %v2377 = vpop.f32.mrb[0].mxu0
      %v2378 = vadd.f32 0.0, %v2377
      %v2379 = vpop.f32.mrb[0].mxu0
      %v2380 = vadd.f32 0.0, %v2379
      %2381 = vmatprep.mubr.f32.mxu0 0.0
      %2382 = vmatmul.mubr.f32.gmra.mrb[0].mxu0 %v2168
      %v2383 = vpop.f32.mrb[0].mxu0
      %v2384 = vadd.f32 0.0, %v2383
      %v2385 = vpop.f32.mrb[0].mxu0
      %v2386 = vadd.f32 0.0, %v2385
      %2387 = vmatprep.mubr.f32.mxu0 0.0
      %2388 = vmatmul.mubr.f32.gmra.mrb[0].mxu0 %v2171
      %v2389 = vpop.f32.mrb[0].mxu0
      %v2390 = vadd.f32 0.0, %v2389
      %v2391 = vpop.f32.mrb[0].mxu0
      %v2392 = vadd.f32 0.0, %v2391
      %2393 = vmatprep.mubr.f32.mxu0 0.0
      %2394 = vmatmul.mubr.f32.gmra.mrb[0].mxu0 %v2174
      %v2395 = vpop.f32.mrb[0].mxu0
      %v2396 = vadd.f32 0.0, %v2395
      %v2397 = vpop.f32.mrb[0].mxu0
      %v2398 = vadd.f32 0.0, %v2397
      %2399 = vmatprep.mubr.f32.mxu0 0.0
      %2400 = vmatmul.mubr.f32.gmra.mrb[0].mxu0 %v2177
      %v2401 = vpop.f32.mrb[0].mxu0
      %v2402 = vadd.f32 0.0, %v2401
      %v2403 = vpop.f32.mrb[0].mxu0
      %v2404 = vadd.f32 0.0, %v2403
      %2405 = vmatprep.mubr.f32.mxu0 0.0
      %2406 = vmatmul.mubr.f32.gmra.mrb[0].mxu0 %v2180
      %v2407 = vpop.f32.mrb[0].mxu0
      %v2408 = vadd.f32 0.0, %v2407
      %v2409 = vpop.f32.mrb[0].mxu0
      %v2410 = vadd.f32 0.0, %v2409
      %2411 = vmatprep.mubr.f32.mxu0 0.0
      %2412 = vmatmul.mubr.f32.gmra.mrb[0].mxu0 %v2183
      %v2413 = vpop.f32.mrb[0].mxu0
      %v2414 = vadd.f32 0.0, %v2413
      %v2415 = vpop.f32.mrb[0].mxu0
      %v2416 = vadd.f32 0.0, %v2415
      %2417 = vmatprep.mubr.f32.mxu0 0.0
      %2418 = vmatmul.mubr.f32.gmra.mrb[0].mxu0 %v2186
      %v2419 = vpop.f32.mrb[0].mxu0
      %v2420 = vadd.f32 0.0, %v2419
      %v2421 = vpop.f32.mrb[0].mxu0
      %v2422 = vadd.f32 0.0, %v2421
      %2423 = vmatprep.mubr.f32.mxu0 0.0
      %2424 = vmatmul.mubr.f32.gmra.mrb[0].mxu0 %v2189
      %v2425 = vpop.f32.mrb[0].mxu0
      %v2426 = vadd.f32 0.0, %v2425
      %v2427 = vpop.f32.mrb[0].mxu0
      %v2428 = vadd.f32 0.0, %v2427
      %2429 = vmatprep.mubr.f32.mxu0 0.0
      %2430 = vmatmul.mubr.f32.gmra.mrb[0].mxu0 %v2192
      %v2431 = vpop.f32.mrb[0].mxu0
      %v2432 = vadd.f32 0.0, %v2431
      %v2433 = vpop.f32.mrb[0].mxu0
      %v2434 = vadd.f32 0.0, %v2433
      %2435 = vmatprep.mubr.f32.mxu0 0.0
      %2436 = vmatmul.mubr.f32.gmra.mrb[0].mxu0 %v2195
      %v2437 = vpop.f32.mrb[0].mxu0
      %v2438 = vadd.f32 0.0, %v2437
      %v2439 = vpop.f32.mrb[0].mxu0
      %v2440 = vadd.f32 0.0, %v2439
      %2441 = vmatprep.mubr.f32.mxu0 0.0
      %2442 = vmatmul.mubr.f32.gmra.mrb[0].mxu0 %v2198
      %v2443 = vpop.f32.mrb[0].mxu0
      %v2444 = vadd.f32 0.0, %v2443
      %v2445 = vpop.f32.mrb[0].mxu0
      %v2446 = vadd.f32 0.0, %v2445
      %2447 = vmatprep.mubr.f32.mxu0 0.0
      %2448 = vmatmul.mubr.f32.gmra.mrb[0].mxu0 %v2201
      %v2449 = vpop.f32.mrb[0].mxu0
      %v2450 = vadd.f32 0.0, %v2449
      %v2451 = vpop.f32.mrb[0].mxu0
      %v2452 = vadd.f32 0.0, %v2451
      %2453 = vmatprep.mubr.f32.mxu0 0.0
      %2454 = vmatmul.mubr.f32.gmra.mrb[0].mxu0 %v2204
      %v2455 = vpop.f32.mrb[0].mxu0
      %v2456 = vadd.f32 0.0, %v2455
      %v2457 = vpop.f32.mrb[0].mxu0
      %v2458 = vadd.f32 0.0, %v2457
      %2459 = vmatprep.mubr.f32.mxu0 0.0
      %2460 = vmatmul.mubr.f32.gmra.mrb[0].mxu0 %v2207
      %v2461 = vpop.f32.mrb[0].mxu0
      %v2462 = vadd.f32 0.0, %v2461
      %v2463 = vpop.f32.mrb[0].mxu0
      %v2464 = vadd.f32 0.0, %v2463
      %2465 = vdwg.mxu0
      %v2466 = vmax.f32 %v2276, %v2288
      %v2467 = vmax.f32 %v2282, %v2294
      %v2468 = vmax.f32 %v2466, %v2300
      %v2469 = vmax.f32 %v2467, %v2306
      %v2470 = vmax.f32 %v2468, %v2312
      %v2471 = vmax.f32 %v2469, %v2318
      %v2472 = vmax.f32 %v2470, %v2324
      %v2473 = vmax.f32 %v2471, %v2330
      %v2474 = vmax.f32 %v2472, %v2336
      %v2475 = vmax.f32 %v2473, %v2342
      %v2476 = vmax.f32 %v2474, %v2348
      %v2477 = vmax.f32 %v2475, %v2354
      %v2478 = vmax.f32 %v2476, %v2360
      %v2479 = vmax.f32 %v2477, %v2366
      %v2480 = vmax.f32 %v2478, %v2372
      %v2481 = vmax.f32 %v2479, %v2378
      %v2482 = vmax.f32 %v2480, %v2384
      %v2483 = vmax.f32 %v2481, %v2390
      %v2484 = vmax.f32 %v2482, %v2396
      %v2485 = vmax.f32 %v2483, %v2402
      %v2486 = vmax.f32 %v2484, %v2408
      %v2487 = vmax.f32 %v2485, %v2414
      %v2488 = vmax.f32 %v2486, %v2420
      %v2489 = vmax.f32 %v2487, %v2426
      %v2490 = vmax.f32 %v2488, %v2432
      %v2491 = vmax.f32 %v2489, %v2438
      %v2492 = vmax.f32 %v2490, %v2444
      %v2493 = vmax.f32 %v2491, %v2450
      %v2494 = vmax.f32 %v2492, %v2456
      %v2495 = vmax.f32 %v2493, %v2462
      %v2496 = vmax.f32 %v2494, %v2495
      %v2497 = vrot.slane %v2496, 4
      %v2498 = vmax.f32 %v2496, %v2497
      %v2499 = vrot.slane %v2498, 2
      %v2500 = vmax.f32 %v2498, %v2499
      %v2501 = vrot.slane %v2500, 1
      %v2502 = vmax.f32 %v2500, %v2501
      %v2503 = vmax.f32 %v2278, %v2290
      %v2504 = vmax.f32 %v2284, %v2296
      %v2505 = vmax.f32 %v2503, %v2302
      %v2506 = vmax.f32 %v2504, %v2308
      %v2507 = vmax.f32 %v2505, %v2314
      %v2508 = vmax.f32 %v2506, %v2320
      %v2509 = vmax.f32 %v2507, %v2326
      %v2510 = vmax.f32 %v2508, %v2332
      %v2511 = vmax.f32 %v2509, %v2338
      %v2512 = vmax.f32 %v2510, %v2344
      %v2513 = vmax.f32 %v2511, %v2350
      %v2514 = vmax.f32 %v2512, %v2356
      %v2515 = vmax.f32 %v2513, %v2362
      %v2516 = vmax.f32 %v2514, %v2368
      %v2517 = vmax.f32 %v2515, %v2374
      %v2518 = vmax.f32 %v2516, %v2380
      %v2519 = vmax.f32 %v2517, %v2386
      %v2520 = vmax.f32 %v2518, %v2392
      %v2521 = vmax.f32 %v2519, %v2398
      %v2522 = vmax.f32 %v2520, %v2404
      %v2523 = vmax.f32 %v2521, %v2410
      %v2524 = vmax.f32 %v2522, %v2416
      %v2525 = vmax.f32 %v2523, %v2422
      %v2526 = vmax.f32 %v2524, %v2428
      %v2527 = vmax.f32 %v2525, %v2434
      %v2528 = vmax.f32 %v2526, %v2440
      %v2529 = vmax.f32 %v2527, %v2446
      %v2530 = vmax.f32 %v2528, %v2452
      %v2531 = vmax.f32 %v2529, %v2458
      %v2532 = vmax.f32 %v2530, %v2464
      %v2533 = vmax.f32 %v2531, %v2532
      %v2534 = vrot.slane %v2533, 4
      %v2535 = vmax.f32 %v2533, %v2534
      %v2536 = vrot.slane %v2535, 2
      %v2537 = vmax.f32 %v2535, %v2536
      %v2538 = vrot.slane %v2537, 1
      %v2539 = vmax.f32 %v2537, %v2538
      %v2540 = vsub.f32 %v2276, %v2502
      %v2541 = vsub.f32 %v2278, %v2539
      %v2542 = vsub.f32 %v2282, %v2502
      %v2543 = vsub.f32 %v2284, %v2539
      %v2544 = vsub.f32 %v2288, %v2502
      %v2545 = vsub.f32 %v2290, %v2539
      %v2546 = vsub.f32 %v2294, %v2502
      %v2547 = vsub.f32 %v2296, %v2539
      %v2548 = vsub.f32 %v2300, %v2502
      %v2549 = vsub.f32 %v2302, %v2539
      %v2550 = vsub.f32 %v2306, %v2502
      %v2551 = vsub.f32 %v2308, %v2539
      %v2552 = vsub.f32 %v2312, %v2502
      %v2553 = vsub.f32 %v2314, %v2539
      %v2554 = vsub.f32 %v2318, %v2502
      %v2555 = vsub.f32 %v2320, %v2539
      %v2556 = vsub.f32 %v2324, %v2502
      %v2557 = vsub.f32 %v2326, %v2539
      %v2558 = vsub.f32 %v2330, %v2502
      %v2559 = vsub.f32 %v2332, %v2539
      %v2560 = vsub.f32 %v2336, %v2502
      %v2561 = vsub.f32 %v2338, %v2539
      %v2562 = vsub.f32 %v2342, %v2502
      %v2563 = vsub.f32 %v2344, %v2539
      %v2564 = vsub.f32 %v2348, %v2502
      %v2565 = vsub.f32 %v2350, %v2539
      %v2566 = vsub.f32 %v2354, %v2502
      %v2567 = vsub.f32 %v2356, %v2539
      %v2568 = vsub.f32 %v2360, %v2502
      %v2569 = vsub.f32 %v2362, %v2539
      %v2570 = vsub.f32 %v2366, %v2502
      %v2571 = vsub.f32 %v2368, %v2539
      %v2572 = vsub.f32 %v2372, %v2502
      %v2573 = vsub.f32 %v2374, %v2539
      %v2574 = vsub.f32 %v2378, %v2502
      %v2575 = vsub.f32 %v2380, %v2539
      %v2576 = vsub.f32 %v2384, %v2502
      %v2577 = vsub.f32 %v2386, %v2539
      %v2578 = vsub.f32 %v2390, %v2502
      %v2579 = vsub.f32 %v2392, %v2539
      %v2580 = vsub.f32 %v2396, %v2502
      %v2581 = vsub.f32 %v2398, %v2539
      %v2582 = vsub.f32 %v2402, %v2502
      %v2583 = vsub.f32 %v2404, %v2539
      %v2584 = vsub.f32 %v2408, %v2502
      %v2585 = vsub.f32 %v2410, %v2539
      %v2586 = vsub.f32 %v2414, %v2502
      %v2587 = vsub.f32 %v2416, %v2539
      %v2588 = vsub.f32 %v2420, %v2502
      %v2589 = vsub.f32 %v2422, %v2539
      %v2590 = vsub.f32 %v2426, %v2502
      %v2591 = vsub.f32 %v2428, %v2539
      %v2592 = vsub.f32 %v2432, %v2502
      %v2593 = vsub.f32 %v2434, %v2539
      %v2594 = vsub.f32 %v2438, %v2502
      %v2595 = vsub.f32 %v2440, %v2539
      %v2596 = vsub.f32 %v2444, %v2502
      %v2597 = vsub.f32 %v2446, %v2539
      %v2598 = vsub.f32 %v2450, %v2502
      %v2599 = vsub.f32 %v2452, %v2539
      %v2600 = vsub.f32 %v2456, %v2502
      %v2601 = vsub.f32 %v2458, %v2539
      %v2602 = vsub.f32 %v2462, %v2502
      %v2603 = vsub.f32 %v2464, %v2539
      %v2604 = vmul.f32 %v2540, 1.442695
      %v2605 = vpow.pop %v2604
      %v2606 = vmul.f32 %v2541, 1.442695
      %v2607 = vpow.pop %v2606
      %v2608 = vmul.f32 %v2542, 1.442695
      %v2609 = vpow.pop %v2608
      %v2610 = vmul.f32 %v2543, 1.442695
      %v2611 = vpow.pop %v2610
      %v2612 = vmul.f32 %v2544, 1.442695
      %v2613 = vpow.pop %v2612
      %v2614 = vmul.f32 %v2545, 1.442695
      %v2615 = vpow.pop %v2614
      %v2616 = vmul.f32 %v2546, 1.442695
      %v2617 = vpow.pop %v2616
      %v2618 = vmul.f32 %v2547, 1.442695
      %v2619 = vpow.pop %v2618
      %v2620 = vmul.f32 %v2548, 1.442695
      %v2621 = vpow.pop %v2620
      %v2622 = vmul.f32 %v2549, 1.442695
      %v2623 = vpow.pop %v2622
      %v2624 = vmul.f32 %v2550, 1.442695
      %v2625 = vpow.pop %v2624
      %v2626 = vmul.f32 %v2551, 1.442695
      %v2627 = vpow.pop %v2626
      %v2628 = vmul.f32 %v2552, 1.442695
      %v2629 = vpow.pop %v2628
      %v2630 = vmul.f32 %v2553, 1.442695
      %v2631 = vpow.pop %v2630
      %v2632 = vmul.f32 %v2554, 1.442695
      %v2633 = vpow.pop %v2632
      %v2634 = vmul.f32 %v2555, 1.442695
      %v2635 = vpow.pop %v2634
      %v2636 = vmul.f32 %v2556, 1.442695
      %v2637 = vpow.pop %v2636
      %v2638 = vmul.f32 %v2557, 1.442695
      %v2639 = vpow.pop %v2638
      %v2640 = vmul.f32 %v2558, 1.442695
      %v2641 = vpow.pop %v2640
      %v2642 = vmul.f32 %v2559, 1.442695
      %v2643 = vpow.pop %v2642
      %v2644 = vmul.f32 %v2560, 1.442695
      %v2645 = vpow.pop %v2644
      %v2646 = vmul.f32 %v2561, 1.442695
      %v2647 = vpow.pop %v2646
      %v2648 = vmul.f32 %v2562, 1.442695
      %v2649 = vpow.pop %v2648
      %v2650 = vmul.f32 %v2563, 1.442695
      %v2651 = vpow.pop %v2650
      %v2652 = vmul.f32 %v2564, 1.442695
      %v2653 = vpow.pop %v2652
      %v2654 = vmul.f32 %v2565, 1.442695
      %v2655 = vpow.pop %v2654
      %v2656 = vmul.f32 %v2566, 1.442695
      %v2657 = vpow.pop %v2656
      %v2658 = vmul.f32 %v2567, 1.442695
      %v2659 = vpow.pop %v2658
      %v2660 = vmul.f32 %v2568, 1.442695
      %v2661 = vpow.pop %v2660
      %v2662 = vmul.f32 %v2569, 1.442695
      %v2663 = vpow.pop %v2662
      %v2664 = vmul.f32 %v2570, 1.442695
      %v2665 = vpow.pop %v2664
      %v2666 = vmul.f32 %v2571, 1.442695
      %v2667 = vpow.pop %v2666
      %v2668 = vmul.f32 %v2572, 1.442695
      %v2669 = vpow.pop %v2668
      %v2670 = vmul.f32 %v2573, 1.442695
      %v2671 = vpow.pop %v2670
      %v2672 = vmul.f32 %v2574, 1.442695
      %v2673 = vpow.pop %v2672
      %v2674 = vmul.f32 %v2575, 1.442695
      %v2675 = vpow.pop %v2674
      %v2676 = vmul.f32 %v2576, 1.442695
      %v2677 = vpow.pop %v2676
      %v2678 = vmul.f32 %v2577, 1.442695
      %v2679 = vpow.pop %v2678
      %v2680 = vmul.f32 %v2578, 1.442695
      %v2681 = vpow.pop %v2680
      %v2682 = vmul.f32 %v2579, 1.442695
      %v2683 = vpow.pop %v2682
      %v2684 = vmul.f32 %v2580, 1.442695
      %v2685 = vpow.pop %v2684
      %v2686 = vmul.f32 %v2581, 1.442695
      %v2687 = vpow.pop %v2686
      %v2688 = vmul.f32 %v2582, 1.442695
      %v2689 = vpow.pop %v2688
      %v2690 = vmul.f32 %v2583, 1.442695
      %v2691 = vpow.pop %v2690
      %v2692 = vmul.f32 %v2584, 1.442695
      %v2693 = vpow.pop %v2692
      %v2694 = vmul.f32 %v2585, 1.442695
      %v2695 = vpow.pop %v2694
      %v2696 = vmul.f32 %v2586, 1.442695
      %v2697 = vpow.pop %v2696
      %v2698 = vmul.f32 %v2587, 1.442695
      %v2699 = vpow.pop %v2698
      %v2700 = vmul.f32 %v2588, 1.442695
      %v2701 = vpow.pop %v2700
      %v2702 = vmul.f32 %v2589, 1.442695
      %v2703 = vpow.pop %v2702
      %v2704 = vmul.f32 %v2590, 1.442695
      %v2705 = vpow.pop %v2704
      %v2706 = vmul.f32 %v2591, 1.442695
      %v2707 = vpow.pop %v2706
      %v2708 = vmul.f32 %v2592, 1.442695
      %v2709 = vpow.pop %v2708
      %v2710 = vmul.f32 %v2593, 1.442695
      %v2711 = vpow.pop %v2710
      %v2712 = vmul.f32 %v2594, 1.442695
      %v2713 = vpow.pop %v2712
      %v2714 = vmul.f32 %v2595, 1.442695
      %v2715 = vpow.pop %v2714
      %v2716 = vmul.f32 %v2596, 1.442695
      %v2717 = vpow.pop %v2716
      %v2718 = vmul.f32 %v2597, 1.442695
      %v2719 = vpow.pop %v2718
      %v2720 = vmul.f32 %v2598, 1.442695
      %v2721 = vpow.pop %v2720
      %v2722 = vmul.f32 %v2599, 1.442695
      %v2723 = vpow.pop %v2722
      %v2724 = vmul.f32 %v2600, 1.442695
      %v2725 = vpow.pop %v2724
      %v2726 = vmul.f32 %v2601, 1.442695
      %v2727 = vpow.pop %v2726
      %v2728 = vmul.f32 %v2602, 1.442695
      %v2729 = vpow.pop %v2728
      %v2730 = vmul.f32 %v2603, 1.442695
      %v2731 = vpow.pop %v2730
      %v2732 = vadd.f32 %v2605, %v2609
      %v2733 = vadd.f32 %v2732, %v2613
      %v2734 = vadd.f32 %v2733, %v2617
      %v2735 = vadd.f32 %v2734, %v2621
      %v2736 = vadd.f32 %v2735, %v2625
      %v2737 = vadd.f32 %v2736, %v2629
      %v2738 = vadd.f32 %v2737, %v2633
      %v2739 = vadd.f32 %v2738, %v2637
      %v2740 = vadd.f32 %v2739, %v2641
      %v2741 = vadd.f32 %v2740, %v2645
      %v2742 = vadd.f32 %v2741, %v2649
      %v2743 = vadd.f32 %v2742, %v2653
      %v2744 = vadd.f32 %v2743, %v2657
      %v2745 = vadd.f32 %v2744, %v2661
      %v2746 = vadd.f32 %v2745, %v2665
      %v2747 = vadd.f32 %v2746, %v2669
      %v2748 = vadd.f32 %v2747, %v2673
      %v2749 = vadd.f32 %v2748, %v2677
      %v2750 = vadd.f32 %v2749, %v2681
      %v2751 = vadd.f32 %v2750, %v2685
      %v2752 = vadd.f32 %v2751, %v2689
      %v2753 = vadd.f32 %v2752, %v2693
      %v2754 = vadd.f32 %v2753, %v2697
      %v2755 = vadd.f32 %v2754, %v2701
      %v2756 = vadd.f32 %v2755, %v2705
      %v2757 = vadd.f32 %v2756, %v2709
      %v2758 = vadd.f32 %v2757, %v2713
      %v2759 = vadd.f32 %v2758, %v2717
      %v2760 = vadd.f32 %v2759, %v2721
      %v2761 = vadd.f32 %v2760, %v2725
      %v2762 = vadd.f32 %v2761, %v2729
      %v2763 = vrot.slane %v2762, 4
      %v2764 = vadd.f32 %v2762, %v2763
      %v2765 = vrot.slane %v2764, 2
      %v2766 = vadd.f32 %v2764, %v2765
      %v2767 = vrot.slane %v2766, 1
      %v2768 = vadd.f32 %v2766, %v2767
      %v2769 = vadd.f32 %v2607, %v2611
      %v2770 = vadd.f32 %v2769, %v2615
      %v2771 = vadd.f32 %v2770, %v2619
      %v2772 = vadd.f32 %v2771, %v2623
      %v2773 = vadd.f32 %v2772, %v2627
      %v2774 = vadd.f32 %v2773, %v2631
      %v2775 = vadd.f32 %v2774, %v2635
      %v2776 = vadd.f32 %v2775, %v2639
      %v2777 = vadd.f32 %v2776, %v2643
      %v2778 = vadd.f32 %v2777, %v2647
      %v2779 = vadd.f32 %v2778, %v2651
      %v2780 = vadd.f32 %v2779, %v2655
      %v2781 = vadd.f32 %v2780, %v2659
      %v2782 = vadd.f32 %v2781, %v2663
      %v2783 = vadd.f32 %v2782, %v2667
      %v2784 = vadd.f32 %v2783, %v2671
      %v2785 = vadd.f32 %v2784, %v2675
      %v2786 = vadd.f32 %v2785, %v2679
      %v2787 = vadd.f32 %v2786, %v2683
      %v2788 = vadd.f32 %v2787, %v2687
      %v2789 = vadd.f32 %v2788, %v2691
      %v2790 = vadd.f32 %v2789, %v2695
      %v2791 = vadd.f32 %v2790, %v2699
      %v2792 = vadd.f32 %v2791, %v2703
      %v2793 = vadd.f32 %v2792, %v2707
      %v2794 = vadd.f32 %v2793, %v2711
      %v2795 = vadd.f32 %v2794, %v2715
      %v2796 = vadd.f32 %v2795, %v2719
      %v2797 = vadd.f32 %v2796, %v2723
      %v2798 = vadd.f32 %v2797, %v2727
      %v2799 = vadd.f32 %v2798, %v2731
      %v2800 = vrot.slane %v2799, 4
      %v2801 = vadd.f32 %v2799, %v2800
      %v2802 = vrot.slane %v2801, 2
      %v2803 = vadd.f32 %v2801, %v2802
      %v2804 = vrot.slane %v2803, 1
      %v2805 = vadd.f32 %v2803, %v2804
      %2806 = vmatprep.subr.mxu0 %v2607
      %2807 = vmatpush1.msra.mxu0 %v2605
      %2808 = vmatprep.subr.mxu0 %v2611
      %2809 = vmatpush1.msra.mxu0 %v2609
      %2810 = vmatprep.subr.mxu0 %v2615
      %2811 = vmatpush1.msra.mxu0 %v2613
      %2812 = vmatprep.subr.mxu0 %v2619
      %2813 = vmatpush1.msra.mxu0 %v2617
      %2814 = vmatprep.subr.mxu0 %v2623
      %2815 = vmatpush1.msra.mxu0 %v2621
      %2816 = vmatprep.subr.mxu0 %v2627
      %2817 = vmatpush1.msra.mxu0 %v2625
      %2818 = vmatprep.subr.mxu0 %v2631
      %2819 = vmatpush1.msra.mxu0 %v2629
      %2820 = vmatprep.subr.mxu0 %v2635
      %2821 = vmatpush1.msra.mxu0 %v2633
      %2822 = vmatprep.subr.mxu0 %v2639
      %2823 = vmatpush1.msra.mxu0 %v2637
      %2824 = vmatprep.subr.mxu0 %v2643
      %2825 = vmatpush1.msra.mxu0 %v2641
      %2826 = vmatprep.subr.mxu0 %v2647
      %2827 = vmatpush1.msra.mxu0 %v2645
      %2828 = vmatprep.subr.mxu0 %v2651
      %2829 = vmatpush1.msra.mxu0 %v2649
      %2830 = vmatprep.subr.mxu0 %v2655
      %2831 = vmatpush1.msra.mxu0 %v2653
      %2832 = vmatprep.subr.mxu0 %v2659
      %2833 = vmatpush1.msra.mxu0 %v2657
      %2834 = vmatprep.subr.mxu0 %v2663
      %2835 = vmatpush1.msra.mxu0 %v2661
      %2836 = vmatprep.subr.mxu0 %v2667
      %2837 = vmatpush1.msra.mxu0 %v2665
      %2838 = vmatprep.subr.mxu0 %v2671
      %2839 = vmatpush1.msra.mxu0 %v2669
      %2840 = vmatprep.subr.mxu0 %v2675
      %2841 = vmatpush1.msra.mxu0 %v2673
      %2842 = vmatprep.subr.mxu0 %v2679
      %2843 = vmatpush1.msra.mxu0 %v2677
      %2844 = vmatprep.subr.mxu0 %v2683
      %2845 = vmatpush1.msra.mxu0 %v2681
      %2846 = vmatprep.subr.mxu0 %v2687
      %2847 = vmatpush1.msra.mxu0 %v2685
      %2848 = vmatprep.subr.mxu0 %v2691
      %2849 = vmatpush1.msra.mxu0 %v2689
      %2850 = vmatprep.subr.mxu0 %v2695
      %2851 = vmatpush1.msra.mxu0 %v2693
      %2852 = vmatprep.subr.mxu0 %v2699
      %2853 = vmatpush1.msra.mxu0 %v2697
      %2854 = vmatprep.subr.mxu0 %v2703
      %2855 = vmatpush1.msra.mxu0 %v2701
      %2856 = vmatprep.subr.mxu0 %v2707
      %2857 = vmatpush1.msra.mxu0 %v2705
      %2858 = vmatprep.subr.mxu0 %v2711
      %2859 = vmatpush1.msra.mxu0 %v2709
      %2860 = vmatprep.subr.mxu0 %v2715
      %2861 = vmatpush1.msra.mxu0 %v2713
      %2862 = vmatprep.subr.mxu0 %v2719
      %2863 = vmatpush1.msra.mxu0 %v2717
      %2864 = vmatprep.subr.mxu0 %v2723
      %2865 = vmatpush1.msra.mxu0 %v2721
      %2866 = vmatprep.subr.mxu0 %v2727
      %2867 = vmatpush1.msra.mxu0 %v2725
      %2868 = vmatprep.subr.mxu0 %v2731
      %2869 = vmatpush1.msra.mxu0 %v2729
      %2870 = vmatprep.mubr.f32.mxu0 %v354
      %2871 = vmatmul.mubr.f32.gmra.mrb[0].mxu0 %v352
      %v2872 = vpop.f32.mrb[0].mxu0
      %v2873 = vadd.f32 0.0, %v2872
      %v2874 = vpop.f32.mrb[0].mxu0
      %v2875 = vadd.f32 0.0, %v2874
      %2876 = vdwg.mxu0
      %v2877 = vrcp.pop %v2768
      %v2878 = vrcp.pop %v2805
      %v2879 = vmul.f32 %v2873, %v2877
      %v2880 = vmul.f32 %v2875, %v2878
      %2881 = vst [vmem:[%s170 + $0x20] sm:$0xff] %v2879
      %2882 = vst [vmem:[%s170 + $0x28] sm:$0xff] %v2880
      %v2883 = vld [vmem:[%s2 + $0x30] sm:$0xff]
      %v2884 = vld [vmem:[%s2 + $0x38] sm:$0xff]
      %2885 = vxpose.xlu0.b32.start [1/16] %v358, 128
      %2886 = vxpose.xlu0.b32.cont [2/16] %v364, 128
      %2887 = vxpose.xlu0.b32.cont [3/16] 0.0, 128
      %2888 = vxpose.xlu0.b32.cont [4/16] 0.0, 128
      %2889 = vxpose.xlu0.b32.cont [5/16] 0.0, 128
      %2890 = vxpose.xlu0.b32.cont [6/16] 0.0, 128
      %2891 = vxpose.xlu0.b32.cont [7/16] 0.0, 128
      %2892 = vxpose.xlu0.b32.cont [8/16] 0.0, 128
      %2893 = vxpose.xlu0.b32.cont [9/16] 0.0, 128
      %2894 = vxpose.xlu0.b32.cont [10/16] 0.0, 128
      %2895 = vxpose.xlu0.b32.cont [11/16] 0.0, 128
      %2896 = vxpose.xlu0.b32.cont [12/16] 0.0, 128
      %2897 = vxpose.xlu0.b32.cont [13/16] 0.0, 128
      %2898 = vxpose.xlu0.b32.cont [14/16] 0.0, 128
      %2899 = vxpose.xlu0.b32.cont [15/16] 0.0, 128
      %2900 = vxpose.xlu0.b32.end [16/16] 0.0, 128
      %v2901 = vpop.trf.xlu0
      %v2902 = vpop.trf.xlu0
      %v2903 = vpop.trf.xlu0
      %v2904 = vpop.trf.xlu0
      %v2905 = vpop.trf.xlu0
      %v2906 = vpop.trf.xlu0
      %v2907 = vpop.trf.xlu0
      %v2908 = vpop.trf.xlu0
      %v2909 = vpop.trf.xlu0
      %v2910 = vpop.trf.xlu0
      %v2911 = vpop.trf.xlu0
      %v2912 = vpop.trf.xlu0
      %v2913 = vpop.trf.xlu0
      %v2914 = vpop.trf.xlu0
      %v2915 = vpop.trf.xlu0
      %v2916 = vpop.trf.xlu0
      %2917 = vxpose.xlu0.b32.start [1/16] %v360, 128
      %2918 = vxpose.xlu0.b32.cont [2/16] %v366, 128
      %2919 = vxpose.xlu0.b32.cont [3/16] 0.0, 128
      %2920 = vxpose.xlu0.b32.cont [4/16] 0.0, 128
      %2921 = vxpose.xlu0.b32.cont [5/16] 0.0, 128
      %2922 = vxpose.xlu0.b32.cont [6/16] 0.0, 128
      %2923 = vxpose.xlu0.b32.cont [7/16] 0.0, 128
      %2924 = vxpose.xlu0.b32.cont [8/16] 0.0, 128
      %2925 = vxpose.xlu0.b32.cont [9/16] 0.0, 128
      %2926 = vxpose.xlu0.b32.cont [10/16] 0.0, 128
      %2927 = vxpose.xlu0.b32.cont [11/16] 0.0, 128
      %2928 = vxpose.xlu0.b32.cont [12/16] 0.0, 128
      %2929 = vxpose.xlu0.b32.cont [13/16] 0.0, 128
      %2930 = vxpose.xlu0.b32.cont [14/16] 0.0, 128
      %2931 = vxpose.xlu0.b32.cont [15/16] 0.0, 128
      %2932 = vxpose.xlu0.b32.end [16/16] 0.0, 128
      %v2933 = vpop.trf.xlu0
      %v2934 = vpop.trf.xlu0
      %v2935 = vpop.trf.xlu0
      %v2936 = vpop.trf.xlu0
      %v2937 = vpop.trf.xlu0
      %v2938 = vpop.trf.xlu0
      %v2939 = vpop.trf.xlu0
      %v2940 = vpop.trf.xlu0
      %v2941 = vpop.trf.xlu0
      %v2942 = vpop.trf.xlu0
      %v2943 = vpop.trf.xlu0
      %v2944 = vpop.trf.xlu0
      %v2945 = vpop.trf.xlu0
      %v2946 = vpop.trf.xlu0
      %v2947 = vpop.trf.xlu0
      %v2948 = vpop.trf.xlu0
      %v2950 = vsel %vm440, %v2901, 0
      %v2953 = vsel %vm440, %v2902, 0
      %v2956 = vsel %vm440, %v2903, 0
      %v2959 = vsel %vm440, %v2904, 0
      %v2962 = vsel %vm440, %v2905, 0
      %v2965 = vsel %vm440, %v2906, 0
      %v2968 = vsel %vm440, %v2907, 0
      %v2971 = vsel %vm440, %v2908, 0
      %v2974 = vsel %vm440, %v2909, 0
      %v2977 = vsel %vm440, %v2910, 0
      %v2980 = vsel %vm440, %v2911, 0
      %v2983 = vsel %vm440, %v2912, 0
      %v2986 = vsel %vm440, %v2913, 0
      %v2989 = vsel %vm440, %v2914, 0
      %v2992 = vsel %vm440, %v2915, 0
      %v2995 = vsel %vm440, %v2916, 0
      %v2998 = vsel %vm440, %v2933, 0
      %v3001 = vsel %vm440, %v2934, 0
      %v3004 = vsel %vm440, %v2935, 0
      %v3007 = vsel %vm440, %v2936, 0
      %v3010 = vsel %vm440, %v2937, 0
      %v3013 = vsel %vm440, %v2938, 0
      %v3016 = vsel %vm440, %v2939, 0
      %v3019 = vsel %vm440, %v2940, 0
      %v3022 = vsel %vm440, %v2941, 0
      %v3025 = vsel %vm440, %v2942, 0
      %v3028 = vsel %vm440, %v2943, 0
      %v3031 = vsel %vm440, %v2944, 0
      %v3034 = vsel %vm440, %v2945, 0
      %v3037 = vsel %vm440, %v2946, 0
      %v3040 = vsel %vm440, %v2947, 0
      %v3043 = vsel %vm440, %v2948, 0
      %3045 = vmatprep.subr.mxu0 %v366
      %3046 = vmatpush1.msra.mxu0 %v364
      %3047 = vmatprep.subr.mxu0 %v2884
      %3048 = vmatpush1.msra.mxu0 %v2883
      %3049 = vmatprep.subr.mxu0 0.0
      %3050 = vmatpush1.msra.mxu0 0.0
      %3051 = vmatprep.subr.mxu0 0.0
      %3052 = vmatpush1.msra.mxu0 0.0
      %3053 = vmatprep.subr.mxu0 0.0
      %3054 = vmatpush1.msra.mxu0 0.0
      %3055 = vmatprep.subr.mxu0 0.0
      %3056 = vmatpush1.msra.mxu0 0.0
      %3057 = vmatprep.subr.mxu0 0.0
      %3058 = vmatpush1.msra.mxu0 0.0
      %3059 = vmatprep.subr.mxu0 0.0
      %3060 = vmatpush1.msra.mxu0 0.0
      %3061 = vmatprep.subr.mxu0 0.0
      %3062 = vmatpush1.msra.mxu0 0.0
      %3063 = vmatprep.subr.mxu0 0.0
      %3064 = vmatpush1.msra.mxu0 0.0
      %3065 = vmatprep.subr.mxu0 0.0
      %3066 = vmatpush1.msra.mxu0 0.0
      %3067 = vmatprep.subr.mxu0 0.0
      %3068 = vmatpush1.msra.mxu0 0.0
      %3069 = vmatprep.subr.mxu0 0.0
      %3070 = vmatpush1.msra.mxu0 0.0
      %3071 = vmatprep.subr.mxu0 0.0
      %3072 = vmatpush1.msra.mxu0 0.0
      %3073 = vmatprep.subr.mxu0 0.0
      %3074 = vmatpush1.msra.mxu0 0.0
      %3075 = vmatprep.subr.mxu0 0.0
      %3076 = vmatpush1.msra.mxu0 0.0
      %3077 = vmatprep.subr.mxu0 0.0
      %3078 = vmatpush1.msra.mxu0 0.0
      %3079 = vmatprep.subr.mxu0 0.0
      %3080 = vmatpush1.msra.mxu0 0.0
      %3081 = vmatprep.subr.mxu0 0.0
      %3082 = vmatpush1.msra.mxu0 0.0
      %3083 = vmatprep.subr.mxu0 0.0
      %3084 = vmatpush1.msra.mxu0 0.0
      %3085 = vmatprep.subr.mxu0 0.0
      %3086 = vmatpush1.msra.mxu0 0.0
      %3087 = vmatprep.subr.mxu0 0.0
      %3088 = vmatpush1.msra.mxu0 0.0
      %3089 = vmatprep.subr.mxu0 0.0
      %3090 = vmatpush1.msra.mxu0 0.0
      %3091 = vmatprep.subr.mxu0 0.0
      %3092 = vmatpush1.msra.mxu0 0.0
      %3093 = vmatprep.subr.mxu0 0.0
      %3094 = vmatpush1.msra.mxu0 0.0
      %3095 = vmatprep.subr.mxu0 0.0
      %3096 = vmatpush1.msra.mxu0 0.0
      %3097 = vmatprep.subr.mxu0 0.0
      %3098 = vmatpush1.msra.mxu0 0.0
      %3099 = vmatprep.subr.mxu0 0.0
      %3100 = vmatpush1.msra.mxu0 0.0
      %3101 = vmatprep.subr.mxu0 0.0
      %3102 = vmatpush1.msra.mxu0 0.0
      %3103 = vmatprep.subr.mxu0 0.0
      %3104 = vmatpush1.msra.mxu0 0.0
      %3105 = vmatprep.subr.mxu0 0.0
      %3106 = vmatpush1.msra.mxu0 0.0
      %3107 = vmatprep.subr.mxu0 0.0
      %3108 = vmatpush1.msra.mxu0 0.0
      %3109 = vmatprep.mubr.f32.mxu0 0.0
      %3110 = vmatmul.mubr.f32.gmra.mrb[0].mxu0 %v2950
      %v3111 = vpop.f32.mrb[0].mxu0
      %v3112 = vadd.f32 0.0, %v3111
      %v3113 = vpop.f32.mrb[0].mxu0
      %v3114 = vadd.f32 0.0, %v3113
      %3115 = vmatprep.mubr.f32.mxu0 0.0
      %3116 = vmatmul.mubr.f32.gmra.mrb[0].mxu0 %v2953
      %v3117 = vpop.f32.mrb[0].mxu0
      %v3118 = vadd.f32 0.0, %v3117
      %v3119 = vpop.f32.mrb[0].mxu0
      %v3120 = vadd.f32 0.0, %v3119
      %3121 = vmatprep.mubr.f32.mxu0 0.0
      %3122 = vmatmul.mubr.f32.gmra.mrb[0].mxu0 %v2956
      %v3123 = vpop.f32.mrb[0].mxu0
      %v3124 = vadd.f32 0.0, %v3123
      %v3125 = vpop.f32.mrb[0].mxu0
      %v3126 = vadd.f32 0.0, %v3125
      %3127 = vmatprep.mubr.f32.mxu0 0.0
      %3128 = vmatmul.mubr.f32.gmra.mrb[0].mxu0 %v2959
      %v3129 = vpop.f32.mrb[0].mxu0
      %v3130 = vadd.f32 0.0, %v3129
      %v3131 = vpop.f32.mrb[0].mxu0
      %v3132 = vadd.f32 0.0, %v3131
      %3133 = vmatprep.mubr.f32.mxu0 0.0
      %3134 = vmatmul.mubr.f32.gmra.mrb[0].mxu0 %v2962
      %v3135 = vpop.f32.mrb[0].mxu0
      %v3136 = vadd.f32 0.0, %v3135
      %v3137 = vpop.f32.mrb[0].mxu0
      %v3138 = vadd.f32 0.0, %v3137
      %3139 = vmatprep.mubr.f32.mxu0 0.0
      %3140 = vmatmul.mubr.f32.gmra.mrb[0].mxu0 %v2965
      %v3141 = vpop.f32.mrb[0].mxu0
      %v3142 = vadd.f32 0.0, %v3141
      %v3143 = vpop.f32.mrb[0].mxu0
      %v3144 = vadd.f32 0.0, %v3143
      %3145 = vmatprep.mubr.f32.mxu0 0.0
      %3146 = vmatmul.mubr.f32.gmra.mrb[0].mxu0 %v2968
      %v3147 = vpop.f32.mrb[0].mxu0
      %v3148 = vadd.f32 0.0, %v3147
      %v3149 = vpop.f32.mrb[0].mxu0
      %v3150 = vadd.f32 0.0, %v3149
      %3151 = vmatprep.mubr.f32.mxu0 0.0
      %3152 = vmatmul.mubr.f32.gmra.mrb[0].mxu0 %v2971
      %v3153 = vpop.f32.mrb[0].mxu0
      %v3154 = vadd.f32 0.0, %v3153
      %v3155 = vpop.f32.mrb[0].mxu0
      %v3156 = vadd.f32 0.0, %v3155
      %3157 = vmatprep.mubr.f32.mxu0 0.0
      %3158 = vmatmul.mubr.f32.gmra.mrb[0].mxu0 %v2974
      %v3159 = vpop.f32.mrb[0].mxu0
      %v3160 = vadd.f32 0.0, %v3159
      %v3161 = vpop.f32.mrb[0].mxu0
      %v3162 = vadd.f32 0.0, %v3161
      %3163 = vmatprep.mubr.f32.mxu0 0.0
      %3164 = vmatmul.mubr.f32.gmra.mrb[0].mxu0 %v2977
      %v3165 = vpop.f32.mrb[0].mxu0
      %v3166 = vadd.f32 0.0, %v3165
      %v3167 = vpop.f32.mrb[0].mxu0
      %v3168 = vadd.f32 0.0, %v3167
      %3169 = vmatprep.mubr.f32.mxu0 0.0
      %3170 = vmatmul.mubr.f32.gmra.mrb[0].mxu0 %v2980
      %v3171 = vpop.f32.mrb[0].mxu0
      %v3172 = vadd.f32 0.0, %v3171
      %v3173 = vpop.f32.mrb[0].mxu0
      %v3174 = vadd.f32 0.0, %v3173
      %3175 = vmatprep.mubr.f32.mxu0 0.0
      %3176 = vmatmul.mubr.f32.gmra.mrb[0].mxu0 %v2983
      %v3177 = vpop.f32.mrb[0].mxu0
      %v3178 = vadd.f32 0.0, %v3177
      %v3179 = vpop.f32.mrb[0].mxu0
      %v3180 = vadd.f32 0.0, %v3179
      %3181 = vmatprep.mubr.f32.mxu0 0.0
      %3182 = vmatmul.mubr.f32.gmra.mrb[0].mxu0 %v2986
      %v3183 = vpop.f32.mrb[0].mxu0
      %v3184 = vadd.f32 0.0, %v3183
      %v3185 = vpop.f32.mrb[0].mxu0
      %v3186 = vadd.f32 0.0, %v3185
      %3187 = vmatprep.mubr.f32.mxu0 0.0
      %3188 = vmatmul.mubr.f32.gmra.mrb[0].mxu0 %v2989
      %v3189 = vpop.f32.mrb[0].mxu0
      %v3190 = vadd.f32 0.0, %v3189
      %v3191 = vpop.f32.mrb[0].mxu0
      %v3192 = vadd.f32 0.0, %v3191
      %3193 = vmatprep.mubr.f32.mxu0 0.0
      %3194 = vmatmul.mubr.f32.gmra.mrb[0].mxu0 %v2992
      %v3195 = vpop.f32.mrb[0].mxu0
      %v3196 = vadd.f32 0.0, %v3195
      %v3197 = vpop.f32.mrb[0].mxu0
      %v3198 = vadd.f32 0.0, %v3197
      %3199 = vmatprep.mubr.f32.mxu0 0.0
      %3200 = vmatmul.mubr.f32.gmra.mrb[0].mxu0 %v2995
      %v3201 = vpop.f32.mrb[0].mxu0
      %v3202 = vadd.f32 0.0, %v3201
      %v3203 = vpop.f32.mrb[0].mxu0
      %v3204 = vadd.f32 0.0, %v3203
      %3205 = vmatprep.mubr.f32.mxu0 0.0
      %3206 = vmatmul.mubr.f32.gmra.mrb[0].mxu0 %v2998
      %v3207 = vpop.f32.mrb[0].mxu0
      %v3208 = vadd.f32 0.0, %v3207
      %v3209 = vpop.f32.mrb[0].mxu0
      %v3210 = vadd.f32 0.0, %v3209
      %3211 = vmatprep.mubr.f32.mxu0 0.0
      %3212 = vmatmul.mubr.f32.gmra.mrb[0].mxu0 %v3001
      %v3213 = vpop.f32.mrb[0].mxu0
      %v3214 = vadd.f32 0.0, %v3213
      %v3215 = vpop.f32.mrb[0].mxu0
      %v3216 = vadd.f32 0.0, %v3215
      %3217 = vmatprep.mubr.f32.mxu0 0.0
      %3218 = vmatmul.mubr.f32.gmra.mrb[0].mxu0 %v3004
      %v3219 = vpop.f32.mrb[0].mxu0
      %v3220 = vadd.f32 0.0, %v3219
      %v3221 = vpop.f32.mrb[0].mxu0
      %v3222 = vadd.f32 0.0, %v3221
      %3223 = vmatprep.mubr.f32.mxu0 0.0
      %3224 = vmatmul.mubr.f32.gmra.mrb[0].mxu0 %v3007
      %v3225 = vpop.f32.mrb[0].mxu0
      %v3226 = vadd.f32 0.0, %v3225
      %v3227 = vpop.f32.mrb[0].mxu0
      %v3228 = vadd.f32 0.0, %v3227
      %3229 = vmatprep.mubr.f32.mxu0 0.0
      %3230 = vmatmul.mubr.f32.gmra.mrb[0].mxu0 %v3010
      %v3231 = vpop.f32.mrb[0].mxu0
      %v3232 = vadd.f32 0.0, %v3231
      %v3233 = vpop.f32.mrb[0].mxu0
      %v3234 = vadd.f32 0.0, %v3233
      %3235 = vmatprep.mubr.f32.mxu0 0.0
      %3236 = vmatmul.mubr.f32.gmra.mrb[0].mxu0 %v3013
      %v3237 = vpop.f32.mrb[0].mxu0
      %v3238 = vadd.f32 0.0, %v3237
      %v3239 = vpop.f32.mrb[0].mxu0
      %v3240 = vadd.f32 0.0, %v3239
      %3241 = vmatprep.mubr.f32.mxu0 0.0
      %3242 = vmatmul.mubr.f32.gmra.mrb[0].mxu0 %v3016
      %v3243 = vpop.f32.mrb[0].mxu0
      %v3244 = vadd.f32 0.0, %v3243
      %v3245 = vpop.f32.mrb[0].mxu0
      %v3246 = vadd.f32 0.0, %v3245
      %3247 = vmatprep.mubr.f32.mxu0 0.0
      %3248 = vmatmul.mubr.f32.gmra.mrb[0].mxu0 %v3019
      %v3249 = vpop.f32.mrb[0].mxu0
      %v3250 = vadd.f32 0.0, %v3249
      %v3251 = vpop.f32.mrb[0].mxu0
      %v3252 = vadd.f32 0.0, %v3251
      %3253 = vmatprep.mubr.f32.mxu0 0.0
      %3254 = vmatmul.mubr.f32.gmra.mrb[0].mxu0 %v3022
      %v3255 = vpop.f32.mrb[0].mxu0
      %v3256 = vadd.f32 0.0, %v3255
      %v3257 = vpop.f32.mrb[0].mxu0
      %v3258 = vadd.f32 0.0, %v3257
      %3259 = vmatprep.mubr.f32.mxu0 0.0
      %3260 = vmatmul.mubr.f32.gmra.mrb[0].mxu0 %v3025
      %v3261 = vpop.f32.mrb[0].mxu0
      %v3262 = vadd.f32 0.0, %v3261
      %v3263 = vpop.f32.mrb[0].mxu0
      %v3264 = vadd.f32 0.0, %v3263
      %3265 = vmatprep.mubr.f32.mxu0 0.0
      %3266 = vmatmul.mubr.f32.gmra.mrb[0].mxu0 %v3028
      %v3267 = vpop.f32.mrb[0].mxu0
      %v3268 = vadd.f32 0.0, %v3267
      %v3269 = vpop.f32.mrb[0].mxu0
      %v3270 = vadd.f32 0.0, %v3269
      %3271 = vmatprep.mubr.f32.mxu0 0.0
      %3272 = vmatmul.mubr.f32.gmra.mrb[0].mxu0 %v3031
      %v3273 = vpop.f32.mrb[0].mxu0
      %v3274 = vadd.f32 0.0, %v3273
      %v3275 = vpop.f32.mrb[0].mxu0
      %v3276 = vadd.f32 0.0, %v3275
      %3277 = vmatprep.mubr.f32.mxu0 0.0
      %3278 = vmatmul.mubr.f32.gmra.mrb[0].mxu0 %v3034
      %v3279 = vpop.f32.mrb[0].mxu0
      %v3280 = vadd.f32 0.0, %v3279
      %v3281 = vpop.f32.mrb[0].mxu0
      %v3282 = vadd.f32 0.0, %v3281
      %3283 = vmatprep.mubr.f32.mxu0 0.0
      %3284 = vmatmul.mubr.f32.gmra.mrb[0].mxu0 %v3037
      %v3285 = vpop.f32.mrb[0].mxu0
      %v3286 = vadd.f32 0.0, %v3285
      %v3287 = vpop.f32.mrb[0].mxu0
      %v3288 = vadd.f32 0.0, %v3287
      %3289 = vmatprep.mubr.f32.mxu0 0.0
      %3290 = vmatmul.mubr.f32.gmra.mrb[0].mxu0 %v3040
      %v3291 = vpop.f32.mrb[0].mxu0
      %v3292 = vadd.f32 0.0, %v3291
      %v3293 = vpop.f32.mrb[0].mxu0
      %v3294 = vadd.f32 0.0, %v3293
      %3295 = vmatprep.mubr.f32.mxu0 0.0
      %3296 = vmatmul.mubr.f32.gmra.mrb[0].mxu0 %v3043
      %v3297 = vpop.f32.mrb[0].mxu0
      %v3298 = vadd.f32 0.0, %v3297
      %v3299 = vpop.f32.mrb[0].mxu0
      %v3300 = vadd.f32 0.0, %v3299
      %3301 = vdwg.mxu0
      %v3302 = vmax.f32 %v3112, %v3124
      %v3303 = vmax.f32 %v3118, %v3130
      %v3304 = vmax.f32 %v3302, %v3136
      %v3305 = vmax.f32 %v3303, %v3142
      %v3306 = vmax.f32 %v3304, %v3148
      %v3307 = vmax.f32 %v3305, %v3154
      %v3308 = vmax.f32 %v3306, %v3160
      %v3309 = vmax.f32 %v3307, %v3166
      %v3310 = vmax.f32 %v3308, %v3172
      %v3311 = vmax.f32 %v3309, %v3178
      %v3312 = vmax.f32 %v3310, %v3184
      %v3313 = vmax.f32 %v3311, %v3190
      %v3314 = vmax.f32 %v3312, %v3196
      %v3315 = vmax.f32 %v3313, %v3202
      %v3316 = vmax.f32 %v3314, %v3208
      %v3317 = vmax.f32 %v3315, %v3214
      %v3318 = vmax.f32 %v3316, %v3220
      %v3319 = vmax.f32 %v3317, %v3226
      %v3320 = vmax.f32 %v3318, %v3232
      %v3321 = vmax.f32 %v3319, %v3238
      %v3322 = vmax.f32 %v3320, %v3244
      %v3323 = vmax.f32 %v3321, %v3250
      %v3324 = vmax.f32 %v3322, %v3256
      %v3325 = vmax.f32 %v3323, %v3262
      %v3326 = vmax.f32 %v3324, %v3268
      %v3327 = vmax.f32 %v3325, %v3274
      %v3328 = vmax.f32 %v3326, %v3280
      %v3329 = vmax.f32 %v3327, %v3286
      %v3330 = vmax.f32 %v3328, %v3292
      %v3331 = vmax.f32 %v3329, %v3298
      %v3332 = vmax.f32 %v3330, %v3331
      %v3333 = vrot.slane %v3332, 4
      %v3334 = vmax.f32 %v3332, %v3333
      %v3335 = vrot.slane %v3334, 2
      %v3336 = vmax.f32 %v3334, %v3335
      %v3337 = vrot.slane %v3336, 1
      %v3338 = vmax.f32 %v3336, %v3337
      %v3339 = vmax.f32 %v3114, %v3126
      %v3340 = vmax.f32 %v3120, %v3132
      %v3341 = vmax.f32 %v3339, %v3138
      %v3342 = vmax.f32 %v3340, %v3144
      %v3343 = vmax.f32 %v3341, %v3150
      %v3344 = vmax.f32 %v3342, %v3156
      %v3345 = vmax.f32 %v3343, %v3162
      %v3346 = vmax.f32 %v3344, %v3168
      %v3347 = vmax.f32 %v3345, %v3174
      %v3348 = vmax.f32 %v3346, %v3180
      %v3349 = vmax.f32 %v3347, %v3186
      %v3350 = vmax.f32 %v3348, %v3192
      %v3351 = vmax.f32 %v3349, %v3198
      %v3352 = vmax.f32 %v3350, %v3204
      %v3353 = vmax.f32 %v3351, %v3210
      %v3354 = vmax.f32 %v3352, %v3216
      %v3355 = vmax.f32 %v3353, %v3222
      %v3356 = vmax.f32 %v3354, %v3228
      %v3357 = vmax.f32 %v3355, %v3234
      %v3358 = vmax.f32 %v3356, %v3240
      %v3359 = vmax.f32 %v3357, %v3246
      %v3360 = vmax.f32 %v3358, %v3252
      %v3361 = vmax.f32 %v3359, %v3258
      %v3362 = vmax.f32 %v3360, %v3264
      %v3363 = vmax.f32 %v3361, %v3270
      %v3364 = vmax.f32 %v3362, %v3276
      %v3365 = vmax.f32 %v3363, %v3282
      %v3366 = vmax.f32 %v3364, %v3288
      %v3367 = vmax.f32 %v3365, %v3294
      %v3368 = vmax.f32 %v3366, %v3300
      %v3369 = vmax.f32 %v3367, %v3368
      %v3370 = vrot.slane %v3369, 4
      %v3371 = vmax.f32 %v3369, %v3370
      %v3372 = vrot.slane %v3371, 2
      %v3373 = vmax.f32 %v3371, %v3372
      %v3374 = vrot.slane %v3373, 1
      %v3375 = vmax.f32 %v3373, %v3374
      %v3376 = vsub.f32 %v3112, %v3338
      %v3377 = vsub.f32 %v3114, %v3375
      %v3378 = vsub.f32 %v3118, %v3338
      %v3379 = vsub.f32 %v3120, %v3375
      %v3380 = vsub.f32 %v3124, %v3338
      %v3381 = vsub.f32 %v3126, %v3375
      %v3382 = vsub.f32 %v3130, %v3338
      %v3383 = vsub.f32 %v3132, %v3375
      %v3384 = vsub.f32 %v3136, %v3338
      %v3385 = vsub.f32 %v3138, %v3375
      %v3386 = vsub.f32 %v3142, %v3338
      %v3387 = vsub.f32 %v3144, %v3375
      %v3388 = vsub.f32 %v3148, %v3338
      %v3389 = vsub.f32 %v3150, %v3375
      %v3390 = vsub.f32 %v3154, %v3338
      %v3391 = vsub.f32 %v3156, %v3375
      %v3392 = vsub.f32 %v3160, %v3338
      %v3393 = vsub.f32 %v3162, %v3375
      %v3394 = vsub.f32 %v3166, %v3338
      %v3395 = vsub.f32 %v3168, %v3375
      %v3396 = vsub.f32 %v3172, %v3338
      %v3397 = vsub.f32 %v3174, %v3375
      %v3398 = vsub.f32 %v3178, %v3338
      %v3399 = vsub.f32 %v3180, %v3375
      %v3400 = vsub.f32 %v3184, %v3338
      %v3401 = vsub.f32 %v3186, %v3375
      %v3402 = vsub.f32 %v3190, %v3338
      %v3403 = vsub.f32 %v3192, %v3375
      %v3404 = vsub.f32 %v3196, %v3338
      %v3405 = vsub.f32 %v3198, %v3375
      %v3406 = vsub.f32 %v3202, %v3338
      %v3407 = vsub.f32 %v3204, %v3375
      %v3408 = vsub.f32 %v3208, %v3338
      %v3409 = vsub.f32 %v3210, %v3375
      %v3410 = vsub.f32 %v3214, %v3338
      %v3411 = vsub.f32 %v3216, %v3375
      %v3412 = vsub.f32 %v3220, %v3338
      %v3413 = vsub.f32 %v3222, %v3375
      %v3414 = vsub.f32 %v3226, %v3338
      %v3415 = vsub.f32 %v3228, %v3375
      %v3416 = vsub.f32 %v3232, %v3338
      %v3417 = vsub.f32 %v3234, %v3375
      %v3418 = vsub.f32 %v3238, %v3338
      %v3419 = vsub.f32 %v3240, %v3375
      %v3420 = vsub.f32 %v3244, %v3338
      %v3421 = vsub.f32 %v3246, %v3375
      %v3422 = vsub.f32 %v3250, %v3338
      %v3423 = vsub.f32 %v3252, %v3375
      %v3424 = vsub.f32 %v3256, %v3338
      %v3425 = vsub.f32 %v3258, %v3375
      %v3426 = vsub.f32 %v3262, %v3338
      %v3427 = vsub.f32 %v3264, %v3375
      %v3428 = vsub.f32 %v3268, %v3338
      %v3429 = vsub.f32 %v3270, %v3375
      %v3430 = vsub.f32 %v3274, %v3338
      %v3431 = vsub.f32 %v3276, %v3375
      %v3432 = vsub.f32 %v3280, %v3338
      %v3433 = vsub.f32 %v3282, %v3375
      %v3434 = vsub.f32 %v3286, %v3338
      %v3435 = vsub.f32 %v3288, %v3375
      %v3436 = vsub.f32 %v3292, %v3338
      %v3437 = vsub.f32 %v3294, %v3375
      %v3438 = vsub.f32 %v3298, %v3338
      %v3439 = vsub.f32 %v3300, %v3375
      %v3440 = vmul.f32 %v3376, 1.442695
      %v3441 = vpow.pop %v3440
      %v3442 = vmul.f32 %v3377, 1.442695
      %v3443 = vpow.pop %v3442
      %v3444 = vmul.f32 %v3378, 1.442695
      %v3445 = vpow.pop %v3444
      %v3446 = vmul.f32 %v3379, 1.442695
      %v3447 = vpow.pop %v3446
      %v3448 = vmul.f32 %v3380, 1.442695
      %v3449 = vpow.pop %v3448
      %v3450 = vmul.f32 %v3381, 1.442695
      %v3451 = vpow.pop %v3450
      %v3452 = vmul.f32 %v3382, 1.442695
      %v3453 = vpow.pop %v3452
      %v3454 = vmul.f32 %v3383, 1.442695
      %v3455 = vpow.pop %v3454
      %v3456 = vmul.f32 %v3384, 1.442695
      %v3457 = vpow.pop %v3456
      %v3458 = vmul.f32 %v3385, 1.442695
      %v3459 = vpow.pop %v3458
      %v3460 = vmul.f32 %v3386, 1.442695
      %v3461 = vpow.pop %v3460
      %v3462 = vmul.f32 %v3387, 1.442695
      %v3463 = vpow.pop %v3462
      %v3464 = vmul.f32 %v3388, 1.442695
      %v3465 = vpow.pop %v3464
      %v3466 = vmul.f32 %v3389, 1.442695
      %v3467 = vpow.pop %v3466
      %v3468 = vmul.f32 %v3390, 1.442695
      %v3469 = vpow.pop %v3468
      %v3470 = vmul.f32 %v3391, 1.442695
      %v3471 = vpow.pop %v3470
      %v3472 = vmul.f32 %v3392, 1.442695
      %v3473 = vpow.pop %v3472
      %v3474 = vmul.f32 %v3393, 1.442695
      %v3475 = vpow.pop %v3474
      %v3476 = vmul.f32 %v3394, 1.442695
      %v3477 = vpow.pop %v3476
      %v3478 = vmul.f32 %v3395, 1.442695
      %v3479 = vpow.pop %v3478
      %v3480 = vmul.f32 %v3396, 1.442695
      %v3481 = vpow.pop %v3480
      %v3482 = vmul.f32 %v3397, 1.442695
      %v3483 = vpow.pop %v3482
      %v3484 = vmul.f32 %v3398, 1.442695
      %v3485 = vpow.pop %v3484
      %v3486 = vmul.f32 %v3399, 1.442695
      %v3487 = vpow.pop %v3486
      %v3488 = vmul.f32 %v3400, 1.442695
      %v3489 = vpow.pop %v3488
      %v3490 = vmul.f32 %v3401, 1.442695
      %v3491 = vpow.pop %v3490
      %v3492 = vmul.f32 %v3402, 1.442695
      %v3493 = vpow.pop %v3492
      %v3494 = vmul.f32 %v3403, 1.442695
      %v3495 = vpow.pop %v3494
      %v3496 = vmul.f32 %v3404, 1.442695
      %v3497 = vpow.pop %v3496
      %v3498 = vmul.f32 %v3405, 1.442695
      %v3499 = vpow.pop %v3498
      %v3500 = vmul.f32 %v3406, 1.442695
      %v3501 = vpow.pop %v3500
      %v3502 = vmul.f32 %v3407, 1.442695
      %v3503 = vpow.pop %v3502
      %v3504 = vmul.f32 %v3408, 1.442695
      %v3505 = vpow.pop %v3504
      %v3506 = vmul.f32 %v3409, 1.442695
      %v3507 = vpow.pop %v3506
      %v3508 = vmul.f32 %v3410, 1.442695
      %v3509 = vpow.pop %v3508
      %v3510 = vmul.f32 %v3411, 1.442695
      %v3511 = vpow.pop %v3510
      %v3512 = vmul.f32 %v3412, 1.442695
      %v3513 = vpow.pop %v3512
      %v3514 = vmul.f32 %v3413, 1.442695
      %v3515 = vpow.pop %v3514
      %v3516 = vmul.f32 %v3414, 1.442695
      %v3517 = vpow.pop %v3516
      %v3518 = vmul.f32 %v3415, 1.442695
      %v3519 = vpow.pop %v3518
      %v3520 = vmul.f32 %v3416, 1.442695
      %v3521 = vpow.pop %v3520
      %v3522 = vmul.f32 %v3417, 1.442695
      %v3523 = vpow.pop %v3522
      %v3524 = vmul.f32 %v3418, 1.442695
      %v3525 = vpow.pop %v3524
      %v3526 = vmul.f32 %v3419, 1.442695
      %v3527 = vpow.pop %v3526
      %v3528 = vmul.f32 %v3420, 1.442695
      %v3529 = vpow.pop %v3528
      %v3530 = vmul.f32 %v3421, 1.442695
      %v3531 = vpow.pop %v3530
      %v3532 = vmul.f32 %v3422, 1.442695
      %v3533 = vpow.pop %v3532
      %v3534 = vmul.f32 %v3423, 1.442695
      %v3535 = vpow.pop %v3534
      %v3536 = vmul.f32 %v3424, 1.442695
      %v3537 = vpow.pop %v3536
      %v3538 = vmul.f32 %v3425, 1.442695
      %v3539 = vpow.pop %v3538
      %v3540 = vmul.f32 %v3426, 1.442695
      %v3541 = vpow.pop %v3540
      %v3542 = vmul.f32 %v3427, 1.442695
      %v3543 = vpow.pop %v3542
      %v3544 = vmul.f32 %v3428, 1.442695
      %v3545 = vpow.pop %v3544
      %v3546 = vmul.f32 %v3429, 1.442695
      %v3547 = vpow.pop %v3546
      %v3548 = vmul.f32 %v3430, 1.442695
      %v3549 = vpow.pop %v3548
      %v3550 = vmul.f32 %v3431, 1.442695
      %v3551 = vpow.pop %v3550
      %v3552 = vmul.f32 %v3432, 1.442695
      %v3553 = vpow.pop %v3552
      %v3554 = vmul.f32 %v3433, 1.442695
      %v3555 = vpow.pop %v3554
      %v3556 = vmul.f32 %v3434, 1.442695
      %v3557 = vpow.pop %v3556
      %v3558 = vmul.f32 %v3435, 1.442695
      %v3559 = vpow.pop %v3558
      %v3560 = vmul.f32 %v3436, 1.442695
      %v3561 = vpow.pop %v3560
      %v3562 = vmul.f32 %v3437, 1.442695
      %v3563 = vpow.pop %v3562
      %v3564 = vmul.f32 %v3438, 1.442695
      %v3565 = vpow.pop %v3564
      %v3566 = vmul.f32 %v3439, 1.442695
      %v3567 = vpow.pop %v3566
      %v3568 = vadd.f32 %v3441, %v3445
      %v3569 = vadd.f32 %v3568, %v3449
      %v3570 = vadd.f32 %v3569, %v3453
      %v3571 = vadd.f32 %v3570, %v3457
      %v3572 = vadd.f32 %v3571, %v3461
      %v3573 = vadd.f32 %v3572, %v3465
      %v3574 = vadd.f32 %v3573, %v3469
      %v3575 = vadd.f32 %v3574, %v3473
      %v3576 = vadd.f32 %v3575, %v3477
      %v3577 = vadd.f32 %v3576, %v3481
      %v3578 = vadd.f32 %v3577, %v3485
      %v3579 = vadd.f32 %v3578, %v3489
      %v3580 = vadd.f32 %v3579, %v3493
      %v3581 = vadd.f32 %v3580, %v3497
      %v3582 = vadd.f32 %v3581, %v3501
      %v3583 = vadd.f32 %v3582, %v3505
      %v3584 = vadd.f32 %v3583, %v3509
      %v3585 = vadd.f32 %v3584, %v3513
      %v3586 = vadd.f32 %v3585, %v3517
      %v3587 = vadd.f32 %v3586, %v3521
      %v3588 = vadd.f32 %v3587, %v3525
      %v3589 = vadd.f32 %v3588, %v3529
      %v3590 = vadd.f32 %v3589, %v3533
      %v3591 = vadd.f32 %v3590, %v3537
      %v3592 = vadd.f32 %v3591, %v3541
      %v3593 = vadd.f32 %v3592, %v3545
      %v3594 = vadd.f32 %v3593, %v3549
      %v3595 = vadd.f32 %v3594, %v3553
      %v3596 = vadd.f32 %v3595, %v3557
      %v3597 = vadd.f32 %v3596, %v3561
      %v3598 = vadd.f32 %v3597, %v3565
      %v3599 = vrot.slane %v3598, 4
      %v3600 = vadd.f32 %v3598, %v3599
      %v3601 = vrot.slane %v3600, 2
      %v3602 = vadd.f32 %v3600, %v3601
      %v3603 = vrot.slane %v3602, 1
      %v3604 = vadd.f32 %v3602, %v3603
      %v3605 = vadd.f32 %v3443, %v3447
      %v3606 = vadd.f32 %v3605, %v3451
      %v3607 = vadd.f32 %v3606, %v3455
      %v3608 = vadd.f32 %v3607, %v3459
      %v3609 = vadd.f32 %v3608, %v3463
      %v3610 = vadd.f32 %v3609, %v3467
      %v3611 = vadd.f32 %v3610, %v3471
      %v3612 = vadd.f32 %v3611, %v3475
      %v3613 = vadd.f32 %v3612, %v3479
      %v3614 = vadd.f32 %v3613, %v3483
      %v3615 = vadd.f32 %v3614, %v3487
      %v3616 = vadd.f32 %v3615, %v3491
      %v3617 = vadd.f32 %v3616, %v3495
      %v3618 = vadd.f32 %v3617, %v3499
      %v3619 = vadd.f32 %v3618, %v3503
      %v3620 = vadd.f32 %v3619, %v3507
      %v3621 = vadd.f32 %v3620, %v3511
      %v3622 = vadd.f32 %v3621, %v3515
      %v3623 = vadd.f32 %v3622, %v3519
      %v3624 = vadd.f32 %v3623, %v3523
      %v3625 = vadd.f32 %v3624, %v3527
      %v3626 = vadd.f32 %v3625, %v3531
      %v3627 = vadd.f32 %v3626, %v3535
      %v3628 = vadd.f32 %v3627, %v3539
      %v3629 = vadd.f32 %v3628, %v3543
      %v3630 = vadd.f32 %v3629, %v3547
      %v3631 = vadd.f32 %v3630, %v3551
      %v3632 = vadd.f32 %v3631, %v3555
      %v3633 = vadd.f32 %v3632, %v3559
      %v3634 = vadd.f32 %v3633, %v3563
      %v3635 = vadd.f32 %v3634, %v3567
      %v3636 = vrot.slane %v3635, 4
      %v3637 = vadd.f32 %v3635, %v3636
      %v3638 = vrot.slane %v3637, 2
      %v3639 = vadd.f32 %v3637, %v3638
      %v3640 = vrot.slane %v3639, 1
      %v3641 = vadd.f32 %v3639, %v3640
      %3642 = vmatprep.subr.mxu0 %v3443
      %3643 = vmatpush1.msra.mxu0 %v3441
      %3644 = vmatprep.subr.mxu0 %v3447
      %3645 = vmatpush1.msra.mxu0 %v3445
      %3646 = vmatprep.subr.mxu0 %v3451
      %3647 = vmatpush1.msra.mxu0 %v3449
      %3648 = vmatprep.subr.mxu0 %v3455
      %3649 = vmatpush1.msra.mxu0 %v3453
      %3650 = vmatprep.subr.mxu0 %v3459
      %3651 = vmatpush1.msra.mxu0 %v3457
      %3652 = vmatprep.subr.mxu0 %v3463
      %3653 = vmatpush1.msra.mxu0 %v3461
      %3654 = vmatprep.subr.mxu0 %v3467
      %3655 = vmatpush1.msra.mxu0 %v3465
      %3656 = vmatprep.subr.mxu0 %v3471
      %3657 = vmatpush1.msra.mxu0 %v3469
      %3658 = vmatprep.subr.mxu0 %v3475
      %3659 = vmatpush1.msra.mxu0 %v3473
      %3660 = vmatprep.subr.mxu0 %v3479
      %3661 = vmatpush1.msra.mxu0 %v3477
      %3662 = vmatprep.subr.mxu0 %v3483
      %3663 = vmatpush1.msra.mxu0 %v3481
      %3664 = vmatprep.subr.mxu0 %v3487
      %3665 = vmatpush1.msra.mxu0 %v3485
      %3666 = vmatprep.subr.mxu0 %v3491
      %3667 = vmatpush1.msra.mxu0 %v3489
      %3668 = vmatprep.subr.mxu0 %v3495
      %3669 = vmatpush1.msra.mxu0 %v3493
      %3670 = vmatprep.subr.mxu0 %v3499
      %3671 = vmatpush1.msra.mxu0 %v3497
      %3672 = vmatprep.subr.mxu0 %v3503
      %3673 = vmatpush1.msra.mxu0 %v3501
      %3674 = vmatprep.subr.mxu0 %v3507
      %3675 = vmatpush1.msra.mxu0 %v3505
      %3676 = vmatprep.subr.mxu0 %v3511
      %3677 = vmatpush1.msra.mxu0 %v3509
      %3678 = vmatprep.subr.mxu0 %v3515
      %3679 = vmatpush1.msra.mxu0 %v3513
      %3680 = vmatprep.subr.mxu0 %v3519
      %3681 = vmatpush1.msra.mxu0 %v3517
      %3682 = vmatprep.subr.mxu0 %v3523
      %3683 = vmatpush1.msra.mxu0 %v3521
      %3684 = vmatprep.subr.mxu0 %v3527
      %3685 = vmatpush1.msra.mxu0 %v3525
      %3686 = vmatprep.subr.mxu0 %v3531
      %3687 = vmatpush1.msra.mxu0 %v3529
      %3688 = vmatprep.subr.mxu0 %v3535
      %3689 = vmatpush1.msra.mxu0 %v3533
      %3690 = vmatprep.subr.mxu0 %v3539
      %3691 = vmatpush1.msra.mxu0 %v3537
      %3692 = vmatprep.subr.mxu0 %v3543
      %3693 = vmatpush1.msra.mxu0 %v3541
      %3694 = vmatprep.subr.mxu0 %v3547
      %3695 = vmatpush1.msra.mxu0 %v3545
      %3696 = vmatprep.subr.mxu0 %v3551
      %3697 = vmatpush1.msra.mxu0 %v3549
      %3698 = vmatprep.subr.mxu0 %v3555
      %3699 = vmatpush1.msra.mxu0 %v3553
      %3700 = vmatprep.subr.mxu0 %v3559
      %3701 = vmatpush1.msra.mxu0 %v3557
      %3702 = vmatprep.subr.mxu0 %v3563
      %3703 = vmatpush1.msra.mxu0 %v3561
      %3704 = vmatprep.subr.mxu0 %v3567
      %3705 = vmatpush1.msra.mxu0 %v3565
      %3706 = vmatprep.mubr.f32.mxu0 %v372
      %3707 = vmatmul.mubr.f32.gmra.mrb[0].mxu0 %v370
      %v3708 = vpop.f32.mrb[0].mxu0
      %v3709 = vadd.f32 0.0, %v3708
      %v3710 = vpop.f32.mrb[0].mxu0
      %v3711 = vadd.f32 0.0, %v3710
      %3712 = vdwg.mxu0
      %v3713 = vrcp.pop %v3604
      %v3714 = vrcp.pop %v3641
      %v3715 = vmul.f32 %v3709, %v3713
      %v3716 = vmul.f32 %v3711, %v3714
      %3717 = vst [vmem:[%s170 + $0x30] sm:$0xff] %v3715
      %3718 = vst [vmem:[%s170 + $0x38] sm:$0xff] %v3716
      %p3719 = scmp.lt.s32.totalorder %s14, 1
      %s3720 = scalar_select %p3719, %s14, 1
      %s3721 = smul.addr %s3720, 8
      %s3722 = smul.addr %s3721, 8
      %s3723 = scalar_lea.vmem %s3, %s3722
      // Predicated region
      $region33: #{mhsa_forward.1} parent=31 // pred_check
        %p3724 = pneg %p100
      $region34: #{mhsa_forward.1} parent=31 // pred_check_branch
        %3726 = sbr.rel (%p3724) target = $region36
      $region35: #{mhsa_forward.1} parent=31 // pred_region
        _
      $region36: #{mhsa_forward.1} parent=31 // pred_fallthru
        _
    $region32: #{mhsa_forward.1} parent=5 // pred_fallthru
      _
    %p3727 = scmp.le.s32.totalorder 2, %s9
    // Predicated region
    $region37: #{mhsa_forward.1} parent=5 // pred_check
      %p3728 = pneg %p3727
    $region38: #{mhsa_forward.1} parent=5 // pred_check_branch
      %3730 = sbr.rel (%p3728) target = $region40
    $region39: #{mhsa_forward.1} parent=5 // pred_region
      %s3731 = ssub.s32 %s9, 2
      // Predicated region
      $region41: #{mhsa_forward.1} parent=39 // pred_check
        %p3732 = pneg %p106
      $region42: #{mhsa_forward.1} parent=39 // pred_check_branch
        %3734 = sbr.rel (%p3732) target = $region44
      $region43: #{mhsa_forward.1} parent=39 // pred_region
        %p3735 = scmp.lt.s32.totalorder %s15, 1
        %s3736 = scalar_select %p3735, %s15, 1
        %s3737 = smul.addr %s3736, 8
        %s3738 = smul.addr %s3737, 8
        %s3739 = scalar_lea.vmem %s3, %s3738
      $region44: #{mhsa_forward.1} parent=39 // pred_fallthru
        _
    $region40: #{mhsa_forward.1} parent=5 // pred_fallthru
      _
  $region6: #{mhsa_forward.1} parent=0 // loop_footer
    %s13 = sadd.s32 1, %s9
  $region7: #{mhsa_forward.1} parent=0 // loop_footer_branch
    %8 = sbr.rel target = $region3
  $region8: #{mhsa_forward.1} parent=0 // loop_exit
    _

</llo_original>
